<compile_context>
chip_gen: v6e
topology: v6e:2x2x1
jax: 0.10.0
libtpu: 0.0.40
codegen_flags: <defaults>
</compile_context>

<pallas_src>
import functools

import jax
import jax.numpy as jnp
import numpy as np
from jax.experimental import pallas as pl
from jax.experimental.pallas import tpu as pltpu


def _round_up(x, m):
    return ((x + m - 1) // m) * m


# ---------------------------------------------------------------------------
# Kernel A: standard / grouped conv.  One grid step = (image, group,
# cout-tile).  im2col happens in VMEM: kh*kw shifted sub-matmuls accumulated
# in f32, then folded-BN bias + PReLU epilogue, bf16 lane-dense store.
# ---------------------------------------------------------------------------
def _make_conv_kernel(kh, kw, sh, sw, Hout, Wout_pad):
    def kernel(x_ref, w_ref, ba_ref, o_ref):
        # x_ref : (Hp, Wp_pad, Cg)        bf16  zero-padded input image (one group)
        # w_ref : (kh*kw, Cg, tn)         bf16  BN-scale-folded weights
        # ba_ref: (2, tn)                 f32   row0 = bias, row1 = PReLU alpha
        # o_ref : (Hout*Wout_pad, tn)     bf16
        tn = o_ref.shape[-1]
        acc = jnp.zeros((Hout * Wout_pad, tn), jnp.float32)
        for i in range(kh):
            for j in range(kw):
                if sh == 1 and sw == 1:
                    xs = x_ref[i:i + Hout, j:j + Wout_pad, :]
                else:
                    xs = x_ref[pl.ds(i, Hout, stride=sh),
                               pl.ds(j, Wout_pad, stride=sw), :]
                lhs = xs.reshape(Hout * Wout_pad, xs.shape[-1])
                acc = acc + jnp.dot(lhs, w_ref[i * kw + j],
                                    preferred_element_type=jnp.float32)
        y = acc + ba_ref[0:1, :]
        y = jnp.where(y > 0.0, y, ba_ref[1:2, :] * y)
        o_ref[...] = y.astype(o_ref.dtype)
    return kernel


# ---------------------------------------------------------------------------
# Kernel B: depthwise conv (groups == C_in == C_out).  Pure VPU MAC over
# kh*kw shifted slabs; channels live in the lane dimension.
# ---------------------------------------------------------------------------
def _make_depthwise_kernel(kh, kw, sh, sw, Hout, Wout_pad):
    def kernel(x_ref, w_ref, ba_ref, o_ref):
        # x_ref : (Hp, Wp_pad, Cp)        bf16
        # w_ref : (kh*kw, Cp)             f32 (BN scale folded)
        # ba_ref: (2, Cp)                 f32
        # o_ref : (Hout, Wout_pad, Cp)    bf16
        Cp = o_ref.shape[-1]
        acc = jnp.zeros((Hout, Wout_pad, Cp), jnp.float32)
        for i in range(kh):
            for j in range(kw):
                if sh == 1 and sw == 1:
                    xs = x_ref[i:i + Hout, j:j + Wout_pad, :]
                else:
                    xs = x_ref[pl.ds(i, Hout, stride=sh),
                               pl.ds(j, Wout_pad, stride=sw), :]
                acc = acc + xs.astype(jnp.float32) * w_ref[i * kw + j:i * kw + j + 1, :]
        y = acc + ba_ref[0:1, :]
        y = jnp.where(y > 0.0, y, ba_ref[1:2, :] * y)
        o_ref[...] = y.astype(o_ref.dtype)
    return kernel


# ---------------------------------------------------------------------------
# Conv_block forward (eval-mode BN folded)
# ---------------------------------------------------------------------------
@functools.partial(jax.jit,
                   static_argnames=("stride", "padding", "groups", "eps"))
def conv_block_forward(x, weight, gamma, beta, running_mean, running_var,
                       prelu_alpha, *, stride=(1, 1), padding=(0, 0),
                       groups=1, eps=1e-5):
    """x: [N, C_in, H, W]; weight: [C_out, C_in//groups, kh, kw] -> [N, C_out, Ho, Wo] f32."""
    N, C_in, H, W = x.shape
    C_out, Cg, kh, kw = weight.shape
    assert C_in % groups == 0 and C_out % groups == 0 and Cg == C_in // groups
    Cg_out = C_out // groups
    sh, sw = stride
    ph, pw = padding

    Hout = (H + 2 * ph - kh) // sh + 1
    Wout = (W + 2 * pw - kw) // sw + 1
    Wout_pad = _round_up(Wout, 16)                  # bf16 row-tile alignment
    Hp = H + 2 * ph
    Wp_pad = max(W + 2 * pw, (Wout_pad - 1) * sw + kw)

    # ---- fold eval-mode BN into scale/bias; per-channel PReLU slope ---------
    scale = gamma.astype(jnp.float32) / jnp.sqrt(running_var.astype(jnp.float32) + eps)
    bias = beta.astype(jnp.float32) - running_mean.astype(jnp.float32) * scale
    alpha = jnp.broadcast_to(
        jnp.asarray(prelu_alpha, jnp.float32).reshape(-1), (C_out,))

    # =========================================================================
    # Dedicated depthwise path (groups == C_in == C_out): VPU only.
    # =========================================================================
    if groups > 1 and groups == C_in and C_out == C_in:
        Cp = _round_up(C_in, 128)
        x4 = jnp.transpose(x, (0, 2, 3, 1)).astype(jnp.bfloat16)   # NHWC
        x4 = jnp.pad(x4, ((0, 0), (ph, Hp - H - ph),
                          (pw, Wp_pad - W - pw), (0, Cp - C_in)))
        wdw = weight.astype(jnp.float32).reshape(C_out, kh * kw) * scale[:, None]
        wdw = jnp.pad(wdw.T, ((0, 0), (0, Cp - C_out)))            # [kh*kw, Cp]
        ba = jnp.pad(jnp.stack([bias, alpha], axis=0),
                     ((0, 0), (0, Cp - C_out)))                    # [2, Cp]

        kernel = _make_depthwise_kernel(kh, kw, sh, sw, Hout, Wout_pad)
        est = (2 * (Hp * Wp_pad * Cp * 2 + kh * kw * Cp * 4 + 2 * Cp * 4
                    + Hout * Wout_pad * Cp * 2) + Hout * Wout_pad * Cp * 4)
        out = pl.pallas_call(
            kernel,
            out_shape=jax.ShapeDtypeStruct((N, Hout, Wout_pad, Cp), jnp.bfloat16),
            grid_spec=pltpu.PrefetchScalarGridSpec(
                num_scalar_prefetch=0,
                grid=(N,),
                in_specs=[
                    pl.BlockSpec((None, Hp, Wp_pad, Cp), lambda n: (n, 0, 0, 0)),
                    pl.BlockSpec((kh * kw, Cp), lambda n: (0, 0)),
                    pl.BlockSpec((2, Cp), lambda n: (0, 0)),
                ],
                out_specs=pl.BlockSpec((None, Hout, Wout_pad, Cp),
                                       lambda n: (n, 0, 0, 0)),
            ),
            compiler_params=pltpu.CompilerParams(
                dimension_semantics=("parallel",),
                vmem_limit_bytes=int(min(64 << 20, max(32 << 20, 2 * est)))),
            cost_estimate=pl.CostEstimate(
                flops=2 * N * Hout * Wout * C_out * kh * kw,
                transcendentals=0,
                bytes_accessed=int(x4.size * 2 + wdw.size * 4 + ba.size * 4
                                   + N * Hout * Wout_pad * Cp * 2)),
        )(x4, wdw, ba)
        out = out[:, :, :Wout, :C_out]
        return jnp.transpose(out, (0, 3, 1, 2)).astype(jnp.float32)

    # =========================================================================
    # General path (groups == 1 and other grouped convs): fused in-kernel
    # im2col + MXU matmul.
    # =========================================================================
    Cout_pad = _round_up(Cg_out, 128)
    if Cout_pad <= 512:
        tn = Cout_pad
    else:
        tn = next(t for t in (512, 256, 128) if Cout_pad % t == 0)

    def _vmem_est(tn_):
        return (2 * (Hp * Wp_pad * Cg * 2 + kh * kw * Cg * tn_ * 2
                     + 2 * tn_ * 4 + Hout * Wout_pad * tn_ * 2)
                + Hout * Wout_pad * tn_ * 4 + Hout * Wout_pad * Cg * 2)

    # keep per-step VMEM comfortably inside v7x (64 MiB) / v5e scoped budgets
    while tn % 256 == 0 and _vmem_est(tn) > (40 << 20):
        tn //= 2
    n_ct = Cout_pad // tn

    # ---- single layout pass: NCHW -> [N, G, Hp, Wp_pad, Cg] bf16 ------------
    xg = jnp.transpose(x, (0, 2, 3, 1)).reshape(N, H, W, groups, Cg)
    xg = jnp.transpose(xg, (0, 3, 1, 2, 4)).astype(jnp.bfloat16)
    xg = jnp.pad(xg, ((0, 0), (0, 0), (ph, Hp - H - ph),
                      (pw, Wp_pad - W - pw), (0, 0)))

    # weights with BN scale folded: [G, kh*kw, Cg, Cout_pad] bf16
    w4 = weight.astype(jnp.float32).reshape(groups, Cg_out, Cg, kh * kw)
    w4 = w4 * scale.reshape(groups, Cg_out, 1, 1)
    w4 = jnp.transpose(w4, (0, 3, 2, 1))
    w4 = jnp.pad(w4, ((0, 0), (0, 0), (0, 0), (0, Cout_pad - Cg_out)))
    w4 = w4.astype(jnp.bfloat16)

    # bias / PReLU alpha packed into a single operand: [G, 2, Cout_pad] f32
    ba = jnp.stack([bias.reshape(groups, Cg_out),
                    alpha.reshape(groups, Cg_out)], axis=1)
    ba = jnp.pad(ba, ((0, 0), (0, 0), (0, Cout_pad - Cg_out)))

    kernel = _make_conv_kernel(kh, kw, sh, sw, Hout, Wout_pad)

    out = pl.pallas_call(
        kernel,
        out_shape=jax.ShapeDtypeStruct(
            (N, groups, Hout * Wout_pad, Cout_pad), jnp.bfloat16),
        grid_spec=pltpu.PrefetchScalarGridSpec(
            num_scalar_prefetch=0,
            grid=(N, groups, n_ct),
            in_specs=[
                pl.BlockSpec((None, None, Hp, Wp_pad, Cg),
                             lambda n, g, c: (n, g, 0, 0, 0)),
                pl.BlockSpec((None, kh * kw, Cg, tn),
                             lambda n, g, c: (g, 0, 0, c)),
                pl.BlockSpec((None, 2, tn),
                             lambda n, g, c: (g, 0, c)),
            ],
            out_specs=pl.BlockSpec((None, None, Hout * Wout_pad, tn),
                                   lambda n, g, c: (n, g, 0, c)),
        ),
        compiler_params=pltpu.CompilerParams(
            dimension_semantics=("parallel", "parallel", "parallel"),
            vmem_limit_bytes=int(min(64 << 20, max(32 << 20, 2 * _vmem_est(tn))))),
        cost_estimate=pl.CostEstimate(
            flops=2 * N * Hout * Wout * C_out * Cg * kh * kw,
            transcendentals=0,
            bytes_accessed=int(xg.size * 2 + w4.size * 2 + ba.size * 4
                               + N * groups * Hout * Wout_pad * Cout_pad * 2)),
    )(xg, w4, ba)

    # strip padding, back to NCHW f32 (single pass over bf16 kernel output)
    out = out.reshape(N, groups, Hout, Wout_pad, Cout_pad)
    out = out[:, :, :, :Wout, :Cg_out]
    out = jnp.transpose(out, (0, 1, 4, 2, 3)).reshape(N, C_out, Hout, Wout)
    return out.astype(jnp.float32)


# ---------------------------------------------------------------------------
# Pure-JAX reference (correctness check)
# ---------------------------------------------------------------------------
def _reference(x, weight, gamma, beta, mean, var, alpha, stride, padding,
               groups, eps=1e-5):
    y = jax.lax.conv_general_dilated(
        x, weight, window_strides=stride,
        padding=[(padding[0], padding[0]), (padding[1], padding[1])],
        dimension_numbers=("NCHW", "OIHW", "NCHW"),
        feature_group_count=groups)
    scale = gamma / jnp.sqrt(var + eps)
    bias = beta - mean * scale
    y = y * scale[None, :, None, None] + bias[None, :, None, None]
    return jnp.where(y > 0, y, alpha[None, :, None, None] * y)


if __name__ == "__main__":
    key = jax.random.PRNGKey(0)
    N, C_in, H, W = 2, 4, 16, 16
    C_out = 8
    kernel_size = (3, 3)
    stride = (1, 1)
    padding = (1, 1)
    groups = 1

    k1, k2, k3, k4, k5, k6 = jax.random.split(key, 6)
    x = jax.random.normal(k1, (N, C_in, H, W), jnp.float32)
    weight = jax.random.normal(
        k2, (C_out, C_in // groups, kernel_size[0], kernel_size[1]),
        jnp.float32) * 0.1
    gamma = jax.random.uniform(k3, (C_out,), jnp.float32, minval=0.5, maxval=1.5)
    beta = jax.random.normal(k4, (C_out,), jnp.float32) * 0.1
    running_mean = jax.random.normal(k5, (C_out,), jnp.float32) * 0.1
    running_var = jax.random.uniform(k6, (C_out,), jnp.float32,
                                     minval=0.5, maxval=1.5)
    prelu_alpha = jnp.full((C_out,), 0.25, jnp.float32)   # PReLU(out_c) init

    out = conv_block_forward(
        x, weight, gamma, beta, running_mean, running_var, prelu_alpha,
        stride=stride, padding=padding, groups=groups)
    out = jax.block_until_ready(out)

    ref = jax.block_until_ready(_reference(
        x, weight, gamma, beta, running_mean, running_var, prelu_alpha,
        stride, padding, groups))

    assert out.shape == ref.shape == (N, C_out, H, W), (out.shape, ref.shape)
    # bf16 MXU operands + bf16 output store with f32 accumulation.
    max_err = float(np.max(np.abs(np.asarray(out) - np.asarray(ref))))
    assert np.allclose(np.asarray(out), np.asarray(ref),
                       rtol=2e-2, atol=3e-2), max_err

    print("KERNEL_OK")
</pallas_src>

<mosaic_0001>
module attributes {stable_mosaic.version = 11 : i64} {
  func.func @kernel(%arg0: i32, %arg1: i32, %arg2: i32, %arg3: memref<1x1x18x18x4xbf16, #tpu.memory_space<vmem>>, %arg4: memref<1x9x4x128xbf16, #tpu.memory_space<vmem>>, %arg5: memref<1x2x128xf32, #tpu.memory_space<vmem>>, %arg6: memref<1x1x256x128xbf16, #tpu.memory_space<vmem>>) attributes {dimension_semantics = [#tpu.dimension_semantics<parallel>, #tpu.dimension_semantics<parallel>, #tpu.dimension_semantics<parallel>], iteration_bounds = array<i64: 2, 1, 1>, scalar_prefetch = 0 : i64, scratch_operands = 0 : i64, tpu.core_type = #tpu.core_type<tc>, window_params = [{transform_indices = @transform_0, window_bounds = array<i64: 1, 1, 18, 18, 4>}, {transform_indices = @transform_1, window_bounds = array<i64: 1, 9, 4, 128>}, {transform_indices = @transform_2, window_bounds = array<i64: 1, 2, 128>}, {transform_indices = @transform_3, window_bounds = array<i64: 1, 1, 256, 128>}]} {
    %cst = arith.constant 0.000000e+00 : f32
    %0 = vector.broadcast %cst : f32 to vector<256x128xf32>
    %c0 = arith.constant 0 : index
    %c0_0 = arith.constant 0 : index
    %c0_1 = arith.constant 0 : index
    %c0_2 = arith.constant 0 : index
    %c0_3 = arith.constant 0 : index
    %1 = vector.load %arg3[%c0, %c0_0, %c0_1, %c0_2, %c0_3] : memref<1x1x18x18x4xbf16, #tpu.memory_space<vmem>>, vector<1x1x16x16x4xbf16>
    %2 = vector.shape_cast %1 : vector<1x1x16x16x4xbf16> to vector<16x16x4xbf16>
    %3 = vector.shape_cast %2 : vector<16x16x4xbf16> to vector<256x4xbf16>
    %c0_4 = arith.constant 0 : index
    %c0_5 = arith.constant 0 : index
    %c0_6 = arith.constant 0 : index
    %c0_7 = arith.constant 0 : index
    %4 = vector.load %arg4[%c0_4, %c0_5, %c0_6, %c0_7] : memref<1x9x4x128xbf16, #tpu.memory_space<vmem>>, vector<1x1x4x128xbf16>
    %5 = vector.shape_cast %4 : vector<1x1x4x128xbf16> to vector<4x128xbf16>
    %cst_8 = arith.constant dense<0.000000e+00> : vector<256x128xf32>
    %6 = tpu.matmul %3, %5, %cst_8 {dimension_numbers = #tpu.dot_dimension_numbers<[1], [0], [0], [1], [0, 0, 1, 1], [], []>} : vector<256x4xbf16>, vector<4x128xbf16>, vector<256x128xf32> -> vector<256x128xf32>
    %7 = arith.addf %0, %6 : vector<256x128xf32>
    %c0_9 = arith.constant 0 : index
    %c0_10 = arith.constant 0 : index
    %c0_11 = arith.constant 0 : index
    %c1 = arith.constant 1 : index
    %c0_12 = arith.constant 0 : index
    %8 = vector.load %arg3[%c0_9, %c0_10, %c0_11, %c1, %c0_12] : memref<1x1x18x18x4xbf16, #tpu.memory_space<vmem>>, vector<1x1x16x16x4xbf16>
    %9 = vector.shape_cast %8 : vector<1x1x16x16x4xbf16> to vector<16x16x4xbf16>
    %10 = vector.shape_cast %9 : vector<16x16x4xbf16> to vector<256x4xbf16>
    %c0_13 = arith.constant 0 : index
    %c1_14 = arith.constant 1 : index
    %c0_15 = arith.constant 0 : index
    %c0_16 = arith.constant 0 : index
    %11 = vector.load %arg4[%c0_13, %c1_14, %c0_15, %c0_16] : memref<1x9x4x128xbf16, #tpu.memory_space<vmem>>, vector<1x1x4x128xbf16>
    %12 = vector.shape_cast %11 : vector<1x1x4x128xbf16> to vector<4x128xbf16>
    %cst_17 = arith.constant dense<0.000000e+00> : vector<256x128xf32>
    %13 = tpu.matmul %10, %12, %cst_17 {dimension_numbers = #tpu.dot_dimension_numbers<[1], [0], [0], [1], [0, 0, 1, 1], [], []>} : vector<256x4xbf16>, vector<4x128xbf16>, vector<256x128xf32> -> vector<256x128xf32>
    %14 = arith.addf %7, %13 : vector<256x128xf32>
    %c0_18 = arith.constant 0 : index
    %c0_19 = arith.constant 0 : index
    %c0_20 = arith.constant 0 : index
    %c2 = arith.constant 2 : index
    %c0_21 = arith.constant 0 : index
    %15 = vector.load %arg3[%c0_18, %c0_19, %c0_20, %c2, %c0_21] : memref<1x1x18x18x4xbf16, #tpu.memory_space<vmem>>, vector<1x1x16x16x4xbf16>
    %16 = vector.shape_cast %15 : vector<1x1x16x16x4xbf16> to vector<16x16x4xbf16>
    %17 = vector.shape_cast %16 : vector<16x16x4xbf16> to vector<256x4xbf16>
    %c0_22 = arith.constant 0 : index
    %c2_23 = arith.constant 2 : index
    %c0_24 = arith.constant 0 : index
    %c0_25 = arith.constant 0 : index
    %18 = vector.load %arg4[%c0_22, %c2_23, %c0_24, %c0_25] : memref<1x9x4x128xbf16, #tpu.memory_space<vmem>>, vector<1x1x4x128xbf16>
    %19 = vector.shape_cast %18 : vector<1x1x4x128xbf16> to vector<4x128xbf16>
    %cst_26 = arith.constant dense<0.000000e+00> : vector<256x128xf32>
    %20 = tpu.matmul %17, %19, %cst_26 {dimension_numbers = #tpu.dot_dimension_numbers<[1], [0], [0], [1], [0, 0, 1, 1], [], []>} : vector<256x4xbf16>, vector<4x128xbf16>, vector<256x128xf32> -> vector<256x128xf32>
    %21 = arith.addf %14, %20 : vector<256x128xf32>
    %c0_27 = arith.constant 0 : index
    %c0_28 = arith.constant 0 : index
    %c1_29 = arith.constant 1 : index
    %c0_30 = arith.constant 0 : index
    %c0_31 = arith.constant 0 : index
    %22 = vector.load %arg3[%c0_27, %c0_28, %c1_29, %c0_30, %c0_31] : memref<1x1x18x18x4xbf16, #tpu.memory_space<vmem>>, vector<1x1x16x16x4xbf16>
    %23 = vector.shape_cast %22 : vector<1x1x16x16x4xbf16> to vector<16x16x4xbf16>
    %24 = vector.shape_cast %23 : vector<16x16x4xbf16> to vector<256x4xbf16>
    %c0_32 = arith.constant 0 : index
    %c3 = arith.constant 3 : index
    %c0_33 = arith.constant 0 : index
    %c0_34 = arith.constant 0 : index
    %25 = vector.load %arg4[%c0_32, %c3, %c0_33, %c0_34] : memref<1x9x4x128xbf16, #tpu.memory_space<vmem>>, vector<1x1x4x128xbf16>
    %26 = vector.shape_cast %25 : vector<1x1x4x128xbf16> to vector<4x128xbf16>
    %cst_35 = arith.constant dense<0.000000e+00> : vector<256x128xf32>
    %27 = tpu.matmul %24, %26, %cst_35 {dimension_numbers = #tpu.dot_dimension_numbers<[1], [0], [0], [1], [0, 0, 1, 1], [], []>} : vector<256x4xbf16>, vector<4x128xbf16>, vector<256x128xf32> -> vector<256x128xf32>
    %28 = arith.addf %21, %27 : vector<256x128xf32>
    %c0_36 = arith.constant 0 : index
    %c0_37 = arith.constant 0 : index
    %c1_38 = arith.constant 1 : index
    %c1_39 = arith.constant 1 : index
    %c0_40 = arith.constant 0 : index
    %29 = vector.load %arg3[%c0_36, %c0_37, %c1_38, %c1_39, %c0_40] : memref<1x1x18x18x4xbf16, #tpu.memory_space<vmem>>, vector<1x1x16x16x4xbf16>
    %30 = vector.shape_cast %29 : vector<1x1x16x16x4xbf16> to vector<16x16x4xbf16>
    %31 = vector.shape_cast %30 : vector<16x16x4xbf16> to vector<256x4xbf16>
    %c0_41 = arith.constant 0 : index
    %c4 = arith.constant 4 : index
    %c0_42 = arith.constant 0 : index
    %c0_43 = arith.constant 0 : index
    %32 = vector.load %arg4[%c0_41, %c4, %c0_42, %c0_43] : memref<1x9x4x128xbf16, #tpu.memory_space<vmem>>, vector<1x1x4x128xbf16>
    %33 = vector.shape_cast %32 : vector<1x1x4x128xbf16> to vector<4x128xbf16>
    %cst_44 = arith.constant dense<0.000000e+00> : vector<256x128xf32>
    %34 = tpu.matmul %31, %33, %cst_44 {dimension_numbers = #tpu.dot_dimension_numbers<[1], [0], [0], [1], [0, 0, 1, 1], [], []>} : vector<256x4xbf16>, vector<4x128xbf16>, vector<256x128xf32> -> vector<256x128xf32>
    %35 = arith.addf %28, %34 : vector<256x128xf32>
    %c0_45 = arith.constant 0 : index
    %c0_46 = arith.constant 0 : index
    %c1_47 = arith.constant 1 : index
    %c2_48 = arith.constant 2 : index
    %c0_49 = arith.constant 0 : index
    %36 = vector.load %arg3[%c0_45, %c0_46, %c1_47, %c2_48, %c0_49] : memref<1x1x18x18x4xbf16, #tpu.memory_space<vmem>>, vector<1x1x16x16x4xbf16>
    %37 = vector.shape_cast %36 : vector<1x1x16x16x4xbf16> to vector<16x16x4xbf16>
    %38 = vector.shape_cast %37 : vector<16x16x4xbf16> to vector<256x4xbf16>
    %c0_50 = arith.constant 0 : index
    %c5 = arith.constant 5 : index
    %c0_51 = arith.constant 0 : index
    %c0_52 = arith.constant 0 : index
    %39 = vector.load %arg4[%c0_50, %c5, %c0_51, %c0_52] : memref<1x9x4x128xbf16, #tpu.memory_space<vmem>>, vector<1x1x4x128xbf16>
    %40 = vector.shape_cast %39 : vector<1x1x4x128xbf16> to vector<4x128xbf16>
    %cst_53 = arith.constant dense<0.000000e+00> : vector<256x128xf32>
    %41 = tpu.matmul %38, %40, %cst_53 {dimension_numbers = #tpu.dot_dimension_numbers<[1], [0], [0], [1], [0, 0, 1, 1], [], []>} : vector<256x4xbf16>, vector<4x128xbf16>, vector<256x128xf32> -> vector<256x128xf32>
    %42 = arith.addf %35, %41 : vector<256x128xf32>
    %c0_54 = arith.constant 0 : index
    %c0_55 = arith.constant 0 : index
    %c2_56 = arith.constant 2 : index
    %c0_57 = arith.constant 0 : index
    %c0_58 = arith.constant 0 : index
    %43 = vector.load %arg3[%c0_54, %c0_55, %c2_56, %c0_57, %c0_58] : memref<1x1x18x18x4xbf16, #tpu.memory_space<vmem>>, vector<1x1x16x16x4xbf16>
    %44 = vector.shape_cast %43 : vector<1x1x16x16x4xbf16> to vector<16x16x4xbf16>
    %45 = vector.shape_cast %44 : vector<16x16x4xbf16> to vector<256x4xbf16>
    %c0_59 = arith.constant 0 : index
    %c6 = arith.constant 6 : index
    %c0_60 = arith.constant 0 : index
    %c0_61 = arith.constant 0 : index
    %46 = vector.load %arg4[%c0_59, %c6, %c0_60, %c0_61] : memref<1x9x4x128xbf16, #tpu.memory_space<vmem>>, vector<1x1x4x128xbf16>
    %47 = vector.shape_cast %46 : vector<1x1x4x128xbf16> to vector<4x128xbf16>
    %cst_62 = arith.constant dense<0.000000e+00> : vector<256x128xf32>
    %48 = tpu.matmul %45, %47, %cst_62 {dimension_numbers = #tpu.dot_dimension_numbers<[1], [0], [0], [1], [0, 0, 1, 1], [], []>} : vector<256x4xbf16>, vector<4x128xbf16>, vector<256x128xf32> -> vector<256x128xf32>
    %49 = arith.addf %42, %48 : vector<256x128xf32>
    %c0_63 = arith.constant 0 : index
    %c0_64 = arith.constant 0 : index
    %c2_65 = arith.constant 2 : index
    %c1_66 = arith.constant 1 : index
    %c0_67 = arith.constant 0 : index
    %50 = vector.load %arg3[%c0_63, %c0_64, %c2_65, %c1_66, %c0_67] : memref<1x1x18x18x4xbf16, #tpu.memory_space<vmem>>, vector<1x1x16x16x4xbf16>
    %51 = vector.shape_cast %50 : vector<1x1x16x16x4xbf16> to vector<16x16x4xbf16>
    %52 = vector.shape_cast %51 : vector<16x16x4xbf16> to vector<256x4xbf16>
    %c0_68 = arith.constant 0 : index
    %c7 = arith.constant 7 : index
    %c0_69 = arith.constant 0 : index
    %c0_70 = arith.constant 0 : index
    %53 = vector.load %arg4[%c0_68, %c7, %c0_69, %c0_70] : memref<1x9x4x128xbf16, #tpu.memory_space<vmem>>, vector<1x1x4x128xbf16>
    %54 = vector.shape_cast %53 : vector<1x1x4x128xbf16> to vector<4x128xbf16>
    %cst_71 = arith.constant dense<0.000000e+00> : vector<256x128xf32>
    %55 = tpu.matmul %52, %54, %cst_71 {dimension_numbers = #tpu.dot_dimension_numbers<[1], [0], [0], [1], [0, 0, 1, 1], [], []>} : vector<256x4xbf16>, vector<4x128xbf16>, vector<256x128xf32> -> vector<256x128xf32>
    %56 = arith.addf %49, %55 : vector<256x128xf32>
    %c0_72 = arith.constant 0 : index
    %c0_73 = arith.constant 0 : index
    %c2_74 = arith.constant 2 : index
    %c2_75 = arith.constant 2 : index
    %c0_76 = arith.constant 0 : index
    %57 = vector.load %arg3[%c0_72, %c0_73, %c2_74, %c2_75, %c0_76] : memref<1x1x18x18x4xbf16, #tpu.memory_space<vmem>>, vector<1x1x16x16x4xbf16>
    %58 = vector.shape_cast %57 : vector<1x1x16x16x4xbf16> to vector<16x16x4xbf16>
    %59 = vector.shape_cast %58 : vector<16x16x4xbf16> to vector<256x4xbf16>
    %c0_77 = arith.constant 0 : index
    %c8 = arith.constant 8 : index
    %c0_78 = arith.constant 0 : index
    %c0_79 = arith.constant 0 : index
    %60 = vector.load %arg4[%c0_77, %c8, %c0_78, %c0_79] : memref<1x9x4x128xbf16, #tpu.memory_space<vmem>>, vector<1x1x4x128xbf16>
    %61 = vector.shape_cast %60 : vector<1x1x4x128xbf16> to vector<4x128xbf16>
    %cst_80 = arith.constant dense<0.000000e+00> : vector<256x128xf32>
    %62 = tpu.matmul %59, %61, %cst_80 {dimension_numbers = #tpu.dot_dimension_numbers<[1], [0], [0], [1], [0, 0, 1, 1], [], []>} : vector<256x4xbf16>, vector<4x128xbf16>, vector<256x128xf32> -> vector<256x128xf32>
    %63 = arith.addf %56, %62 : vector<256x128xf32>
    %c0_81 = arith.constant 0 : index
    %c0_82 = arith.constant 0 : index
    %c0_83 = arith.constant 0 : index
    %64 = vector.load %arg5[%c0_81, %c0_82, %c0_83] : memref<1x2x128xf32, #tpu.memory_space<vmem>>, vector<1x1x128xf32>
    %65 = vector.shape_cast %64 : vector<1x1x128xf32> to vector<1x128xf32>
    %66 = vector.broadcast %65 : vector<1x128xf32> to vector<256x128xf32>
    %67 = arith.addf %63, %66 : vector<256x128xf32>
    %cst_84 = arith.constant 0.000000e+00 : f32
    %68 = vector.broadcast %cst_84 : f32 to vector<256x128xf32>
    %69 = arith.cmpf ogt, %67, %68 : vector<256x128xf32>
    %c0_85 = arith.constant 0 : index
    %c1_86 = arith.constant 1 : index
    %c0_87 = arith.constant 0 : index
    %70 = vector.load %arg5[%c0_85, %c1_86, %c0_87] : memref<1x2x128xf32, #tpu.memory_space<vmem>>, vector<1x1x128xf32>
    %71 = vector.shape_cast %70 : vector<1x1x128xf32> to vector<1x128xf32>
    %72 = vector.broadcast %71 : vector<1x128xf32> to vector<256x128xf32>
    %73 = arith.mulf %72, %67 : vector<256x128xf32>
    %74 = arith.select %69, %67, %73 : vector<256x128xi1>, vector<256x128xf32>
    %75 = arith.truncf %74 : vector<256x128xf32> to vector<256x128xbf16>
    %c0_88 = arith.constant 0 : index
    %c0_89 = arith.constant 0 : index
    %c0_90 = arith.constant 0 : index
    %c0_91 = arith.constant 0 : index
    %76 = vector.load %arg6[%c0_88, %c0_89, %c0_90, %c0_91] : memref<1x1x256x128xbf16, #tpu.memory_space<vmem>>, vector<1x1x256x128xbf16>
    %77 = vector.shape_cast %76 : vector<1x1x256x128xbf16> to vector<256x128xbf16>
    %78 = vector.shape_cast %75 : vector<256x128xbf16> to vector<1x1x256x128xbf16>
    tpu.vector_store %arg6[%c0_88, %c0_89, %c0_90, %c0_91], %78 {strides = array<i32>} : memref<1x1x256x128xbf16, #tpu.memory_space<vmem>>, vector<1x1x256x128xbf16>,
    return
  }
  func.func @transform_0(%arg0: i32, %arg1: i32, %arg2: i32) -> (i32, i32, i32, i32, i32) {
    %c0_i32 = arith.constant 0 : i32
    %c0_i32_0 = arith.constant 0 : i32
    %c0_i32_1 = arith.constant 0 : i32
    %c0_i32_2 = arith.constant 0 : i32
    return %arg0, %arg1, %c0_i32, %c0_i32_0, %c0_i32_1 : i32, i32, i32, i32, i32
  }
  func.func @transform_1(%arg0: i32, %arg1: i32, %arg2: i32) -> (i32, i32, i32, i32) {
    %c0_i32 = arith.constant 0 : i32
    %c0_i32_0 = arith.constant 0 : i32
    %c0_i32_1 = arith.constant 0 : i32
    return %arg1, %c0_i32, %c0_i32_0, %arg2 : i32, i32, i32, i32
  }
  func.func @transform_2(%arg0: i32, %arg1: i32, %arg2: i32) -> (i32, i32, i32) {
    %c0_i32 = arith.constant 0 : i32
    %c0_i32_0 = arith.constant 0 : i32
    return %arg1, %c0_i32, %arg2 : i32, i32, i32
  }
  func.func @transform_3(%arg0: i32, %arg1: i32, %arg2: i32) -> (i32, i32, i32, i32) {
    %c0_i32 = arith.constant 0 : i32
    %c0_i32_0 = arith.constant 0 : i32
    return %arg0, %arg1, %c0_i32, %arg2 : i32, i32, i32, i32
  }
}

</mosaic_0001>

<llo_original>
// kernel: conv_block_forward.1
$region0: #{conv_block_forward.1}
  #allocation0 [shape = 'u32[]', space=smem, size = 0x4, offset = 0x4, fixed_abs, tag = 'smem constant byte address 0x4 - core index']
  #allocation1 [shape = 'u32[144,128]{1,0:T(1,128)}', space=vmem, size = 0x12000, scoped, tag = 'internal scratch']
  %s0 = inlined_call_operand.vmem [shape: bf16[2,1,18,18,4], index: 0, kind: input, shape index: {}]
  %s1 = inlined_call_operand.vmem [shape: bf16[1,9,4,128], index: 1, kind: input, shape index: {}]
  %s2 = inlined_call_operand.vmem [shape: f32[1,2,128], index: 2, kind: input, shape index: {}]
  %s3 = inlined_call_operand.vmem [shape: bf16[2,1,256,128], index: 3, kind: output, shape index: {}]
  %s4 = sld [smem:[#allocation0]]
  $region45: #{conv_block_forward.1} parent=0
    _
  %s6 = ssub.s32 1, %s4
  %s7 = scalar_select 0, %s6, %s4
  loop: start=0, step=1, limit=4
  $region2: #{conv_block_forward.1} parent=0 // loop_pre_header
    _
  $region3: #{conv_block_forward.1} parent=0 // loop_header
    %s9 = sphi 0, %s13
    %p10 = scmp.ge.s32.totalorder %s9, 4
    %s16 = sphi 0, %s35
    %s17 = sphi 0, %s31
    %s18 = sphi 0, %s27
    %s19 = sphi 0, %s16
    %s20 = sphi 0, %s17
    %s21 = sphi 0, %s18
    %s22 = sphi 0, %s19
    %s23 = sphi 0, %s20
    %s24 = sphi 0, %s21
    %s40 = sphi 0, %s42
    %s43 = sphi 0, %s40
    %s44 = sphi 0, %s43
    %s60 = sphi 0, %s44
    %s68 = sphi 0, %s70
    %s71 = sphi 0, %s68
    %s72 = sphi 0, %s71
    %s88 = sphi 0, %s72
    %s96 = sphi 0, %s98
    %s99 = sphi 0, %s96
    %s100 = sphi 0, %s99
    %s116 = sphi 0, %s100
    %s126 = sphi 0, %s128
    %s129 = sphi 0, %s126
    %s130 = sphi 0, %s129
    %s146 = sphi 0, %s130
  $region4: #{conv_block_forward.1} parent=0 // loop_header_branch
    %12 = sbr.rel (%p10) target = $region8
  $region5: #{conv_block_forward.1} parent=0 // loop_body
    %s14 = ssub.s32 %s9, 1
    %s15 = ssub.s32 %s9, 2
    %s25 = sadd.s32 1, %s18
    %p26 = scmp.ge.s32.totalorder %s25, 1
    %s27 = scalar_select %p26, 0, %s25
    %s28 = sadd.s32 1, %s17
    %s29 = scalar_select %p26, %s28, %s17
    %p30 = scmp.ge.s32.totalorder %s29, 1
    %s31 = scalar_select %p30, 0, %s29
    %s32 = sadd.s32 1, %s16
    %s33 = scalar_select %p30, %s32, %s16
    %p34 = scmp.ge.s32.totalorder %s33, 2
    %s35 = scalar_select %p34, 0, %s33
    %s36 = ssub.s32 %s16, %s35
    %s37 = ssub.s32 %s17, %s31
    %s38 = sor.u32 %s36, %s37
    %p39 = scmp.eq.s32.totalorder %s38, 0
    %s41 = sadd.s32 %s40, 1
    %s42 = scalar_select %p39, %s40, %s41
    %p45 = pneg %p39
    %p46 = scmp.eq.s32.totalorder %s9, 1
    %p47 = por %p45, %p46
    %p48 = scmp.ne.s32.totalorder %s40, %s43
    %p49 = scmp.eq.s32.totalorder %s9, 0
    %p50 = por %p48, %p49
    %p51 = scmp.ne.s32.totalorder %s40, %s43
    %p52 = scmp.eq.s32.totalorder %s14, 1
    %p53 = por %p51, %p52
    %p54 = scmp.ne.s32.totalorder %s43, %s44
    %p55 = scmp.eq.s32.totalorder %s14, 0
    %p56 = por %p54, %p55
    %p57 = scmp.ne.s32.totalorder %s43, %s44
    %p58 = scmp.eq.s32.totalorder %s15, 1
    %p59 = por %p57, %p58
    %p61 = scmp.ne.s32.totalorder %s44, %s60
    %p62 = scmp.eq.s32.totalorder %s15, 0
    %p63 = por %p61, %p62
    %s64 = ssub.s32 %s17, %s31
    %s65 = ssub.s32 %s18, %s27
    %s66 = sor.u32 %s64, %s65
    %p67 = scmp.eq.s32.totalorder %s66, 0
    %s69 = sadd.s32 %s68, 1
    %s70 = scalar_select %p67, %s68, %s69
    %p73 = pneg %p67
    %p74 = scmp.eq.s32.totalorder %s9, 1
    %p75 = por %p73, %p74
    %p76 = scmp.ne.s32.totalorder %s68, %s71
    %p77 = scmp.eq.s32.totalorder %s9, 0
    %p78 = por %p76, %p77
    %p79 = scmp.ne.s32.totalorder %s68, %s71
    %p80 = scmp.eq.s32.totalorder %s14, 1
    %p81 = por %p79, %p80
    %p82 = scmp.ne.s32.totalorder %s71, %s72
    %p83 = scmp.eq.s32.totalorder %s14, 0
    %p84 = por %p82, %p83
    %p85 = scmp.ne.s32.totalorder %s71, %s72
    %p86 = scmp.eq.s32.totalorder %s15, 1
    %p87 = por %p85, %p86
    %p89 = scmp.ne.s32.totalorder %s72, %s88
    %p90 = scmp.eq.s32.totalorder %s15, 0
    %p91 = por %p89, %p90
    %s92 = ssub.s32 %s17, %s31
    %s93 = ssub.s32 %s18, %s27
    %s94 = sor.u32 %s92, %s93
    %p95 = scmp.eq.s32.totalorder %s94, 0
    %s97 = sadd.s32 %s96, 1
    %s98 = scalar_select %p95, %s96, %s97
    %p101 = pneg %p95
    %p102 = scmp.eq.s32.totalorder %s9, 1
    %p103 = por %p101, %p102
    %p104 = scmp.ne.s32.totalorder %s96, %s99
    %p105 = scmp.eq.s32.totalorder %s9, 0
    %p106 = por %p104, %p105
    %p107 = scmp.ne.s32.totalorder %s96, %s99
    %p108 = scmp.eq.s32.totalorder %s14, 1
    %p109 = por %p107, %p108
    %p110 = scmp.ne.s32.totalorder %s99, %s100
    %p111 = scmp.eq.s32.totalorder %s14, 0
    %p112 = por %p110, %p111
    %p113 = scmp.ne.s32.totalorder %s99, %s100
    %p114 = scmp.eq.s32.totalorder %s15, 1
    %p115 = por %p113, %p114
    %p117 = scmp.ne.s32.totalorder %s100, %s116
    %p118 = scmp.eq.s32.totalorder %s15, 0
    %p119 = por %p117, %p118
    %s120 = ssub.s32 %s16, %s35
    %s121 = ssub.s32 %s17, %s31
    %s122 = sor.u32 %s120, %s121
    %s123 = ssub.s32 %s18, %s27
    %s124 = sor.u32 %s122, %s123
    %p125 = scmp.eq.s32.totalorder %s124, 0
    %s127 = sadd.s32 %s126, 1
    %s128 = scalar_select %p125, %s126, %s127
    %p131 = pneg %p125
    %p132 = scmp.eq.s32.totalorder %s9, 1
    %p133 = por %p131, %p132
    %p134 = scmp.ne.s32.totalorder %s126, %s129
    %p135 = scmp.eq.s32.totalorder %s9, 0
    %p136 = por %p134, %p135
    %p137 = scmp.ne.s32.totalorder %s126, %s129
    %p138 = scmp.eq.s32.totalorder %s14, 1
    %p139 = por %p137, %p138
    %p140 = scmp.ne.s32.totalorder %s129, %s130
    %p141 = scmp.eq.s32.totalorder %s14, 0
    %p142 = por %p140, %p141
    %p143 = scmp.ne.s32.totalorder %s129, %s130
    %p144 = scmp.eq.s32.totalorder %s15, 1
    %p145 = por %p143, %p144
    %p147 = scmp.ne.s32.totalorder %s130, %s146
    %p148 = scmp.eq.s32.totalorder %s15, 0
    %p149 = por %p147, %p148
    %p150 = scmp.le.s32.totalorder 1, %s9
    %p151 = scmp.lt.s32.totalorder %s9, 3
    %p152 = pnand %p150, %p151
    %p153 = pneg %p152
    // Predicated region
    $region9: #{conv_block_forward.1} parent=5 // pred_check
      _
    $region10: #{conv_block_forward.1} parent=5 // pred_check_branch
      %155 = sbr.rel (%p152) target = $region12
    $region11: #{conv_block_forward.1} parent=5 // pred_region
      %s156 = ssub.s32 %s9, 1
      // Predicated region
      $region13: #{conv_block_forward.1} parent=11 // pred_check
        %p157 = pneg %p84
      $region14: #{conv_block_forward.1} parent=11 // pred_check_branch
        %159 = sbr.rel (%p157) target = $region16
      $region15: #{conv_block_forward.1} parent=11 // pred_region
        %p160 = scmp.lt.s32.totalorder %s20, 0
        %s161 = scalar_select %p160, %s20, 0
        %p162 = scmp.lt.s32.totalorder %s21, 0
        %s163 = scalar_select %p162, %s21, 0
        %s164 = smul.addr %s161, 9
        %s165 = sadd.s32 %s163, %s164
        %s166 = smul.addr %s165, 2
        %s167 = scalar_lea.vmem %s1, %s166
      $region16: #{conv_block_forward.1} parent=11 // pred_fallthru
        _
      // Predicated region
      $region17: #{conv_block_forward.1} parent=11 // pred_check
        %p168 = pneg %p112
      $region18: #{conv_block_forward.1} parent=11 // pred_check_branch
        %170 = sbr.rel (%p168) target = $region20
      $region19: #{conv_block_forward.1} parent=11 // pred_region
        %p171 = scmp.lt.s32.totalorder %s20, 0
        %s172 = scalar_select %p171, %s20, 0
        %p173 = scmp.lt.s32.totalorder %s21, 0
        %s174 = scalar_select %p173, %s21, 0
        %s175 = sadd.s32 %s174, %s172
        %s176 = smul.addr %s175, 2
        %s177 = scalar_lea.vmem %s2, %s176
      $region20: #{conv_block_forward.1} parent=11 // pred_fallthru
        _
    $region12: #{conv_block_forward.1} parent=5 // pred_fallthru
      _
    %p178 = scmp.lt.s32.totalorder %s9, 2
    // Predicated region
    $region21: #{conv_block_forward.1} parent=5 // pred_check
      %p179 = pneg %p178
    $region22: #{conv_block_forward.1} parent=5 // pred_check_branch
      %181 = sbr.rel (%p179) target = $region24
    $region23: #{conv_block_forward.1} parent=5 // pred_region
      // Predicated region
      $region25: #{conv_block_forward.1} parent=23 // pred_check
        %p182 = pneg %p50
      $region26: #{conv_block_forward.1} parent=23 // pred_check_branch
        %184 = sbr.rel (%p182) target = $region28
      $region27: #{conv_block_forward.1} parent=23 // pred_region
        %p185 = scmp.lt.s32.totalorder %s16, 1
        %s186 = scalar_select %p185, %s16, 1
        %p187 = scmp.lt.s32.totalorder %s17, 0
        %s188 = scalar_select %p187, %s17, 0
        %s189 = smul.addr %s188, 54
        %s190 = smul.addr %s186, 54
        %s191 = sadd.s32 %s189, %s190
        %s192 = smul.addr %s191, 4
        %s193 = scalar_lea.vmem %s0, %s192
      $region28: #{conv_block_forward.1} parent=23 // pred_fallthru
        _
    $region24: #{conv_block_forward.1} parent=5 // pred_fallthru
      _
    %p194 = scmp.le.s32.totalorder 1, %s9
    %p195 = scmp.lt.s32.totalorder %s9, 3
    %p196 = pnand %p194, %p195
    %p197 = pneg %p196
    // Predicated region
    $region29: #{conv_block_forward.1} parent=5 // pred_check
      _
    $region30: #{conv_block_forward.1} parent=5 // pred_check_branch
      %199 = sbr.rel (%p196) target = $region32
    $region31: #{conv_block_forward.1} parent=5 // pred_region
      %s200 = ssub.s32 %s9, 1
      %p201 = scmp.lt.s32.totalorder %s19, 1
      %s202 = scalar_select %p201, %s19, 1
      %p203 = scmp.lt.s32.totalorder %s20, 0
      %s204 = scalar_select %p203, %s20, 0
      %s205 = smul.addr %s204, 54
      %s206 = smul.addr %s202, 54
      %s207 = sadd.s32 %s205, %s206
      %s208 = smul.addr %s207, 4
      %s209 = scalar_lea.vmem %s0, %s208
      %p210 = pneg %p56
      %p211 = pneg %p53
      %p212 = scmp.lt.s32.totalorder %s20, 0
      %s213 = scalar_select %p212, %s20, 0
      %p214 = scmp.lt.s32.totalorder %s21, 0
      %s215 = scalar_select %p214, %s21, 0
      %s216 = smul.addr %s213, 9
      %s217 = sadd.s32 %s215, %s216
      %s218 = smul.addr %s217, 2
      %s219 = scalar_lea.vmem %s1, %s218
      %p220 = pneg %p84
      %p221 = pneg %p81
      %p222 = scmp.lt.s32.totalorder %s20, 0
      %s223 = scalar_select %p222, %s20, 0
      %p224 = scmp.lt.s32.totalorder %s21, 0
      %s225 = scalar_select %p224, %s21, 0
      %s226 = sadd.s32 %s225, %s223
      %s227 = smul.addr %s226, 2
      %s228 = scalar_lea.vmem %s2, %s227
      %p229 = pneg %p112
      %p230 = pneg %p109
      %p231 = pneg %p142
      %p232 = pneg %p139
      %p233 = scmp.lt.s32.totalorder %s19, 1
      %s234 = scalar_select %p233, %s19, 1
      %p235 = scmp.lt.s32.totalorder %s20, 0
      %s236 = scalar_select %p235, %s20, 0
      %p237 = scmp.lt.s32.totalorder %s21, 0
      %s238 = scalar_select %p237, %s21, 0
      %s239 = smul.addr %s236, 32
      %s240 = sadd.s32 %s238, %s239
      %s241 = smul.addr %s234, 32
      %s242 = sadd.s32 %s240, %s241
      %s243 = smul.addr %s242, 4
      %s244 = scalar_lea.vmem %s3, %s243
      %p245 = scmp.lt.s32.totalorder %s19, 1
      %s246 = scalar_select %p245, %s19, 1
      %p247 = scmp.lt.s32.totalorder %s20, 0
      %s248 = scalar_select %p247, %s20, 0
      %s249 = smul.addr %s248, 54
      %s250 = smul.addr %s246, 54
      %s251 = sadd.s32 %s249, %s250
      %s252 = smul.addr %s251, 4
      %s253 = scalar_lea.vmem %s0, %s252
      %p254 = scmp.lt.s32.totalorder %s20, 0
      %s255 = scalar_select %p254, %s20, 0
      %p256 = scmp.lt.s32.totalorder %s21, 0
      %s257 = scalar_select %p256, %s21, 0
      %s258 = smul.addr %s255, 9
      %s259 = sadd.s32 %s257, %s258
      %s260 = smul.addr %s259, 2
      %s261 = scalar_lea.vmem %s1, %s260
      %p262 = scmp.lt.s32.totalorder %s20, 0
      %s263 = scalar_select %p262, %s20, 0
      %p264 = scmp.lt.s32.totalorder %s21, 0
      %s265 = scalar_select %p264, %s21, 0
      %s266 = sadd.s32 %s265, %s263
      %s267 = smul.addr %s266, 2
      %s268 = scalar_lea.vmem %s2, %s267
      %p269 = scmp.lt.s32.totalorder %s19, 1
      %s270 = scalar_select %p269, %s19, 1
      %p271 = scmp.lt.s32.totalorder %s20, 0
      %s272 = scalar_select %p271, %s20, 0
      %p273 = scmp.lt.s32.totalorder %s21, 0
      %s274 = scalar_select %p273, %s21, 0
      %s275 = smul.addr %s272, 32
      %s276 = sadd.s32 %s274, %s275
      %s277 = smul.addr %s270, 32
      %s278 = sadd.s32 %s276, %s277
      %s279 = smul.addr %s278, 4
      %s280 = scalar_lea.vmem %s3, %s279
      %v282 = vld [vmem:[%s253] sm:$0xf]
      %v283 = vld [vmem:[%s253 + $0x4] sm:$0xf]
      %v284 = vld [vmem:[%s253 + $0xc] sm:$0xf]
      %v285 = vld [vmem:[%s253 + $0x10] sm:$0xf]
      %v286 = vld [vmem:[%s253 + $0x18] sm:$0xf]
      %v287 = vld [vmem:[%s253 + $0x1c] sm:$0xf]
      %v288 = vld [vmem:[%s253 + $0x24] sm:$0xf]
      %v289 = vld [vmem:[%s253 + $0x28] sm:$0xf]
      %v290 = vld [vmem:[%s253 + $0x30] sm:$0xf]
      %v291 = vld [vmem:[%s253 + $0x34] sm:$0xf]
      %v292 = vld [vmem:[%s253 + $0x3c] sm:$0xf]
      %v293 = vld [vmem:[%s253 + $0x40] sm:$0xf]
      %v294 = vld [vmem:[%s253 + $0x48] sm:$0xf]
      %v295 = vld [vmem:[%s253 + $0x4c] sm:$0xf]
      %v296 = vld [vmem:[%s253 + $0x54] sm:$0xf]
      %v297 = vld [vmem:[%s253 + $0x58] sm:$0xf]
      %v298 = vld [vmem:[%s253 + $0x60] sm:$0xf]
      %v299 = vld [vmem:[%s253 + $0x64] sm:$0xf]
      %v300 = vld [vmem:[%s253 + $0x6c] sm:$0xf]
      %v301 = vld [vmem:[%s253 + $0x70] sm:$0xf]
      %v302 = vld [vmem:[%s253 + $0x78] sm:$0xf]
      %v303 = vld [vmem:[%s253 + $0x7c] sm:$0xf]
      %v304 = vld [vmem:[%s253 + $0x84] sm:$0xf]
      %v305 = vld [vmem:[%s253 + $0x88] sm:$0xf]
      %v306 = vld [vmem:[%s253 + $0x90] sm:$0xf]
      %v307 = vld [vmem:[%s253 + $0x94] sm:$0xf]
      %v308 = vld [vmem:[%s253 + $0x9c] sm:$0xf]
      %v309 = vld [vmem:[%s253 + $0xa0] sm:$0xf]
      %v310 = vld [vmem:[%s253 + $0xa8] sm:$0xf]
      %v311 = vld [vmem:[%s253 + $0xac] sm:$0xf]
      %v312 = vld [vmem:[%s253 + $0xb4] sm:$0xf]
      %v313 = vld [vmem:[%s253 + $0xb8] sm:$0xf]
      %v314 = vld [vmem:[%s261] sm:$0x3]
      %v315 = vld [vmem:[%s253 + $0x8] sm:$0x1]
      %v316 = vld [vmem:[%s253 + $0x14] sm:$0x1]
      %v317 = vld [vmem:[%s253 + $0x20] sm:$0x1]
      %v318 = vld [vmem:[%s253 + $0x2c] sm:$0x1]
      %v319 = vld [vmem:[%s253 + $0x38] sm:$0x1]
      %v320 = vld [vmem:[%s253 + $0x44] sm:$0x1]
      %v321 = vld [vmem:[%s253 + $0x50] sm:$0x1]
      %v322 = vld [vmem:[%s253 + $0x5c] sm:$0x1]
      %v323 = vld [vmem:[%s253 + $0x68] sm:$0x1]
      %v324 = vld [vmem:[%s253 + $0x74] sm:$0x1]
      %v325 = vld [vmem:[%s253 + $0x80] sm:$0x1]
      %v326 = vld [vmem:[%s253 + $0x8c] sm:$0x1]
      %v327 = vld [vmem:[%s253 + $0x98] sm:$0x1]
      %v328 = vld [vmem:[%s253 + $0xa4] sm:$0x1]
      %v329 = vld [vmem:[%s253 + $0xb0] sm:$0x1]
      %v330 = vld [vmem:[%s253 + $0xbc] sm:$0x1]
      %vm331 = vsmask.f32 3328
      %vm332 = vsmask.f32 7440
      %vm333 = vmor %vm331, %vm332
      %v335 = vshrl.u32 %v282, 16
      %v337 = vrot.slane %v335, 4
      %v338 = vshll.u32 %v282, 16
      %v340 = vrot.slane %v338, 5
      %v341 = vor.u32 %v337, %v340
      %v342 = vrot.slane %v341, 4
      %v344 = vshll.u32 %v283, 16
      %v346 = vrot.slane %v344, 5
      %v347 = vsel %vm333, %v342, %v346
      %v348 = vshrl.u32 %v283, 16
      %v350 = vrot.slane %v348, 4
      %v351 = vor.u32 %v350, %v346
      %v352 = vrot.slane %v351, 4
      %v354 = vshll.u32 %v315, 16
      %v356 = vrot.slane %v354, 5
      %v357 = vsel %vm333, %v352, %v356
      %v359 = vshrl.u32 %v284, 16
      %v361 = vrot.slane %v359, 4
      %v362 = vshll.u32 %v284, 16
      %v364 = vrot.slane %v362, 5
      %v365 = vor.u32 %v361, %v364
      %v366 = vrot.slane %v365, 4
      %v368 = vshll.u32 %v285, 16
      %v370 = vrot.slane %v368, 5
      %v371 = vsel %vm333, %v366, %v370
      %v372 = vshrl.u32 %v285, 16
      %v374 = vrot.slane %v372, 4
      %v375 = vor.u32 %v374, %v370
      %v376 = vrot.slane %v375, 4
      %v378 = vshll.u32 %v316, 16
      %v380 = vrot.slane %v378, 5
      %v381 = vsel %vm333, %v376, %v380
      %v383 = vshrl.u32 %v286, 16
      %v385 = vrot.slane %v383, 4
      %v386 = vshll.u32 %v286, 16
      %v388 = vrot.slane %v386, 5
      %v389 = vor.u32 %v385, %v388
      %v390 = vrot.slane %v389, 4
      %v392 = vshll.u32 %v287, 16
      %v394 = vrot.slane %v392, 5
      %v395 = vsel %vm333, %v390, %v394
      %v396 = vshrl.u32 %v287, 16
      %v398 = vrot.slane %v396, 4
      %v399 = vor.u32 %v398, %v394
      %v400 = vrot.slane %v399, 4
      %v402 = vshll.u32 %v317, 16
      %v404 = vrot.slane %v402, 5
      %v405 = vsel %vm333, %v400, %v404
      %v407 = vshrl.u32 %v288, 16
      %v409 = vrot.slane %v407, 4
      %v410 = vshll.u32 %v288, 16
      %v412 = vrot.slane %v410, 5
      %v413 = vor.u32 %v409, %v412
      %v414 = vrot.slane %v413, 4
      %v416 = vshll.u32 %v289, 16
      %v418 = vrot.slane %v416, 5
      %v419 = vsel %vm333, %v414, %v418
      %v420 = vshrl.u32 %v289, 16
      %v422 = vrot.slane %v420, 4
      %v423 = vor.u32 %v422, %v418
      %v424 = vrot.slane %v423, 4
      %v426 = vshll.u32 %v318, 16
      %v428 = vrot.slane %v426, 5
      %v429 = vsel %vm333, %v424, %v428
      %v431 = vshrl.u32 %v290, 16
      %v433 = vrot.slane %v431, 4
      %v434 = vshll.u32 %v290, 16
      %v436 = vrot.slane %v434, 5
      %v437 = vor.u32 %v433, %v436
      %v438 = vrot.slane %v437, 4
      %v440 = vshll.u32 %v291, 16
      %v442 = vrot.slane %v440, 5
      %v443 = vsel %vm333, %v438, %v442
      %v444 = vshrl.u32 %v291, 16
      %v446 = vrot.slane %v444, 4
      %v447 = vor.u32 %v446, %v442
      %v448 = vrot.slane %v447, 4
      %v450 = vshll.u32 %v319, 16
      %v452 = vrot.slane %v450, 5
      %v453 = vsel %vm333, %v448, %v452
      %v455 = vshrl.u32 %v292, 16
      %v457 = vrot.slane %v455, 4
      %v458 = vshll.u32 %v292, 16
      %v460 = vrot.slane %v458, 5
      %v461 = vor.u32 %v457, %v460
      %v462 = vrot.slane %v461, 4
      %v464 = vshll.u32 %v293, 16
      %v466 = vrot.slane %v464, 5
      %v467 = vsel %vm333, %v462, %v466
      %v468 = vshrl.u32 %v293, 16
      %v470 = vrot.slane %v468, 4
      %v471 = vor.u32 %v470, %v466
      %v472 = vrot.slane %v471, 4
      %v474 = vshll.u32 %v320, 16
      %v476 = vrot.slane %v474, 5
      %v477 = vsel %vm333, %v472, %v476
      %v479 = vshrl.u32 %v294, 16
      %v481 = vrot.slane %v479, 4
      %v482 = vshll.u32 %v294, 16
      %v484 = vrot.slane %v482, 5
      %v485 = vor.u32 %v481, %v484
      %v486 = vrot.slane %v485, 4
      %v488 = vshll.u32 %v295, 16
      %v490 = vrot.slane %v488, 5
      %v491 = vsel %vm333, %v486, %v490
      %v492 = vshrl.u32 %v295, 16
      %v494 = vrot.slane %v492, 4
      %v495 = vor.u32 %v494, %v490
      %v496 = vrot.slane %v495, 4
      %v498 = vshll.u32 %v321, 16
      %v500 = vrot.slane %v498, 5
      %v501 = vsel %vm333, %v496, %v500
      %v503 = vshrl.u32 %v296, 16
      %v505 = vrot.slane %v503, 4
      %v506 = vshll.u32 %v296, 16
      %v508 = vrot.slane %v506, 5
      %v509 = vor.u32 %v505, %v508
      %v510 = vrot.slane %v509, 4
      %v512 = vshll.u32 %v297, 16
      %v514 = vrot.slane %v512, 5
      %v515 = vsel %vm333, %v510, %v514
      %v516 = vshrl.u32 %v297, 16
      %v518 = vrot.slane %v516, 4
      %v519 = vor.u32 %v518, %v514
      %v520 = vrot.slane %v519, 4
      %v522 = vshll.u32 %v322, 16
      %v524 = vrot.slane %v522, 5
      %v525 = vsel %vm333, %v520, %v524
      %v527 = vshrl.u32 %v298, 16
      %v529 = vrot.slane %v527, 4
      %v530 = vshll.u32 %v298, 16
      %v532 = vrot.slane %v530, 5
      %v533 = vor.u32 %v529, %v532
      %v534 = vrot.slane %v533, 4
      %v536 = vshll.u32 %v299, 16
      %v538 = vrot.slane %v536, 5
      %v539 = vsel %vm333, %v534, %v538
      %v540 = vshrl.u32 %v299, 16
      %v542 = vrot.slane %v540, 4
      %v543 = vor.u32 %v542, %v538
      %v544 = vrot.slane %v543, 4
      %v546 = vshll.u32 %v323, 16
      %v548 = vrot.slane %v546, 5
      %v549 = vsel %vm333, %v544, %v548
      %v551 = vshrl.u32 %v300, 16
      %v553 = vrot.slane %v551, 4
      %v554 = vshll.u32 %v300, 16
      %v556 = vrot.slane %v554, 5
      %v557 = vor.u32 %v553, %v556
      %v558 = vrot.slane %v557, 4
      %v560 = vshll.u32 %v301, 16
      %v562 = vrot.slane %v560, 5
      %v563 = vsel %vm333, %v558, %v562
      %v564 = vshrl.u32 %v301, 16
      %v566 = vrot.slane %v564, 4
      %v567 = vor.u32 %v566, %v562
      %v568 = vrot.slane %v567, 4
      %v570 = vshll.u32 %v324, 16
      %v572 = vrot.slane %v570, 5
      %v573 = vsel %vm333, %v568, %v572
      %v575 = vshrl.u32 %v302, 16
      %v577 = vrot.slane %v575, 4
      %v578 = vshll.u32 %v302, 16
      %v580 = vrot.slane %v578, 5
      %v581 = vor.u32 %v577, %v580
      %v582 = vrot.slane %v581, 4
      %v584 = vshll.u32 %v303, 16
      %v586 = vrot.slane %v584, 5
      %v587 = vsel %vm333, %v582, %v586
      %v588 = vshrl.u32 %v303, 16
      %v590 = vrot.slane %v588, 4
      %v591 = vor.u32 %v590, %v586
      %v592 = vrot.slane %v591, 4
      %v594 = vshll.u32 %v325, 16
      %v596 = vrot.slane %v594, 5
      %v597 = vsel %vm333, %v592, %v596
      %v599 = vshrl.u32 %v304, 16
      %v601 = vrot.slane %v599, 4
      %v602 = vshll.u32 %v304, 16
      %v604 = vrot.slane %v602, 5
      %v605 = vor.u32 %v601, %v604
      %v606 = vrot.slane %v605, 4
      %v608 = vshll.u32 %v305, 16
      %v610 = vrot.slane %v608, 5
      %v611 = vsel %vm333, %v606, %v610
      %v612 = vshrl.u32 %v305, 16
      %v614 = vrot.slane %v612, 4
      %v615 = vor.u32 %v614, %v610
      %v616 = vrot.slane %v615, 4
      %v618 = vshll.u32 %v326, 16
      %v620 = vrot.slane %v618, 5
      %v621 = vsel %vm333, %v616, %v620
      %v623 = vshrl.u32 %v306, 16
      %v625 = vrot.slane %v623, 4
      %v626 = vshll.u32 %v306, 16
      %v628 = vrot.slane %v626, 5
      %v629 = vor.u32 %v625, %v628
      %v630 = vrot.slane %v629, 4
      %v632 = vshll.u32 %v307, 16
      %v634 = vrot.slane %v632, 5
      %v635 = vsel %vm333, %v630, %v634
      %v636 = vshrl.u32 %v307, 16
      %v638 = vrot.slane %v636, 4
      %v639 = vor.u32 %v638, %v634
      %v640 = vrot.slane %v639, 4
      %v642 = vshll.u32 %v327, 16
      %v644 = vrot.slane %v642, 5
      %v645 = vsel %vm333, %v640, %v644
      %v647 = vshrl.u32 %v308, 16
      %v649 = vrot.slane %v647, 4
      %v650 = vshll.u32 %v308, 16
      %v652 = vrot.slane %v650, 5
      %v653 = vor.u32 %v649, %v652
      %v654 = vrot.slane %v653, 4
      %v656 = vshll.u32 %v309, 16
      %v658 = vrot.slane %v656, 5
      %v659 = vsel %vm333, %v654, %v658
      %v660 = vshrl.u32 %v309, 16
      %v662 = vrot.slane %v660, 4
      %v663 = vor.u32 %v662, %v658
      %v664 = vrot.slane %v663, 4
      %v666 = vshll.u32 %v328, 16
      %v668 = vrot.slane %v666, 5
      %v669 = vsel %vm333, %v664, %v668
      %v671 = vshrl.u32 %v310, 16
      %v673 = vrot.slane %v671, 4
      %v674 = vshll.u32 %v310, 16
      %v676 = vrot.slane %v674, 5
      %v677 = vor.u32 %v673, %v676
      %v678 = vrot.slane %v677, 4
      %v680 = vshll.u32 %v311, 16
      %v682 = vrot.slane %v680, 5
      %v683 = vsel %vm333, %v678, %v682
      %v684 = vshrl.u32 %v311, 16
      %v686 = vrot.slane %v684, 4
      %v687 = vor.u32 %v686, %v682
      %v688 = vrot.slane %v687, 4
      %v690 = vshll.u32 %v329, 16
      %v692 = vrot.slane %v690, 5
      %v693 = vsel %vm333, %v688, %v692
      %v695 = vshrl.u32 %v312, 16
      %v697 = vrot.slane %v695, 4
      %v698 = vshll.u32 %v312, 16
      %v700 = vrot.slane %v698, 5
      %v701 = vor.u32 %v697, %v700
      %v702 = vrot.slane %v701, 4
      %v704 = vshll.u32 %v313, 16
      %v706 = vrot.slane %v704, 5
      %v707 = vsel %vm333, %v702, %v706
      %v708 = vshrl.u32 %v313, 16
      %v710 = vrot.slane %v708, 4
      %v711 = vor.u32 %v710, %v706
      %v712 = vrot.slane %v711, 4
      %v714 = vshll.u32 %v330, 16
      %v716 = vrot.slane %v714, 5
      %v717 = vsel %vm333, %v712, %v716
      %s718 = scalar_lea.vmem %s261, 2
      %v719 = vld [vmem:[%s718] sm:$0x3]
      %v720 = vunpack.c.l.b16 %v347
      %v721 = vunpack.c.l.b16 %v357
      %v722 = vunpack.c.l.b16 %v371
      %v723 = vunpack.c.l.b16 %v381
      %v724 = vunpack.c.l.b16 %v395
      %v725 = vunpack.c.l.b16 %v405
      %v726 = vunpack.c.l.b16 %v419
      %v727 = vunpack.c.l.b16 %v429
      %v728 = vunpack.c.l.b16 %v443
      %v729 = vunpack.c.l.b16 %v453
      %v730 = vunpack.c.l.b16 %v467
      %v731 = vunpack.c.l.b16 %v477
      %v732 = vunpack.c.l.b16 %v491
      %v733 = vunpack.c.l.b16 %v501
      %v734 = vunpack.c.l.b16 %v515
      %v735 = vunpack.c.l.b16 %v525
      %v736 = vunpack.c.l.b16 %v539
      %v737 = vunpack.c.l.b16 %v549
      %v738 = vunpack.c.l.b16 %v563
      %v739 = vunpack.c.l.b16 %v573
      %v740 = vunpack.c.l.b16 %v587
      %v741 = vunpack.c.l.b16 %v597
      %v742 = vunpack.c.l.b16 %v611
      %v743 = vunpack.c.l.b16 %v621
      %v744 = vunpack.c.l.b16 %v635
      %v745 = vunpack.c.l.b16 %v645
      %v746 = vunpack.c.l.b16 %v659
      %v747 = vunpack.c.l.b16 %v669
      %v748 = vunpack.c.l.b16 %v683
      %v749 = vunpack.c.l.b16 %v693
      %v750 = vunpack.c.l.b16 %v707
      %v751 = vunpack.c.l.b16 %v717
      %v752 = vpack.c.b16 %v721, %v720
      %v753 = vpack.c.b16 %v723, %v722
      %v754 = vpack.c.b16 %v725, %v724
      %v755 = vpack.c.b16 %v727, %v726
      %v756 = vpack.c.b16 %v729, %v728
      %v757 = vpack.c.b16 %v731, %v730
      %v758 = vpack.c.b16 %v733, %v732
      %v759 = vpack.c.b16 %v735, %v734
      %v760 = vpack.c.b16 %v737, %v736
      %v761 = vpack.c.b16 %v739, %v738
      %v762 = vpack.c.b16 %v741, %v740
      %v763 = vpack.c.b16 %v743, %v742
      %v764 = vpack.c.b16 %v745, %v744
      %v765 = vpack.c.b16 %v747, %v746
      %v766 = vpack.c.b16 %v749, %v748
      %v767 = vpack.c.b16 %v751, %v750
      %vm768 = vcmask 31744
      %v770 = vsel %vm768, %v752, 0
      %v773 = vsel %vm768, %v753, 0
      %v776 = vsel %vm768, %v754, 0
      %v779 = vsel %vm768, %v755, 0
      %v782 = vsel %vm768, %v756, 0
      %v785 = vsel %vm768, %v757, 0
      %v788 = vsel %vm768, %v758, 0
      %v791 = vsel %vm768, %v759, 0
      %v794 = vsel %vm768, %v760, 0
      %v797 = vsel %vm768, %v761, 0
      %v800 = vsel %vm768, %v762, 0
      %v803 = vsel %vm768, %v763, 0
      %v806 = vsel %vm768, %v764, 0
      %v809 = vsel %vm768, %v765, 0
      %v812 = vsel %vm768, %v766, 0
      %v815 = vsel %vm768, %v767, 0
      %vm817 = vcmask 1041408
      %v819 = vsel %vm817, %v719, 0
      %821 = vmatprep.subr.bf16.mxu0 0
      %822 = vmatpush1.bf16.msra.mxu0 0
      %823 = vmatprep.subr.bf16.mxu0 0
      %824 = vmatpush1.bf16.msra.mxu0 0
      %825 = vmatprep.subr.bf16.mxu0 0
      %826 = vmatpush1.bf16.msra.mxu0 0
      %827 = vmatprep.subr.bf16.mxu0 0
      %828 = vmatpush1.bf16.msra.mxu0 0
      %829 = vmatprep.subr.bf16.mxu0 0
      %830 = vmatpush1.bf16.msra.mxu0 0
      %831 = vmatprep.subr.bf16.mxu0 0
      %832 = vmatpush1.bf16.msra.mxu0 0
      %833 = vmatprep.subr.bf16.mxu0 0
      %834 = vmatpush1.bf16.msra.mxu0 0
      %835 = vmatprep.subr.bf16.mxu0 0
      %836 = vmatpush1.bf16.msra.mxu0 %v819
      %837 = vmatprep.subr.bf16.mxu0 0
      %838 = vmatpush2.bf16.msra.mxu0 0
      %839 = vmatprep.subr.bf16.mxu0 0
      %840 = vmatpush2.bf16.msra.mxu0 0
      %841 = vmatprep.subr.bf16.mxu0 0
      %842 = vmatpush2.bf16.msra.mxu0 0
      %843 = vmatprep.subr.bf16.mxu0 0
      %844 = vmatpush2.bf16.msra.mxu0 0
      %845 = vmatprep.subr.bf16.mxu0 0
      %846 = vmatpush2.bf16.msra.mxu0 0
      %847 = vmatprep.subr.bf16.mxu0 0
      %848 = vmatpush2.bf16.msra.mxu0 0
      %849 = vmatprep.subr.bf16.mxu0 0
      %850 = vmatpush2.bf16.msra.mxu0 0
      %851 = vmatprep.subr.bf16.mxu0 0
      %852 = vmatpush2.bf16.msra.mxu0 0
      %853 = vmatprep.mubr.bf16.mxu0 0
      %854 = vmatmul.mubr.bf16.gmra.mxu0 %v770
      %v855 = vpop.f32.mrf.mxu0
      %v856 = vadd.f32 0.0, %v855
      %v857 = vpop.f32.mrf.mxu0
      %v858 = vpop.f32.mrf.mxu0
      %v859 = vadd.f32 0.0, %v858
      %v860 = vpop.f32.mrf.mxu0
      %861 = vmatprep.mubr.bf16.mxu0 0
      %862 = vmatmul.mubr.bf16.gmra.mxu0 %v773
      %v863 = vpop.f32.mrf.mxu0
      %v864 = vadd.f32 0.0, %v863
      %v865 = vpop.f32.mrf.mxu0
      %v866 = vpop.f32.mrf.mxu0
      %v867 = vadd.f32 0.0, %v866
      %v868 = vpop.f32.mrf.mxu0
      %869 = vmatprep.mubr.bf16.mxu0 0
      %870 = vmatmul.mubr.bf16.gmra.mxu0 %v776
      %v871 = vpop.f32.mrf.mxu0
      %v872 = vadd.f32 0.0, %v871
      %v873 = vpop.f32.mrf.mxu0
      %v874 = vpop.f32.mrf.mxu0
      %v875 = vadd.f32 0.0, %v874
      %v876 = vpop.f32.mrf.mxu0
      %877 = vmatprep.mubr.bf16.mxu0 0
      %878 = vmatmul.mubr.bf16.gmra.mxu0 %v779
      %v879 = vpop.f32.mrf.mxu0
      %v880 = vadd.f32 0.0, %v879
      %v881 = vpop.f32.mrf.mxu0
      %v882 = vpop.f32.mrf.mxu0
      %v883 = vadd.f32 0.0, %v882
      %v884 = vpop.f32.mrf.mxu0
      %885 = vmatprep.mubr.bf16.mxu0 0
      %886 = vmatmul.mubr.bf16.gmra.mxu0 %v782
      %v887 = vpop.f32.mrf.mxu0
      %v888 = vadd.f32 0.0, %v887
      %v889 = vpop.f32.mrf.mxu0
      %v890 = vpop.f32.mrf.mxu0
      %v891 = vadd.f32 0.0, %v890
      %v892 = vpop.f32.mrf.mxu0
      %893 = vmatprep.mubr.bf16.mxu0 0
      %894 = vmatmul.mubr.bf16.gmra.mxu0 %v785
      %v895 = vpop.f32.mrf.mxu0
      %v896 = vadd.f32 0.0, %v895
      %v897 = vpop.f32.mrf.mxu0
      %v898 = vpop.f32.mrf.mxu0
      %v899 = vadd.f32 0.0, %v898
      %v900 = vpop.f32.mrf.mxu0
      %901 = vmatprep.mubr.bf16.mxu0 0
      %902 = vmatmul.mubr.bf16.gmra.mxu0 %v788
      %v903 = vpop.f32.mrf.mxu0
      %v904 = vadd.f32 0.0, %v903
      %v905 = vpop.f32.mrf.mxu0
      %v906 = vpop.f32.mrf.mxu0
      %v907 = vadd.f32 0.0, %v906
      %v908 = vpop.f32.mrf.mxu0
      %909 = vmatprep.mubr.bf16.mxu0 0
      %910 = vmatmul.mubr.bf16.gmra.mxu0 %v791
      %v911 = vpop.f32.mrf.mxu0
      %v912 = vadd.f32 0.0, %v911
      %v913 = vpop.f32.mrf.mxu0
      %v914 = vpop.f32.mrf.mxu0
      %v915 = vadd.f32 0.0, %v914
      %v916 = vpop.f32.mrf.mxu0
      %917 = vmatprep.mubr.bf16.mxu0 0
      %918 = vmatmul.mubr.bf16.gmra.mxu0 %v794
      %v919 = vpop.f32.mrf.mxu0
      %v920 = vadd.f32 0.0, %v919
      %v921 = vpop.f32.mrf.mxu0
      %v922 = vpop.f32.mrf.mxu0
      %v923 = vadd.f32 0.0, %v922
      %v924 = vpop.f32.mrf.mxu0
      %925 = vmatprep.mubr.bf16.mxu0 0
      %926 = vmatmul.mubr.bf16.gmra.mxu0 %v797
      %v927 = vpop.f32.mrf.mxu0
      %v928 = vadd.f32 0.0, %v927
      %v929 = vpop.f32.mrf.mxu0
      %v930 = vpop.f32.mrf.mxu0
      %v931 = vadd.f32 0.0, %v930
      %v932 = vpop.f32.mrf.mxu0
      %933 = vmatprep.mubr.bf16.mxu0 0
      %934 = vmatmul.mubr.bf16.gmra.mxu0 %v800
      %v935 = vpop.f32.mrf.mxu0
      %v936 = vadd.f32 0.0, %v935
      %v937 = vpop.f32.mrf.mxu0
      %v938 = vpop.f32.mrf.mxu0
      %v939 = vadd.f32 0.0, %v938
      %v940 = vpop.f32.mrf.mxu0
      %941 = vmatprep.mubr.bf16.mxu0 0
      %942 = vmatmul.mubr.bf16.gmra.mxu0 %v803
      %v943 = vpop.f32.mrf.mxu0
      %v944 = vadd.f32 0.0, %v943
      %v945 = vpop.f32.mrf.mxu0
      %v946 = vpop.f32.mrf.mxu0
      %v947 = vadd.f32 0.0, %v946
      %v948 = vpop.f32.mrf.mxu0
      %949 = vmatprep.mubr.bf16.mxu0 0
      %950 = vmatmul.mubr.bf16.gmra.mxu0 %v806
      %v951 = vpop.f32.mrf.mxu0
      %v952 = vadd.f32 0.0, %v951
      %v953 = vpop.f32.mrf.mxu0
      %v954 = vpop.f32.mrf.mxu0
      %v955 = vadd.f32 0.0, %v954
      %v956 = vpop.f32.mrf.mxu0
      %957 = vmatprep.mubr.bf16.mxu0 0
      %958 = vmatmul.mubr.bf16.gmra.mxu0 %v809
      %v959 = vpop.f32.mrf.mxu0
      %v960 = vadd.f32 0.0, %v959
      %v961 = vpop.f32.mrf.mxu0
      %v962 = vpop.f32.mrf.mxu0
      %v963 = vadd.f32 0.0, %v962
      %v964 = vpop.f32.mrf.mxu0
      %965 = vmatprep.mubr.bf16.mxu0 0
      %966 = vmatmul.mubr.bf16.gmra.mxu0 %v812
      %v967 = vpop.f32.mrf.mxu0
      %v968 = vadd.f32 0.0, %v967
      %v969 = vpop.f32.mrf.mxu0
      %v970 = vpop.f32.mrf.mxu0
      %v971 = vadd.f32 0.0, %v970
      %v972 = vpop.f32.mrf.mxu0
      %973 = vmatprep.mubr.bf16.mxu0 0
      %974 = vmatmul.mubr.bf16.gmra.mxu0 %v815
      %v975 = vpop.f32.mrf.mxu0
      %v976 = vadd.f32 0.0, %v975
      %v977 = vpop.f32.mrf.mxu0
      %v978 = vpop.f32.mrf.mxu0
      %v979 = vadd.f32 0.0, %v978
      %v980 = vpop.f32.mrf.mxu0
      %981 = vdwg.mxu0
      %v1014 = vunpack.c.l.b16 %v282
      %v1015 = vunpack.c.l.b16 %v283
      %v1016 = vunpack.c.l.b16 %v284
      %v1017 = vunpack.c.l.b16 %v285
      %v1018 = vunpack.c.l.b16 %v286
      %v1019 = vunpack.c.l.b16 %v287
      %v1020 = vunpack.c.l.b16 %v288
      %v1021 = vunpack.c.l.b16 %v289
      %v1022 = vunpack.c.l.b16 %v290
      %v1023 = vunpack.c.l.b16 %v291
      %v1024 = vunpack.c.l.b16 %v292
      %v1025 = vunpack.c.l.b16 %v293
      %v1026 = vunpack.c.l.b16 %v294
      %v1027 = vunpack.c.l.b16 %v295
      %v1028 = vunpack.c.l.b16 %v296
      %v1029 = vunpack.c.l.b16 %v297
      %v1030 = vunpack.c.l.b16 %v298
      %v1031 = vunpack.c.l.b16 %v299
      %v1032 = vunpack.c.l.b16 %v300
      %v1033 = vunpack.c.l.b16 %v301
      %v1034 = vunpack.c.l.b16 %v302
      %v1035 = vunpack.c.l.b16 %v303
      %v1036 = vunpack.c.l.b16 %v304
      %v1037 = vunpack.c.l.b16 %v305
      %v1038 = vunpack.c.l.b16 %v306
      %v1039 = vunpack.c.l.b16 %v307
      %v1040 = vunpack.c.l.b16 %v308
      %v1041 = vunpack.c.l.b16 %v309
      %v1042 = vunpack.c.l.b16 %v310
      %v1043 = vunpack.c.l.b16 %v311
      %v1044 = vunpack.c.l.b16 %v312
      %v1045 = vunpack.c.l.b16 %v313
      %v1046 = vpack.c.b16 %v1015, %v1014
      %v1047 = vpack.c.b16 %v1017, %v1016
      %v1048 = vpack.c.b16 %v1019, %v1018
      %v1049 = vpack.c.b16 %v1021, %v1020
      %v1050 = vpack.c.b16 %v1023, %v1022
      %v1051 = vpack.c.b16 %v1025, %v1024
      %v1052 = vpack.c.b16 %v1027, %v1026
      %v1053 = vpack.c.b16 %v1029, %v1028
      %v1054 = vpack.c.b16 %v1031, %v1030
      %v1055 = vpack.c.b16 %v1033, %v1032
      %v1056 = vpack.c.b16 %v1035, %v1034
      %v1057 = vpack.c.b16 %v1037, %v1036
      %v1058 = vpack.c.b16 %v1039, %v1038
      %v1059 = vpack.c.b16 %v1041, %v1040
      %v1060 = vpack.c.b16 %v1043, %v1042
      %v1061 = vpack.c.b16 %v1045, %v1044
      %v1063 = vsel %vm768, %v1046, 0
      %v1066 = vsel %vm768, %v1047, 0
      %v1069 = vsel %vm768, %v1048, 0
      %v1072 = vsel %vm768, %v1049, 0
      %v1075 = vsel %vm768, %v1050, 0
      %v1078 = vsel %vm768, %v1051, 0
      %v1081 = vsel %vm768, %v1052, 0
      %v1084 = vsel %vm768, %v1053, 0
      %v1087 = vsel %vm768, %v1054, 0
      %v1090 = vsel %vm768, %v1055, 0
      %v1093 = vsel %vm768, %v1056, 0
      %v1096 = vsel %vm768, %v1057, 0
      %v1099 = vsel %vm768, %v1058, 0
      %v1102 = vsel %vm768, %v1059, 0
      %v1105 = vsel %vm768, %v1060, 0
      %v1108 = vsel %vm768, %v1061, 0
      %v1111 = vsel %vm817, %v314, 0
      %1113 = vmatprep.subr.bf16.mxu0 0
      %1114 = vmatpush1.bf16.msra.mxu0 0
      %1115 = vmatprep.subr.bf16.mxu0 0
      %1116 = vmatpush1.bf16.msra.mxu0 0
      %1117 = vmatprep.subr.bf16.mxu0 0
      %1118 = vmatpush1.bf16.msra.mxu0 0
      %1119 = vmatprep.subr.bf16.mxu0 0
      %1120 = vmatpush1.bf16.msra.mxu0 0
      %1121 = vmatprep.subr.bf16.mxu0 0
      %1122 = vmatpush1.bf16.msra.mxu0 0
      %1123 = vmatprep.subr.bf16.mxu0 0
      %1124 = vmatpush1.bf16.msra.mxu0 0
      %1125 = vmatprep.subr.bf16.mxu0 0
      %1126 = vmatpush1.bf16.msra.mxu0 0
      %1127 = vmatprep.subr.bf16.mxu0 0
      %1128 = vmatpush1.bf16.msra.mxu0 %v1111
      %1129 = vmatprep.subr.bf16.mxu0 0
      %1130 = vmatpush2.bf16.msra.mxu0 0
      %1131 = vmatprep.subr.bf16.mxu0 0
      %1132 = vmatpush2.bf16.msra.mxu0 0
      %1133 = vmatprep.subr.bf16.mxu0 0
      %1134 = vmatpush2.bf16.msra.mxu0 0
      %1135 = vmatprep.subr.bf16.mxu0 0
      %1136 = vmatpush2.bf16.msra.mxu0 0
      %1137 = vmatprep.subr.bf16.mxu0 0
      %1138 = vmatpush2.bf16.msra.mxu0 0
      %1139 = vmatprep.subr.bf16.mxu0 0
      %1140 = vmatpush2.bf16.msra.mxu0 0
      %1141 = vmatprep.subr.bf16.mxu0 0
      %1142 = vmatpush2.bf16.msra.mxu0 0
      %1143 = vmatprep.subr.bf16.mxu0 0
      %1144 = vmatpush2.bf16.msra.mxu0 0
      %1145 = vmatprep.mubr.bf16.mxu0 0
      %1146 = vmatmul.mubr.bf16.gmra.mxu0 %v1063
      %v1147 = vpop.f32.mrf.mxu0
      %v1148 = vadd.f32 %v856, %v1147
      %v1149 = vpop.f32.mrf.mxu0
      %v1150 = vpop.f32.mrf.mxu0
      %v1151 = vadd.f32 %v859, %v1150
      %v1152 = vpop.f32.mrf.mxu0
      %1153 = vmatprep.mubr.bf16.mxu0 0
      %1154 = vmatmul.mubr.bf16.gmra.mxu0 %v1066
      %v1155 = vpop.f32.mrf.mxu0
      %v1156 = vadd.f32 %v864, %v1155
      %v1157 = vpop.f32.mrf.mxu0
      %v1158 = vpop.f32.mrf.mxu0
      %v1159 = vadd.f32 %v867, %v1158
      %v1160 = vpop.f32.mrf.mxu0
      %1161 = vmatprep.mubr.bf16.mxu0 0
      %1162 = vmatmul.mubr.bf16.gmra.mxu0 %v1069
      %v1163 = vpop.f32.mrf.mxu0
      %v1164 = vadd.f32 %v872, %v1163
      %v1165 = vpop.f32.mrf.mxu0
      %v1166 = vpop.f32.mrf.mxu0
      %v1167 = vadd.f32 %v875, %v1166
      %v1168 = vpop.f32.mrf.mxu0
      %1169 = vmatprep.mubr.bf16.mxu0 0
      %1170 = vmatmul.mubr.bf16.gmra.mxu0 %v1072
      %v1171 = vpop.f32.mrf.mxu0
      %v1172 = vadd.f32 %v880, %v1171
      %v1173 = vpop.f32.mrf.mxu0
      %v1174 = vpop.f32.mrf.mxu0
      %v1175 = vadd.f32 %v883, %v1174
      %v1176 = vpop.f32.mrf.mxu0
      %1177 = vmatprep.mubr.bf16.mxu0 0
      %1178 = vmatmul.mubr.bf16.gmra.mxu0 %v1075
      %v1179 = vpop.f32.mrf.mxu0
      %v1180 = vadd.f32 %v888, %v1179
      %v1181 = vpop.f32.mrf.mxu0
      %v1182 = vpop.f32.mrf.mxu0
      %v1183 = vadd.f32 %v891, %v1182
      %v1184 = vpop.f32.mrf.mxu0
      %1185 = vmatprep.mubr.bf16.mxu0 0
      %1186 = vmatmul.mubr.bf16.gmra.mxu0 %v1078
      %v1187 = vpop.f32.mrf.mxu0
      %v1188 = vadd.f32 %v896, %v1187
      %v1189 = vpop.f32.mrf.mxu0
      %v1190 = vpop.f32.mrf.mxu0
      %v1191 = vadd.f32 %v899, %v1190
      %v1192 = vpop.f32.mrf.mxu0
      %1193 = vmatprep.mubr.bf16.mxu0 0
      %1194 = vmatmul.mubr.bf16.gmra.mxu0 %v1081
      %v1195 = vpop.f32.mrf.mxu0
      %v1196 = vadd.f32 %v904, %v1195
      %v1197 = vpop.f32.mrf.mxu0
      %v1198 = vpop.f32.mrf.mxu0
      %v1199 = vadd.f32 %v907, %v1198
      %v1200 = vpop.f32.mrf.mxu0
      %1201 = vmatprep.mubr.bf16.mxu0 0
      %1202 = vmatmul.mubr.bf16.gmra.mxu0 %v1084
      %v1203 = vpop.f32.mrf.mxu0
      %v1204 = vadd.f32 %v912, %v1203
      %v1205 = vpop.f32.mrf.mxu0
      %v1206 = vpop.f32.mrf.mxu0
      %v1207 = vadd.f32 %v915, %v1206
      %v1208 = vpop.f32.mrf.mxu0
      %1209 = vmatprep.mubr.bf16.mxu0 0
      %1210 = vmatmul.mubr.bf16.gmra.mxu0 %v1087
      %v1211 = vpop.f32.mrf.mxu0
      %v1212 = vadd.f32 %v920, %v1211
      %v1213 = vpop.f32.mrf.mxu0
      %v1214 = vpop.f32.mrf.mxu0
      %v1215 = vadd.f32 %v923, %v1214
      %v1216 = vpop.f32.mrf.mxu0
      %1217 = vmatprep.mubr.bf16.mxu0 0
      %1218 = vmatmul.mubr.bf16.gmra.mxu0 %v1090
      %v1219 = vpop.f32.mrf.mxu0
      %v1220 = vadd.f32 %v928, %v1219
      %v1221 = vpop.f32.mrf.mxu0
      %v1222 = vpop.f32.mrf.mxu0
      %v1223 = vadd.f32 %v931, %v1222
      %v1224 = vpop.f32.mrf.mxu0
      %1225 = vmatprep.mubr.bf16.mxu0 0
      %1226 = vmatmul.mubr.bf16.gmra.mxu0 %v1093
      %v1227 = vpop.f32.mrf.mxu0
      %v1228 = vadd.f32 %v936, %v1227
      %v1229 = vpop.f32.mrf.mxu0
      %v1230 = vpop.f32.mrf.mxu0
      %v1231 = vadd.f32 %v939, %v1230
      %v1232 = vpop.f32.mrf.mxu0
      %1233 = vmatprep.mubr.bf16.mxu0 0
      %1234 = vmatmul.mubr.bf16.gmra.mxu0 %v1096
      %v1235 = vpop.f32.mrf.mxu0
      %v1236 = vadd.f32 %v944, %v1235
      %v1237 = vpop.f32.mrf.mxu0
      %v1238 = vpop.f32.mrf.mxu0
      %v1239 = vadd.f32 %v947, %v1238
      %v1240 = vpop.f32.mrf.mxu0
      %1241 = vmatprep.mubr.bf16.mxu0 0
      %1242 = vmatmul.mubr.bf16.gmra.mxu0 %v1099
      %v1243 = vpop.f32.mrf.mxu0
      %v1244 = vadd.f32 %v952, %v1243
      %v1245 = vpop.f32.mrf.mxu0
      %v1246 = vpop.f32.mrf.mxu0
      %v1247 = vadd.f32 %v955, %v1246
      %v1248 = vpop.f32.mrf.mxu0
      %1249 = vmatprep.mubr.bf16.mxu0 0
      %1250 = vmatmul.mubr.bf16.gmra.mxu0 %v1102
      %v1251 = vpop.f32.mrf.mxu0
      %v1252 = vadd.f32 %v960, %v1251
      %v1253 = vpop.f32.mrf.mxu0
      %v1254 = vpop.f32.mrf.mxu0
      %v1255 = vadd.f32 %v963, %v1254
      %v1256 = vpop.f32.mrf.mxu0
      %1257 = vmatprep.mubr.bf16.mxu0 0
      %1258 = vmatmul.mubr.bf16.gmra.mxu0 %v1105
      %v1259 = vpop.f32.mrf.mxu0
      %v1260 = vadd.f32 %v968, %v1259
      %v1261 = vpop.f32.mrf.mxu0
      %v1262 = vpop.f32.mrf.mxu0
      %v1263 = vadd.f32 %v971, %v1262
      %v1264 = vpop.f32.mrf.mxu0
      %1265 = vmatprep.mubr.bf16.mxu0 0
      %1266 = vmatmul.mubr.bf16.gmra.mxu0 %v1108
      %v1267 = vpop.f32.mrf.mxu0
      %v1268 = vadd.f32 %v976, %v1267
      %v1269 = vpop.f32.mrf.mxu0
      %v1270 = vpop.f32.mrf.mxu0
      %v1271 = vadd.f32 %v979, %v1270
      %v1272 = vpop.f32.mrf.mxu0
      %1273 = vdwg.mxu0
      %v1274 = vld [vmem:[%s253] sm:$0xe]
      %v1275 = vld [vmem:[%s253 + $0xc] sm:$0xe]
      %v1276 = vld [vmem:[%s253 + $0x18] sm:$0xe]
      %v1277 = vld [vmem:[%s253 + $0x24] sm:$0xe]
      %v1278 = vld [vmem:[%s253 + $0x30] sm:$0xe]
      %v1279 = vld [vmem:[%s253 + $0x3c] sm:$0xe]
      %v1280 = vld [vmem:[%s253 + $0x48] sm:$0xe]
      %v1281 = vld [vmem:[%s253 + $0x54] sm:$0xe]
      %v1282 = vld [vmem:[%s253 + $0x60] sm:$0xe]
      %v1283 = vld [vmem:[%s253 + $0x6c] sm:$0xe]
      %v1284 = vld [vmem:[%s253 + $0x78] sm:$0xe]
      %v1285 = vld [vmem:[%s253 + $0x84] sm:$0xe]
      %v1286 = vld [vmem:[%s253 + $0x90] sm:$0xe]
      %v1287 = vld [vmem:[%s253 + $0x9c] sm:$0xe]
      %v1288 = vld [vmem:[%s253 + $0xa8] sm:$0xe]
      %v1289 = vld [vmem:[%s253 + $0xb4] sm:$0xe]
      %vm1322 = vcmask 1042432
      %vm1323 = vcmask 1046532
      %vm1324 = vmor %vm1322, %vm1323
      %v1325 = vrot.slane %v1274, 5
      %v1326 = vrot.slane %v1325, 4
      %v1327 = vrot.slane %v283, 5
      %v1328 = vsel %vm1324, %v1326, %v1327
      %v1329 = vrot.slane %v1327, 4
      %v1330 = vrot.slane %v315, 5
      %v1331 = vsel %vm1324, %v1329, %v1330
      %v1332 = vrot.slane %v1275, 5
      %v1333 = vrot.slane %v1332, 4
      %v1334 = vrot.slane %v285, 5
      %v1335 = vsel %vm1324, %v1333, %v1334
      %v1336 = vrot.slane %v1334, 4
      %v1337 = vrot.slane %v316, 5
      %v1338 = vsel %vm1324, %v1336, %v1337
      %v1339 = vrot.slane %v1276, 5
      %v1340 = vrot.slane %v1339, 4
      %v1341 = vrot.slane %v287, 5
      %v1342 = vsel %vm1324, %v1340, %v1341
      %v1343 = vrot.slane %v1341, 4
      %v1344 = vrot.slane %v317, 5
      %v1345 = vsel %vm1324, %v1343, %v1344
      %v1346 = vrot.slane %v1277, 5
      %v1347 = vrot.slane %v1346, 4
      %v1348 = vrot.slane %v289, 5
      %v1349 = vsel %vm1324, %v1347, %v1348
      %v1350 = vrot.slane %v1348, 4
      %v1351 = vrot.slane %v318, 5
      %v1352 = vsel %vm1324, %v1350, %v1351
      %v1353 = vrot.slane %v1278, 5
      %v1354 = vrot.slane %v1353, 4
      %v1355 = vrot.slane %v291, 5
      %v1356 = vsel %vm1324, %v1354, %v1355
      %v1357 = vrot.slane %v1355, 4
      %v1358 = vrot.slane %v319, 5
      %v1359 = vsel %vm1324, %v1357, %v1358
      %v1360 = vrot.slane %v1279, 5
      %v1361 = vrot.slane %v1360, 4
      %v1362 = vrot.slane %v293, 5
      %v1363 = vsel %vm1324, %v1361, %v1362
      %v1364 = vrot.slane %v1362, 4
      %v1365 = vrot.slane %v320, 5
      %v1366 = vsel %vm1324, %v1364, %v1365
      %v1367 = vrot.slane %v1280, 5
      %v1368 = vrot.slane %v1367, 4
      %v1369 = vrot.slane %v295, 5
      %v1370 = vsel %vm1324, %v1368, %v1369
      %v1371 = vrot.slane %v1369, 4
      %v1372 = vrot.slane %v321, 5
      %v1373 = vsel %vm1324, %v1371, %v1372
      %v1374 = vrot.slane %v1281, 5
      %v1375 = vrot.slane %v1374, 4
      %v1376 = vrot.slane %v297, 5
      %v1377 = vsel %vm1324, %v1375, %v1376
      %v1378 = vrot.slane %v1376, 4
      %v1379 = vrot.slane %v322, 5
      %v1380 = vsel %vm1324, %v1378, %v1379
      %v1381 = vrot.slane %v1282, 5
      %v1382 = vrot.slane %v1381, 4
      %v1383 = vrot.slane %v299, 5
      %v1384 = vsel %vm1324, %v1382, %v1383
      %v1385 = vrot.slane %v1383, 4
      %v1386 = vrot.slane %v323, 5
      %v1387 = vsel %vm1324, %v1385, %v1386
      %v1388 = vrot.slane %v1283, 5
      %v1389 = vrot.slane %v1388, 4
      %v1390 = vrot.slane %v301, 5
      %v1391 = vsel %vm1324, %v1389, %v1390
      %v1392 = vrot.slane %v1390, 4
      %v1393 = vrot.slane %v324, 5
      %v1394 = vsel %vm1324, %v1392, %v1393
      %v1395 = vrot.slane %v1284, 5
      %v1396 = vrot.slane %v1395, 4
      %v1397 = vrot.slane %v303, 5
      %v1398 = vsel %vm1324, %v1396, %v1397
      %v1399 = vrot.slane %v1397, 4
      %v1400 = vrot.slane %v325, 5
      %v1401 = vsel %vm1324, %v1399, %v1400
      %v1402 = vrot.slane %v1285, 5
      %v1403 = vrot.slane %v1402, 4
      %v1404 = vrot.slane %v305, 5
      %v1405 = vsel %vm1324, %v1403, %v1404
      %v1406 = vrot.slane %v1404, 4
      %v1407 = vrot.slane %v326, 5
      %v1408 = vsel %vm1324, %v1406, %v1407
      %v1409 = vrot.slane %v1286, 5
      %v1410 = vrot.slane %v1409, 4
      %v1411 = vrot.slane %v307, 5
      %v1412 = vsel %vm1324, %v1410, %v1411
      %v1413 = vrot.slane %v1411, 4
      %v1414 = vrot.slane %v327, 5
      %v1415 = vsel %vm1324, %v1413, %v1414
      %v1416 = vrot.slane %v1287, 5
      %v1417 = vrot.slane %v1416, 4
      %v1418 = vrot.slane %v309, 5
      %v1419 = vsel %vm1324, %v1417, %v1418
      %v1420 = vrot.slane %v1418, 4
      %v1421 = vrot.slane %v328, 5
      %v1422 = vsel %vm1324, %v1420, %v1421
      %v1423 = vrot.slane %v1288, 5
      %v1424 = vrot.slane %v1423, 4
      %v1425 = vrot.slane %v311, 5
      %v1426 = vsel %vm1324, %v1424, %v1425
      %v1427 = vrot.slane %v1425, 4
      %v1428 = vrot.slane %v329, 5
      %v1429 = vsel %vm1324, %v1427, %v1428
      %v1430 = vrot.slane %v1289, 5
      %v1431 = vrot.slane %v1430, 4
      %v1432 = vrot.slane %v313, 5
      %v1433 = vsel %vm1324, %v1431, %v1432
      %v1434 = vrot.slane %v1432, 4
      %v1435 = vrot.slane %v330, 5
      %v1436 = vsel %vm1324, %v1434, %v1435
      %s1437 = scalar_lea.vmem %s261, 4
      %v1438 = vld [vmem:[%s1437] sm:$0x3]
      %v1439 = vunpack.c.l.b16 %v1328
      %v1440 = vunpack.c.l.b16 %v1331
      %v1441 = vunpack.c.l.b16 %v1335
      %v1442 = vunpack.c.l.b16 %v1338
      %v1443 = vunpack.c.l.b16 %v1342
      %v1444 = vunpack.c.l.b16 %v1345
      %v1445 = vunpack.c.l.b16 %v1349
      %v1446 = vunpack.c.l.b16 %v1352
      %v1447 = vunpack.c.l.b16 %v1356
      %v1448 = vunpack.c.l.b16 %v1359
      %v1449 = vunpack.c.l.b16 %v1363
      %v1450 = vunpack.c.l.b16 %v1366
      %v1451 = vunpack.c.l.b16 %v1370
      %v1452 = vunpack.c.l.b16 %v1373
      %v1453 = vunpack.c.l.b16 %v1377
      %v1454 = vunpack.c.l.b16 %v1380
      %v1455 = vunpack.c.l.b16 %v1384
      %v1456 = vunpack.c.l.b16 %v1387
      %v1457 = vunpack.c.l.b16 %v1391
      %v1458 = vunpack.c.l.b16 %v1394
      %v1459 = vunpack.c.l.b16 %v1398
      %v1460 = vunpack.c.l.b16 %v1401
      %v1461 = vunpack.c.l.b16 %v1405
      %v1462 = vunpack.c.l.b16 %v1408
      %v1463 = vunpack.c.l.b16 %v1412
      %v1464 = vunpack.c.l.b16 %v1415
      %v1465 = vunpack.c.l.b16 %v1419
      %v1466 = vunpack.c.l.b16 %v1422
      %v1467 = vunpack.c.l.b16 %v1426
      %v1468 = vunpack.c.l.b16 %v1429
      %v1469 = vunpack.c.l.b16 %v1433
      %v1470 = vunpack.c.l.b16 %v1436
      %v1471 = vpack.c.b16 %v1440, %v1439
      %v1472 = vpack.c.b16 %v1442, %v1441
      %v1473 = vpack.c.b16 %v1444, %v1443
      %v1474 = vpack.c.b16 %v1446, %v1445
      %v1475 = vpack.c.b16 %v1448, %v1447
      %v1476 = vpack.c.b16 %v1450, %v1449
      %v1477 = vpack.c.b16 %v1452, %v1451
      %v1478 = vpack.c.b16 %v1454, %v1453
      %v1479 = vpack.c.b16 %v1456, %v1455
      %v1480 = vpack.c.b16 %v1458, %v1457
      %v1481 = vpack.c.b16 %v1460, %v1459
      %v1482 = vpack.c.b16 %v1462, %v1461
      %v1483 = vpack.c.b16 %v1464, %v1463
      %v1484 = vpack.c.b16 %v1466, %v1465
      %v1485 = vpack.c.b16 %v1468, %v1467
      %v1486 = vpack.c.b16 %v1470, %v1469
      %v1488 = vsel %vm768, %v1471, 0
      %v1491 = vsel %vm768, %v1472, 0
      %v1494 = vsel %vm768, %v1473, 0
      %v1497 = vsel %vm768, %v1474, 0
      %v1500 = vsel %vm768, %v1475, 0
      %v1503 = vsel %vm768, %v1476, 0
      %v1506 = vsel %vm768, %v1477, 0
      %v1509 = vsel %vm768, %v1478, 0
      %v1512 = vsel %vm768, %v1479, 0
      %v1515 = vsel %vm768, %v1480, 0
      %v1518 = vsel %vm768, %v1481, 0
      %v1521 = vsel %vm768, %v1482, 0
      %v1524 = vsel %vm768, %v1483, 0
      %v1527 = vsel %vm768, %v1484, 0
      %v1530 = vsel %vm768, %v1485, 0
      %v1533 = vsel %vm768, %v1486, 0
      %v1536 = vsel %vm817, %v1438, 0
      %1538 = vmatprep.subr.bf16.mxu0 0
      %1539 = vmatpush1.bf16.msra.mxu0 0
      %1540 = vmatprep.subr.bf16.mxu0 0
      %1541 = vmatpush1.bf16.msra.mxu0 0
      %1542 = vmatprep.subr.bf16.mxu0 0
      %1543 = vmatpush1.bf16.msra.mxu0 0
      %1544 = vmatprep.subr.bf16.mxu0 0
      %1545 = vmatpush1.bf16.msra.mxu0 0
      %1546 = vmatprep.subr.bf16.mxu0 0
      %1547 = vmatpush1.bf16.msra.mxu0 0
      %1548 = vmatprep.subr.bf16.mxu0 0
      %1549 = vmatpush1.bf16.msra.mxu0 0
      %1550 = vmatprep.subr.bf16.mxu0 0
      %1551 = vmatpush1.bf16.msra.mxu0 0
      %1552 = vmatprep.subr.bf16.mxu0 0
      %1553 = vmatpush1.bf16.msra.mxu0 %v1536
      %1554 = vmatprep.subr.bf16.mxu0 0
      %1555 = vmatpush2.bf16.msra.mxu0 0
      %1556 = vmatprep.subr.bf16.mxu0 0
      %1557 = vmatpush2.bf16.msra.mxu0 0
      %1558 = vmatprep.subr.bf16.mxu0 0
      %1559 = vmatpush2.bf16.msra.mxu0 0
      %1560 = vmatprep.subr.bf16.mxu0 0
      %1561 = vmatpush2.bf16.msra.mxu0 0
      %1562 = vmatprep.subr.bf16.mxu0 0
      %1563 = vmatpush2.bf16.msra.mxu0 0
      %1564 = vmatprep.subr.bf16.mxu0 0
      %1565 = vmatpush2.bf16.msra.mxu0 0
      %1566 = vmatprep.subr.bf16.mxu0 0
      %1567 = vmatpush2.bf16.msra.mxu0 0
      %1568 = vmatprep.subr.bf16.mxu0 0
      %1569 = vmatpush2.bf16.msra.mxu0 0
      %1570 = vmatprep.mubr.bf16.mxu0 0
      %1571 = vmatmul.mubr.bf16.gmra.mxu0 %v1488
      %v1572 = vpop.f32.mrf.mxu0
      %v1573 = vadd.f32 0.0, %v1572
      %v1574 = vpop.f32.mrf.mxu0
      %v1575 = vpop.f32.mrf.mxu0
      %v1576 = vadd.f32 0.0, %v1575
      %v1577 = vpop.f32.mrf.mxu0
      %1578 = vmatprep.mubr.bf16.mxu0 0
      %1579 = vmatmul.mubr.bf16.gmra.mxu0 %v1491
      %v1580 = vpop.f32.mrf.mxu0
      %v1581 = vadd.f32 0.0, %v1580
      %v1582 = vpop.f32.mrf.mxu0
      %v1583 = vpop.f32.mrf.mxu0
      %v1584 = vadd.f32 0.0, %v1583
      %v1585 = vpop.f32.mrf.mxu0
      %1586 = vmatprep.mubr.bf16.mxu0 0
      %1587 = vmatmul.mubr.bf16.gmra.mxu0 %v1494
      %v1588 = vpop.f32.mrf.mxu0
      %v1589 = vadd.f32 0.0, %v1588
      %v1590 = vpop.f32.mrf.mxu0
      %v1591 = vpop.f32.mrf.mxu0
      %v1592 = vadd.f32 0.0, %v1591
      %v1593 = vpop.f32.mrf.mxu0
      %1594 = vmatprep.mubr.bf16.mxu0 0
      %1595 = vmatmul.mubr.bf16.gmra.mxu0 %v1497
      %v1596 = vpop.f32.mrf.mxu0
      %v1597 = vadd.f32 0.0, %v1596
      %v1598 = vpop.f32.mrf.mxu0
      %v1599 = vpop.f32.mrf.mxu0
      %v1600 = vadd.f32 0.0, %v1599
      %v1601 = vpop.f32.mrf.mxu0
      %1602 = vmatprep.mubr.bf16.mxu0 0
      %1603 = vmatmul.mubr.bf16.gmra.mxu0 %v1500
      %v1604 = vpop.f32.mrf.mxu0
      %v1605 = vadd.f32 0.0, %v1604
      %v1606 = vpop.f32.mrf.mxu0
      %v1607 = vpop.f32.mrf.mxu0
      %v1608 = vadd.f32 0.0, %v1607
      %v1609 = vpop.f32.mrf.mxu0
      %1610 = vmatprep.mubr.bf16.mxu0 0
      %1611 = vmatmul.mubr.bf16.gmra.mxu0 %v1503
      %v1612 = vpop.f32.mrf.mxu0
      %v1613 = vadd.f32 0.0, %v1612
      %v1614 = vpop.f32.mrf.mxu0
      %v1615 = vpop.f32.mrf.mxu0
      %v1616 = vadd.f32 0.0, %v1615
      %v1617 = vpop.f32.mrf.mxu0
      %1618 = vmatprep.mubr.bf16.mxu0 0
      %1619 = vmatmul.mubr.bf16.gmra.mxu0 %v1506
      %v1620 = vpop.f32.mrf.mxu0
      %v1621 = vadd.f32 0.0, %v1620
      %v1622 = vpop.f32.mrf.mxu0
      %v1623 = vpop.f32.mrf.mxu0
      %v1624 = vadd.f32 0.0, %v1623
      %v1625 = vpop.f32.mrf.mxu0
      %1626 = vmatprep.mubr.bf16.mxu0 0
      %1627 = vmatmul.mubr.bf16.gmra.mxu0 %v1509
      %v1628 = vpop.f32.mrf.mxu0
      %v1629 = vadd.f32 0.0, %v1628
      %v1630 = vpop.f32.mrf.mxu0
      %v1631 = vpop.f32.mrf.mxu0
      %v1632 = vadd.f32 0.0, %v1631
      %v1633 = vpop.f32.mrf.mxu0
      %1634 = vmatprep.mubr.bf16.mxu0 0
      %1635 = vmatmul.mubr.bf16.gmra.mxu0 %v1512
      %v1636 = vpop.f32.mrf.mxu0
      %v1637 = vadd.f32 0.0, %v1636
      %v1638 = vpop.f32.mrf.mxu0
      %v1639 = vpop.f32.mrf.mxu0
      %v1640 = vadd.f32 0.0, %v1639
      %v1641 = vpop.f32.mrf.mxu0
      %1642 = vmatprep.mubr.bf16.mxu0 0
      %1643 = vmatmul.mubr.bf16.gmra.mxu0 %v1515
      %v1644 = vpop.f32.mrf.mxu0
      %v1645 = vadd.f32 0.0, %v1644
      %v1646 = vpop.f32.mrf.mxu0
      %v1647 = vpop.f32.mrf.mxu0
      %v1648 = vadd.f32 0.0, %v1647
      %v1649 = vpop.f32.mrf.mxu0
      %1650 = vmatprep.mubr.bf16.mxu0 0
      %1651 = vmatmul.mubr.bf16.gmra.mxu0 %v1518
      %v1652 = vpop.f32.mrf.mxu0
      %v1653 = vadd.f32 0.0, %v1652
      %v1654 = vpop.f32.mrf.mxu0
      %v1655 = vpop.f32.mrf.mxu0
      %v1656 = vadd.f32 0.0, %v1655
      %v1657 = vpop.f32.mrf.mxu0
      %1658 = vmatprep.mubr.bf16.mxu0 0
      %1659 = vmatmul.mubr.bf16.gmra.mxu0 %v1521
      %v1660 = vpop.f32.mrf.mxu0
      %v1661 = vadd.f32 0.0, %v1660
      %v1662 = vpop.f32.mrf.mxu0
      %v1663 = vpop.f32.mrf.mxu0
      %v1664 = vadd.f32 0.0, %v1663
      %v1665 = vpop.f32.mrf.mxu0
      %1666 = vmatprep.mubr.bf16.mxu0 0
      %1667 = vmatmul.mubr.bf16.gmra.mxu0 %v1524
      %v1668 = vpop.f32.mrf.mxu0
      %v1669 = vadd.f32 0.0, %v1668
      %v1670 = vpop.f32.mrf.mxu0
      %v1671 = vpop.f32.mrf.mxu0
      %v1672 = vadd.f32 0.0, %v1671
      %v1673 = vpop.f32.mrf.mxu0
      %1674 = vmatprep.mubr.bf16.mxu0 0
      %1675 = vmatmul.mubr.bf16.gmra.mxu0 %v1527
      %v1676 = vpop.f32.mrf.mxu0
      %v1677 = vadd.f32 0.0, %v1676
      %v1678 = vpop.f32.mrf.mxu0
      %v1679 = vpop.f32.mrf.mxu0
      %v1680 = vadd.f32 0.0, %v1679
      %v1681 = vpop.f32.mrf.mxu0
      %1682 = vmatprep.mubr.bf16.mxu0 0
      %1683 = vmatmul.mubr.bf16.gmra.mxu0 %v1530
      %v1684 = vpop.f32.mrf.mxu0
      %v1685 = vadd.f32 0.0, %v1684
      %v1686 = vpop.f32.mrf.mxu0
      %v1687 = vpop.f32.mrf.mxu0
      %v1688 = vadd.f32 0.0, %v1687
      %v1689 = vpop.f32.mrf.mxu0
      %1690 = vmatprep.mubr.bf16.mxu0 0
      %1691 = vmatmul.mubr.bf16.gmra.mxu0 %v1533
      %v1692 = vpop.f32.mrf.mxu0
      %v1693 = vadd.f32 0.0, %v1692
      %v1694 = vpop.f32.mrf.mxu0
      %v1695 = vpop.f32.mrf.mxu0
      %v1696 = vadd.f32 0.0, %v1695
      %v1697 = vpop.f32.mrf.mxu0
      %1698 = vdwg.mxu0
      %v1699 = vadd.f32 %v1148, %v1573
      %v1700 = vadd.f32 %v1151, %v1576
      %v1701 = vadd.f32 %v1156, %v1581
      %v1702 = vadd.f32 %v1159, %v1584
      %v1703 = vadd.f32 %v1164, %v1589
      %v1704 = vadd.f32 %v1167, %v1592
      %v1705 = vadd.f32 %v1172, %v1597
      %v1706 = vadd.f32 %v1175, %v1600
      %v1707 = vadd.f32 %v1180, %v1605
      %v1708 = vadd.f32 %v1183, %v1608
      %v1709 = vadd.f32 %v1188, %v1613
      %v1710 = vadd.f32 %v1191, %v1616
      %v1711 = vadd.f32 %v1196, %v1621
      %v1712 = vadd.f32 %v1199, %v1624
      %v1713 = vadd.f32 %v1204, %v1629
      %v1714 = vadd.f32 %v1207, %v1632
      %v1715 = vadd.f32 %v1212, %v1637
      %v1716 = vadd.f32 %v1215, %v1640
      %v1717 = vadd.f32 %v1220, %v1645
      %v1718 = vadd.f32 %v1223, %v1648
      %v1719 = vadd.f32 %v1228, %v1653
      %v1720 = vadd.f32 %v1231, %v1656
      %v1721 = vadd.f32 %v1236, %v1661
      %v1722 = vadd.f32 %v1239, %v1664
      %v1723 = vadd.f32 %v1244, %v1669
      %v1724 = vadd.f32 %v1247, %v1672
      %v1725 = vadd.f32 %v1252, %v1677
      %v1726 = vadd.f32 %v1255, %v1680
      %v1727 = vadd.f32 %v1260, %v1685
      %v1728 = vadd.f32 %v1263, %v1688
      %v1729 = vadd.f32 %v1268, %v1693
      %v1730 = vadd.f32 %v1271, %v1696
      %s1731 = scalar_lea.vmem %s253, 12
      %v1732 = vld [vmem:[%s1731] sm:$0xf]
      %v1733 = vld [vmem:[%s1731 + $0x4] sm:$0xf]
      %v1734 = vld [vmem:[%s1731 + $0xc] sm:$0xf]
      %v1735 = vld [vmem:[%s1731 + $0x10] sm:$0xf]
      %v1736 = vld [vmem:[%s1731 + $0x18] sm:$0xf]
      %v1737 = vld [vmem:[%s1731 + $0x1c] sm:$0xf]
      %v1738 = vld [vmem:[%s1731 + $0x24] sm:$0xf]
      %v1739 = vld [vmem:[%s1731 + $0x28] sm:$0xf]
      %v1740 = vld [vmem:[%s1731 + $0x30] sm:$0xf]
      %v1741 = vld [vmem:[%s1731 + $0x34] sm:$0xf]
      %v1742 = vld [vmem:[%s1731 + $0x3c] sm:$0xf]
      %v1743 = vld [vmem:[%s1731 + $0x40] sm:$0xf]
      %v1744 = vld [vmem:[%s1731 + $0x48] sm:$0xf]
      %v1745 = vld [vmem:[%s1731 + $0x4c] sm:$0xf]
      %v1746 = vld [vmem:[%s1731 + $0x54] sm:$0xf]
      %v1747 = vld [vmem:[%s1731 + $0x58] sm:$0xf]
      %v1748 = vld [vmem:[%s1731 + $0x60] sm:$0xf]
      %v1749 = vld [vmem:[%s1731 + $0x64] sm:$0xf]
      %v1750 = vld [vmem:[%s1731 + $0x6c] sm:$0xf]
      %v1751 = vld [vmem:[%s1731 + $0x70] sm:$0xf]
      %v1752 = vld [vmem:[%s1731 + $0x78] sm:$0xf]
      %v1753 = vld [vmem:[%s1731 + $0x7c] sm:$0xf]
      %v1754 = vld [vmem:[%s1731 + $0x84] sm:$0xf]
      %v1755 = vld [vmem:[%s1731 + $0x88] sm:$0xf]
      %v1756 = vld [vmem:[%s1731 + $0x90] sm:$0xf]
      %v1757 = vld [vmem:[%s1731 + $0x94] sm:$0xf]
      %v1758 = vld [vmem:[%s1731 + $0x9c] sm:$0xf]
      %v1759 = vld [vmem:[%s1731 + $0xa0] sm:$0xf]
      %v1760 = vld [vmem:[%s1731 + $0xa8] sm:$0xf]
      %v1761 = vld [vmem:[%s1731 + $0xac] sm:$0xf]
      %v1762 = vld [vmem:[%s1731 + $0xb4] sm:$0xf]
      %v1763 = vld [vmem:[%s1731 + $0xb8] sm:$0xf]
      %s1764 = scalar_lea.vmem %s261, 6
      %v1765 = vld [vmem:[%s1764] sm:$0x3]
      %v1798 = vunpack.c.l.b16 %v1732
      %v1799 = vunpack.c.l.b16 %v1733
      %v1800 = vunpack.c.l.b16 %v1734
      %v1801 = vunpack.c.l.b16 %v1735
      %v1802 = vunpack.c.l.b16 %v1736
      %v1803 = vunpack.c.l.b16 %v1737
      %v1804 = vunpack.c.l.b16 %v1738
      %v1805 = vunpack.c.l.b16 %v1739
      %v1806 = vunpack.c.l.b16 %v1740
      %v1807 = vunpack.c.l.b16 %v1741
      %v1808 = vunpack.c.l.b16 %v1742
      %v1809 = vunpack.c.l.b16 %v1743
      %v1810 = vunpack.c.l.b16 %v1744
      %v1811 = vunpack.c.l.b16 %v1745
      %v1812 = vunpack.c.l.b16 %v1746
      %v1813 = vunpack.c.l.b16 %v1747
      %v1814 = vunpack.c.l.b16 %v1748
      %v1815 = vunpack.c.l.b16 %v1749
      %v1816 = vunpack.c.l.b16 %v1750
      %v1817 = vunpack.c.l.b16 %v1751
      %v1818 = vunpack.c.l.b16 %v1752
      %v1819 = vunpack.c.l.b16 %v1753
      %v1820 = vunpack.c.l.b16 %v1754
      %v1821 = vunpack.c.l.b16 %v1755
      %v1822 = vunpack.c.l.b16 %v1756
      %v1823 = vunpack.c.l.b16 %v1757
      %v1824 = vunpack.c.l.b16 %v1758
      %v1825 = vunpack.c.l.b16 %v1759
      %v1826 = vunpack.c.l.b16 %v1760
      %v1827 = vunpack.c.l.b16 %v1761
      %v1828 = vunpack.c.l.b16 %v1762
      %v1829 = vunpack.c.l.b16 %v1763
      %v1830 = vpack.c.b16 %v1799, %v1798
      %v1831 = vpack.c.b16 %v1801, %v1800
      %v1832 = vpack.c.b16 %v1803, %v1802
      %v1833 = vpack.c.b16 %v1805, %v1804
      %v1834 = vpack.c.b16 %v1807, %v1806
      %v1835 = vpack.c.b16 %v1809, %v1808
      %v1836 = vpack.c.b16 %v1811, %v1810
      %v1837 = vpack.c.b16 %v1813, %v1812
      %v1838 = vpack.c.b16 %v1815, %v1814
      %v1839 = vpack.c.b16 %v1817, %v1816
      %v1840 = vpack.c.b16 %v1819, %v1818
      %v1841 = vpack.c.b16 %v1821, %v1820
      %v1842 = vpack.c.b16 %v1823, %v1822
      %v1843 = vpack.c.b16 %v1825, %v1824
      %v1844 = vpack.c.b16 %v1827, %v1826
      %v1845 = vpack.c.b16 %v1829, %v1828
      %v1847 = vsel %vm768, %v1830, 0
      %v1850 = vsel %vm768, %v1831, 0
      %v1853 = vsel %vm768, %v1832, 0
      %v1856 = vsel %vm768, %v1833, 0
      %v1859 = vsel %vm768, %v1834, 0
      %v1862 = vsel %vm768, %v1835, 0
      %v1865 = vsel %vm768, %v1836, 0
      %v1868 = vsel %vm768, %v1837, 0
      %v1871 = vsel %vm768, %v1838, 0
      %v1874 = vsel %vm768, %v1839, 0
      %v1877 = vsel %vm768, %v1840, 0
      %v1880 = vsel %vm768, %v1841, 0
      %v1883 = vsel %vm768, %v1842, 0
      %v1886 = vsel %vm768, %v1843, 0
      %v1889 = vsel %vm768, %v1844, 0
      %v1892 = vsel %vm768, %v1845, 0
      %v1895 = vsel %vm817, %v1765, 0
      %1897 = vmatprep.subr.bf16.mxu0 0
      %1898 = vmatpush1.bf16.msra.mxu0 0
      %1899 = vmatprep.subr.bf16.mxu0 0
      %1900 = vmatpush1.bf16.msra.mxu0 0
      %1901 = vmatprep.subr.bf16.mxu0 0
      %1902 = vmatpush1.bf16.msra.mxu0 0
      %1903 = vmatprep.subr.bf16.mxu0 0
      %1904 = vmatpush1.bf16.msra.mxu0 0
      %1905 = vmatprep.subr.bf16.mxu0 0
      %1906 = vmatpush1.bf16.msra.mxu0 0
      %1907 = vmatprep.subr.bf16.mxu0 0
      %1908 = vmatpush1.bf16.msra.mxu0 0
      %1909 = vmatprep.subr.bf16.mxu0 0
      %1910 = vmatpush1.bf16.msra.mxu0 0
      %1911 = vmatprep.subr.bf16.mxu0 0
      %1912 = vmatpush1.bf16.msra.mxu0 %v1895
      %1913 = vmatprep.subr.bf16.mxu0 0
      %1914 = vmatpush2.bf16.msra.mxu0 0
      %1915 = vmatprep.subr.bf16.mxu0 0
      %1916 = vmatpush2.bf16.msra.mxu0 0
      %1917 = vmatprep.subr.bf16.mxu0 0
      %1918 = vmatpush2.bf16.msra.mxu0 0
      %1919 = vmatprep.subr.bf16.mxu0 0
      %1920 = vmatpush2.bf16.msra.mxu0 0
      %1921 = vmatprep.subr.bf16.mxu0 0
      %1922 = vmatpush2.bf16.msra.mxu0 0
      %1923 = vmatprep.subr.bf16.mxu0 0
      %1924 = vmatpush2.bf16.msra.mxu0 0
      %1925 = vmatprep.subr.bf16.mxu0 0
      %1926 = vmatpush2.bf16.msra.mxu0 0
      %1927 = vmatprep.subr.bf16.mxu0 0
      %1928 = vmatpush2.bf16.msra.mxu0 0
      %1929 = vmatprep.mubr.bf16.mxu0 0
      %1930 = vmatmul.mubr.bf16.gmra.mxu0 %v1847
      %v1931 = vpop.f32.mrf.mxu0
      %v1932 = vadd.f32 0.0, %v1931
      %v1933 = vpop.f32.mrf.mxu0
      %v1934 = vpop.f32.mrf.mxu0
      %v1935 = vadd.f32 0.0, %v1934
      %v1936 = vpop.f32.mrf.mxu0
      %1937 = vmatprep.mubr.bf16.mxu0 0
      %1938 = vmatmul.mubr.bf16.gmra.mxu0 %v1850
      %v1939 = vpop.f32.mrf.mxu0
      %v1940 = vadd.f32 0.0, %v1939
      %v1941 = vpop.f32.mrf.mxu0
      %v1942 = vpop.f32.mrf.mxu0
      %v1943 = vadd.f32 0.0, %v1942
      %v1944 = vpop.f32.mrf.mxu0
      %1945 = vmatprep.mubr.bf16.mxu0 0
      %1946 = vmatmul.mubr.bf16.gmra.mxu0 %v1853
      %v1947 = vpop.f32.mrf.mxu0
      %v1948 = vadd.f32 0.0, %v1947
      %v1949 = vpop.f32.mrf.mxu0
      %v1950 = vpop.f32.mrf.mxu0
      %v1951 = vadd.f32 0.0, %v1950
      %v1952 = vpop.f32.mrf.mxu0
      %1953 = vmatprep.mubr.bf16.mxu0 0
      %1954 = vmatmul.mubr.bf16.gmra.mxu0 %v1856
      %v1955 = vpop.f32.mrf.mxu0
      %v1956 = vadd.f32 0.0, %v1955
      %v1957 = vpop.f32.mrf.mxu0
      %v1958 = vpop.f32.mrf.mxu0
      %v1959 = vadd.f32 0.0, %v1958
      %v1960 = vpop.f32.mrf.mxu0
      %1961 = vmatprep.mubr.bf16.mxu0 0
      %1962 = vmatmul.mubr.bf16.gmra.mxu0 %v1859
      %v1963 = vpop.f32.mrf.mxu0
      %v1964 = vadd.f32 0.0, %v1963
      %v1965 = vpop.f32.mrf.mxu0
      %v1966 = vpop.f32.mrf.mxu0
      %v1967 = vadd.f32 0.0, %v1966
      %v1968 = vpop.f32.mrf.mxu0
      %1969 = vmatprep.mubr.bf16.mxu0 0
      %1970 = vmatmul.mubr.bf16.gmra.mxu0 %v1862
      %v1971 = vpop.f32.mrf.mxu0
      %v1972 = vadd.f32 0.0, %v1971
      %v1973 = vpop.f32.mrf.mxu0
      %v1974 = vpop.f32.mrf.mxu0
      %v1975 = vadd.f32 0.0, %v1974
      %v1976 = vpop.f32.mrf.mxu0
      %1977 = vmatprep.mubr.bf16.mxu0 0
      %1978 = vmatmul.mubr.bf16.gmra.mxu0 %v1865
      %v1979 = vpop.f32.mrf.mxu0
      %v1980 = vadd.f32 0.0, %v1979
      %v1981 = vpop.f32.mrf.mxu0
      %v1982 = vpop.f32.mrf.mxu0
      %v1983 = vadd.f32 0.0, %v1982
      %v1984 = vpop.f32.mrf.mxu0
      %1985 = vmatprep.mubr.bf16.mxu0 0
      %1986 = vmatmul.mubr.bf16.gmra.mxu0 %v1868
      %v1987 = vpop.f32.mrf.mxu0
      %v1988 = vadd.f32 0.0, %v1987
      %v1989 = vpop.f32.mrf.mxu0
      %v1990 = vpop.f32.mrf.mxu0
      %v1991 = vadd.f32 0.0, %v1990
      %v1992 = vpop.f32.mrf.mxu0
      %1993 = vmatprep.mubr.bf16.mxu0 0
      %1994 = vmatmul.mubr.bf16.gmra.mxu0 %v1871
      %v1995 = vpop.f32.mrf.mxu0
      %v1996 = vadd.f32 0.0, %v1995
      %v1997 = vpop.f32.mrf.mxu0
      %v1998 = vpop.f32.mrf.mxu0
      %v1999 = vadd.f32 0.0, %v1998
      %v2000 = vpop.f32.mrf.mxu0
      %2001 = vmatprep.mubr.bf16.mxu0 0
      %2002 = vmatmul.mubr.bf16.gmra.mxu0 %v1874
      %v2003 = vpop.f32.mrf.mxu0
      %v2004 = vadd.f32 0.0, %v2003
      %v2005 = vpop.f32.mrf.mxu0
      %v2006 = vpop.f32.mrf.mxu0
      %v2007 = vadd.f32 0.0, %v2006
      %v2008 = vpop.f32.mrf.mxu0
      %2009 = vmatprep.mubr.bf16.mxu0 0
      %2010 = vmatmul.mubr.bf16.gmra.mxu0 %v1877
      %v2011 = vpop.f32.mrf.mxu0
      %v2012 = vadd.f32 0.0, %v2011
      %v2013 = vpop.f32.mrf.mxu0
      %v2014 = vpop.f32.mrf.mxu0
      %v2015 = vadd.f32 0.0, %v2014
      %v2016 = vpop.f32.mrf.mxu0
      %2017 = vmatprep.mubr.bf16.mxu0 0
      %2018 = vmatmul.mubr.bf16.gmra.mxu0 %v1880
      %v2019 = vpop.f32.mrf.mxu0
      %v2020 = vadd.f32 0.0, %v2019
      %v2021 = vpop.f32.mrf.mxu0
      %v2022 = vpop.f32.mrf.mxu0
      %v2023 = vadd.f32 0.0, %v2022
      %v2024 = vpop.f32.mrf.mxu0
      %2025 = vmatprep.mubr.bf16.mxu0 0
      %2026 = vmatmul.mubr.bf16.gmra.mxu0 %v1883
      %v2027 = vpop.f32.mrf.mxu0
      %v2028 = vadd.f32 0.0, %v2027
      %v2029 = vpop.f32.mrf.mxu0
      %v2030 = vpop.f32.mrf.mxu0
      %v2031 = vadd.f32 0.0, %v2030
      %v2032 = vpop.f32.mrf.mxu0
      %2033 = vmatprep.mubr.bf16.mxu0 0
      %2034 = vmatmul.mubr.bf16.gmra.mxu0 %v1886
      %v2035 = vpop.f32.mrf.mxu0
      %v2036 = vadd.f32 0.0, %v2035
      %v2037 = vpop.f32.mrf.mxu0
      %v2038 = vpop.f32.mrf.mxu0
      %v2039 = vadd.f32 0.0, %v2038
      %v2040 = vpop.f32.mrf.mxu0
      %2041 = vmatprep.mubr.bf16.mxu0 0
      %2042 = vmatmul.mubr.bf16.gmra.mxu0 %v1889
      %v2043 = vpop.f32.mrf.mxu0
      %v2044 = vadd.f32 0.0, %v2043
      %v2045 = vpop.f32.mrf.mxu0
      %v2046 = vpop.f32.mrf.mxu0
      %v2047 = vadd.f32 0.0, %v2046
      %v2048 = vpop.f32.mrf.mxu0
      %2049 = vmatprep.mubr.bf16.mxu0 0
      %2050 = vmatmul.mubr.bf16.gmra.mxu0 %v1892
      %v2051 = vpop.f32.mrf.mxu0
      %v2052 = vadd.f32 0.0, %v2051
      %v2053 = vpop.f32.mrf.mxu0
      %v2054 = vpop.f32.mrf.mxu0
      %v2055 = vadd.f32 0.0, %v2054
      %v2056 = vpop.f32.mrf.mxu0
      %2057 = vdwg.mxu0
      %v2058 = vadd.f32 %v1699, %v1932
      %v2059 = vadd.f32 %v1700, %v1935
      %v2060 = vadd.f32 %v1701, %v1940
      %v2061 = vadd.f32 %v1702, %v1943
      %v2062 = vadd.f32 %v1703, %v1948
      %v2063 = vadd.f32 %v1704, %v1951
      %v2064 = vadd.f32 %v1705, %v1956
      %v2065 = vadd.f32 %v1706, %v1959
      %v2066 = vadd.f32 %v1707, %v1964
      %v2067 = vadd.f32 %v1708, %v1967
      %v2068 = vadd.f32 %v1709, %v1972
      %v2069 = vadd.f32 %v1710, %v1975
      %v2070 = vadd.f32 %v1711, %v1980
      %v2071 = vadd.f32 %v1712, %v1983
      %v2072 = vadd.f32 %v1713, %v1988
      %v2073 = vadd.f32 %v1714, %v1991
      %v2074 = vadd.f32 %v1715, %v1996
      %v2075 = vadd.f32 %v1716, %v1999
      %v2076 = vadd.f32 %v1717, %v2004
      %v2077 = vadd.f32 %v1718, %v2007
      %v2078 = vadd.f32 %v1719, %v2012
      %v2079 = vadd.f32 %v1720, %v2015
      %v2080 = vadd.f32 %v1721, %v2020
      %v2081 = vadd.f32 %v1722, %v2023
      %v2082 = vadd.f32 %v1723, %v2028
      %v2083 = vadd.f32 %v1724, %v2031
      %v2084 = vadd.f32 %v1725, %v2036
      %v2085 = vadd.f32 %v1726, %v2039
      %v2086 = vadd.f32 %v1727, %v2044
      %v2087 = vadd.f32 %v1728, %v2047
      %v2088 = vadd.f32 %v1729, %v2052
      %v2089 = vadd.f32 %v1730, %v2055
      %v2090 = vld [vmem:[%s1731] sm:$0xf]
      %v2091 = vld [vmem:[%s1731 + $0x4] sm:$0xf]
      %v2092 = vld [vmem:[%s1731 + $0x8] sm:$0x1]
      %v2093 = vld [vmem:[%s1731 + $0xc] sm:$0xf]
      %v2094 = vld [vmem:[%s1731 + $0x10] sm:$0xf]
      %v2095 = vld [vmem:[%s1731 + $0x14] sm:$0x1]
      %v2096 = vld [vmem:[%s1731 + $0x18] sm:$0xf]
      %v2097 = vld [vmem:[%s1731 + $0x1c] sm:$0xf]
      %v2098 = vld [vmem:[%s1731 + $0x20] sm:$0x1]
      %v2099 = vld [vmem:[%s1731 + $0x24] sm:$0xf]
      %v2100 = vld [vmem:[%s1731 + $0x28] sm:$0xf]
      %v2101 = vld [vmem:[%s1731 + $0x2c] sm:$0x1]
      %v2102 = vld [vmem:[%s1731 + $0x30] sm:$0xf]
      %v2103 = vld [vmem:[%s1731 + $0x34] sm:$0xf]
      %v2104 = vld [vmem:[%s1731 + $0x38] sm:$0x1]
      %v2105 = vld [vmem:[%s1731 + $0x3c] sm:$0xf]
      %v2106 = vld [vmem:[%s1731 + $0x40] sm:$0xf]
      %v2107 = vld [vmem:[%s1731 + $0x44] sm:$0x1]
      %v2108 = vld [vmem:[%s1731 + $0x48] sm:$0xf]
      %v2109 = vld [vmem:[%s1731 + $0x4c] sm:$0xf]
      %v2110 = vld [vmem:[%s1731 + $0x50] sm:$0x1]
      %v2111 = vld [vmem:[%s1731 + $0x54] sm:$0xf]
      %v2112 = vld [vmem:[%s1731 + $0x58] sm:$0xf]
      %v2113 = vld [vmem:[%s1731 + $0x5c] sm:$0x1]
      %v2114 = vld [vmem:[%s1731 + $0x60] sm:$0xf]
      %v2115 = vld [vmem:[%s1731 + $0x64] sm:$0xf]
      %v2116 = vld [vmem:[%s1731 + $0x68] sm:$0x1]
      %v2117 = vld [vmem:[%s1731 + $0x6c] sm:$0xf]
      %v2118 = vld [vmem:[%s1731 + $0x70] sm:$0xf]
      %v2119 = vld [vmem:[%s1731 + $0x74] sm:$0x1]
      %v2120 = vld [vmem:[%s1731 + $0x78] sm:$0xf]
      %v2121 = vld [vmem:[%s1731 + $0x7c] sm:$0xf]
      %v2122 = vld [vmem:[%s1731 + $0x80] sm:$0x1]
      %v2123 = vld [vmem:[%s1731 + $0x84] sm:$0xf]
      %v2124 = vld [vmem:[%s1731 + $0x88] sm:$0xf]
      %v2125 = vld [vmem:[%s1731 + $0x8c] sm:$0x1]
      %v2126 = vld [vmem:[%s1731 + $0x90] sm:$0xf]
      %v2127 = vld [vmem:[%s1731 + $0x94] sm:$0xf]
      %v2128 = vld [vmem:[%s1731 + $0x98] sm:$0x1]
      %v2129 = vld [vmem:[%s1731 + $0x9c] sm:$0xf]
      %v2130 = vld [vmem:[%s1731 + $0xa0] sm:$0xf]
      %v2131 = vld [vmem:[%s1731 + $0xa4] sm:$0x1]
      %v2132 = vld [vmem:[%s1731 + $0xa8] sm:$0xf]
      %v2133 = vld [vmem:[%s1731 + $0xac] sm:$0xf]
      %v2134 = vld [vmem:[%s1731 + $0xb0] sm:$0x1]
      %v2135 = vld [vmem:[%s1731 + $0xb4] sm:$0xf]
      %v2136 = vld [vmem:[%s1731 + $0xb8] sm:$0xf]
      %v2137 = vld [vmem:[%s1731 + $0xbc] sm:$0x1]
      %v2139 = vshrl.u32 %v2090, 16
      %v2141 = vrot.slane %v2139, 4
      %v2142 = vshll.u32 %v2090, 16
      %v2144 = vrot.slane %v2142, 5
      %v2145 = vor.u32 %v2141, %v2144
      %v2146 = vrot.slane %v2145, 4
      %v2148 = vshll.u32 %v2091, 16
      %v2150 = vrot.slane %v2148, 5
      %v2151 = vsel %vm333, %v2146, %v2150
      %v2152 = vshrl.u32 %v2091, 16
      %v2154 = vrot.slane %v2152, 4
      %v2155 = vor.u32 %v2154, %v2150
      %v2156 = vrot.slane %v2155, 4
      %v2158 = vshll.u32 %v2092, 16
      %v2160 = vrot.slane %v2158, 5
      %v2161 = vsel %vm333, %v2156, %v2160
      %v2163 = vshrl.u32 %v2093, 16
      %v2165 = vrot.slane %v2163, 4
      %v2166 = vshll.u32 %v2093, 16
      %v2168 = vrot.slane %v2166, 5
      %v2169 = vor.u32 %v2165, %v2168
      %v2170 = vrot.slane %v2169, 4
      %v2172 = vshll.u32 %v2094, 16
      %v2174 = vrot.slane %v2172, 5
      %v2175 = vsel %vm333, %v2170, %v2174
      %v2176 = vshrl.u32 %v2094, 16
      %v2178 = vrot.slane %v2176, 4
      %v2179 = vor.u32 %v2178, %v2174
      %v2180 = vrot.slane %v2179, 4
      %v2182 = vshll.u32 %v2095, 16
      %v2184 = vrot.slane %v2182, 5
      %v2185 = vsel %vm333, %v2180, %v2184
      %v2187 = vshrl.u32 %v2096, 16
      %v2189 = vrot.slane %v2187, 4
      %v2190 = vshll.u32 %v2096, 16
      %v2192 = vrot.slane %v2190, 5
      %v2193 = vor.u32 %v2189, %v2192
      %v2194 = vrot.slane %v2193, 4
      %v2196 = vshll.u32 %v2097, 16
      %v2198 = vrot.slane %v2196, 5
      %v2199 = vsel %vm333, %v2194, %v2198
      %v2200 = vshrl.u32 %v2097, 16
      %v2202 = vrot.slane %v2200, 4
      %v2203 = vor.u32 %v2202, %v2198
      %v2204 = vrot.slane %v2203, 4
      %v2206 = vshll.u32 %v2098, 16
      %v2208 = vrot.slane %v2206, 5
      %v2209 = vsel %vm333, %v2204, %v2208
      %v2211 = vshrl.u32 %v2099, 16
      %v2213 = vrot.slane %v2211, 4
      %v2214 = vshll.u32 %v2099, 16
      %v2216 = vrot.slane %v2214, 5
      %v2217 = vor.u32 %v2213, %v2216
      %v2218 = vrot.slane %v2217, 4
      %v2220 = vshll.u32 %v2100, 16
      %v2222 = vrot.slane %v2220, 5
      %v2223 = vsel %vm333, %v2218, %v2222
      %v2224 = vshrl.u32 %v2100, 16
      %v2226 = vrot.slane %v2224, 4
      %v2227 = vor.u32 %v2226, %v2222
      %v2228 = vrot.slane %v2227, 4
      %v2230 = vshll.u32 %v2101, 16
      %v2232 = vrot.slane %v2230, 5
      %v2233 = vsel %vm333, %v2228, %v2232
      %v2235 = vshrl.u32 %v2102, 16
      %v2237 = vrot.slane %v2235, 4
      %v2238 = vshll.u32 %v2102, 16
      %v2240 = vrot.slane %v2238, 5
      %v2241 = vor.u32 %v2237, %v2240
      %v2242 = vrot.slane %v2241, 4
      %v2244 = vshll.u32 %v2103, 16
      %v2246 = vrot.slane %v2244, 5
      %v2247 = vsel %vm333, %v2242, %v2246
      %v2248 = vshrl.u32 %v2103, 16
      %v2250 = vrot.slane %v2248, 4
      %v2251 = vor.u32 %v2250, %v2246
      %v2252 = vrot.slane %v2251, 4
      %v2254 = vshll.u32 %v2104, 16
      %v2256 = vrot.slane %v2254, 5
      %v2257 = vsel %vm333, %v2252, %v2256
      %v2259 = vshrl.u32 %v2105, 16
      %v2261 = vrot.slane %v2259, 4
      %v2262 = vshll.u32 %v2105, 16
      %v2264 = vrot.slane %v2262, 5
      %v2265 = vor.u32 %v2261, %v2264
      %v2266 = vrot.slane %v2265, 4
      %v2268 = vshll.u32 %v2106, 16
      %v2270 = vrot.slane %v2268, 5
      %v2271 = vsel %vm333, %v2266, %v2270
      %v2272 = vshrl.u32 %v2106, 16
      %v2274 = vrot.slane %v2272, 4
      %v2275 = vor.u32 %v2274, %v2270
      %v2276 = vrot.slane %v2275, 4
      %v2278 = vshll.u32 %v2107, 16
      %v2280 = vrot.slane %v2278, 5
      %v2281 = vsel %vm333, %v2276, %v2280
      %v2283 = vshrl.u32 %v2108, 16
      %v2285 = vrot.slane %v2283, 4
      %v2286 = vshll.u32 %v2108, 16
      %v2288 = vrot.slane %v2286, 5
      %v2289 = vor.u32 %v2285, %v2288
      %v2290 = vrot.slane %v2289, 4
      %v2292 = vshll.u32 %v2109, 16
      %v2294 = vrot.slane %v2292, 5
      %v2295 = vsel %vm333, %v2290, %v2294
      %v2296 = vshrl.u32 %v2109, 16
      %v2298 = vrot.slane %v2296, 4
      %v2299 = vor.u32 %v2298, %v2294
      %v2300 = vrot.slane %v2299, 4
      %v2302 = vshll.u32 %v2110, 16
      %v2304 = vrot.slane %v2302, 5
      %v2305 = vsel %vm333, %v2300, %v2304
      %v2307 = vshrl.u32 %v2111, 16
      %v2309 = vrot.slane %v2307, 4
      %v2310 = vshll.u32 %v2111, 16
      %v2312 = vrot.slane %v2310, 5
      %v2313 = vor.u32 %v2309, %v2312
      %v2314 = vrot.slane %v2313, 4
      %v2316 = vshll.u32 %v2112, 16
      %v2318 = vrot.slane %v2316, 5
      %v2319 = vsel %vm333, %v2314, %v2318
      %v2320 = vshrl.u32 %v2112, 16
      %v2322 = vrot.slane %v2320, 4
      %v2323 = vor.u32 %v2322, %v2318
      %v2324 = vrot.slane %v2323, 4
      %v2326 = vshll.u32 %v2113, 16
      %v2328 = vrot.slane %v2326, 5
      %v2329 = vsel %vm333, %v2324, %v2328
      %v2331 = vshrl.u32 %v2114, 16
      %v2333 = vrot.slane %v2331, 4
      %v2334 = vshll.u32 %v2114, 16
      %v2336 = vrot.slane %v2334, 5
      %v2337 = vor.u32 %v2333, %v2336
      %v2338 = vrot.slane %v2337, 4
      %v2340 = vshll.u32 %v2115, 16
      %v2342 = vrot.slane %v2340, 5
      %v2343 = vsel %vm333, %v2338, %v2342
      %v2344 = vshrl.u32 %v2115, 16
      %v2346 = vrot.slane %v2344, 4
      %v2347 = vor.u32 %v2346, %v2342
      %v2348 = vrot.slane %v2347, 4
      %v2350 = vshll.u32 %v2116, 16
      %v2352 = vrot.slane %v2350, 5
      %v2353 = vsel %vm333, %v2348, %v2352
      %v2355 = vshrl.u32 %v2117, 16
      %v2357 = vrot.slane %v2355, 4
      %v2358 = vshll.u32 %v2117, 16
      %v2360 = vrot.slane %v2358, 5
      %v2361 = vor.u32 %v2357, %v2360
      %v2362 = vrot.slane %v2361, 4
      %v2364 = vshll.u32 %v2118, 16
      %v2366 = vrot.slane %v2364, 5
      %v2367 = vsel %vm333, %v2362, %v2366
      %v2368 = vshrl.u32 %v2118, 16
      %v2370 = vrot.slane %v2368, 4
      %v2371 = vor.u32 %v2370, %v2366
      %v2372 = vrot.slane %v2371, 4
      %v2374 = vshll.u32 %v2119, 16
      %v2376 = vrot.slane %v2374, 5
      %v2377 = vsel %vm333, %v2372, %v2376
      %v2379 = vshrl.u32 %v2120, 16
      %v2381 = vrot.slane %v2379, 4
      %v2382 = vshll.u32 %v2120, 16
      %v2384 = vrot.slane %v2382, 5
      %v2385 = vor.u32 %v2381, %v2384
      %v2386 = vrot.slane %v2385, 4
      %v2388 = vshll.u32 %v2121, 16
      %v2390 = vrot.slane %v2388, 5
      %v2391 = vsel %vm333, %v2386, %v2390
      %v2392 = vshrl.u32 %v2121, 16
      %v2394 = vrot.slane %v2392, 4
      %v2395 = vor.u32 %v2394, %v2390
      %v2396 = vrot.slane %v2395, 4
      %v2398 = vshll.u32 %v2122, 16
      %v2400 = vrot.slane %v2398, 5
      %v2401 = vsel %vm333, %v2396, %v2400
      %v2403 = vshrl.u32 %v2123, 16
      %v2405 = vrot.slane %v2403, 4
      %v2406 = vshll.u32 %v2123, 16
      %v2408 = vrot.slane %v2406, 5
      %v2409 = vor.u32 %v2405, %v2408
      %v2410 = vrot.slane %v2409, 4
      %v2412 = vshll.u32 %v2124, 16
      %v2414 = vrot.slane %v2412, 5
      %v2415 = vsel %vm333, %v2410, %v2414
      %v2416 = vshrl.u32 %v2124, 16
      %v2418 = vrot.slane %v2416, 4
      %v2419 = vor.u32 %v2418, %v2414
      %v2420 = vrot.slane %v2419, 4
      %v2422 = vshll.u32 %v2125, 16
      %v2424 = vrot.slane %v2422, 5
      %v2425 = vsel %vm333, %v2420, %v2424
      %v2427 = vshrl.u32 %v2126, 16
      %v2429 = vrot.slane %v2427, 4
      %v2430 = vshll.u32 %v2126, 16
      %v2432 = vrot.slane %v2430, 5
      %v2433 = vor.u32 %v2429, %v2432
      %v2434 = vrot.slane %v2433, 4
      %v2436 = vshll.u32 %v2127, 16
      %v2438 = vrot.slane %v2436, 5
      %v2439 = vsel %vm333, %v2434, %v2438
      %v2440 = vshrl.u32 %v2127, 16
      %v2442 = vrot.slane %v2440, 4
      %v2443 = vor.u32 %v2442, %v2438
      %v2444 = vrot.slane %v2443, 4
      %v2446 = vshll.u32 %v2128, 16
      %v2448 = vrot.slane %v2446, 5
      %v2449 = vsel %vm333, %v2444, %v2448
      %v2451 = vshrl.u32 %v2129, 16
      %v2453 = vrot.slane %v2451, 4
      %v2454 = vshll.u32 %v2129, 16
      %v2456 = vrot.slane %v2454, 5
      %v2457 = vor.u32 %v2453, %v2456
      %v2458 = vrot.slane %v2457, 4
      %v2460 = vshll.u32 %v2130, 16
      %v2462 = vrot.slane %v2460, 5
      %v2463 = vsel %vm333, %v2458, %v2462
      %v2464 = vshrl.u32 %v2130, 16
      %v2466 = vrot.slane %v2464, 4
      %v2467 = vor.u32 %v2466, %v2462
      %v2468 = vrot.slane %v2467, 4
      %v2470 = vshll.u32 %v2131, 16
      %v2472 = vrot.slane %v2470, 5
      %v2473 = vsel %vm333, %v2468, %v2472
      %v2475 = vshrl.u32 %v2132, 16
      %v2477 = vrot.slane %v2475, 4
      %v2478 = vshll.u32 %v2132, 16
      %v2480 = vrot.slane %v2478, 5
      %v2481 = vor.u32 %v2477, %v2480
      %v2482 = vrot.slane %v2481, 4
      %v2484 = vshll.u32 %v2133, 16
      %v2486 = vrot.slane %v2484, 5
      %v2487 = vsel %vm333, %v2482, %v2486
      %v2488 = vshrl.u32 %v2133, 16
      %v2490 = vrot.slane %v2488, 4
      %v2491 = vor.u32 %v2490, %v2486
      %v2492 = vrot.slane %v2491, 4
      %v2494 = vshll.u32 %v2134, 16
      %v2496 = vrot.slane %v2494, 5
      %v2497 = vsel %vm333, %v2492, %v2496
      %v2499 = vshrl.u32 %v2135, 16
      %v2501 = vrot.slane %v2499, 4
      %v2502 = vshll.u32 %v2135, 16
      %v2504 = vrot.slane %v2502, 5
      %v2505 = vor.u32 %v2501, %v2504
      %v2506 = vrot.slane %v2505, 4
      %v2508 = vshll.u32 %v2136, 16
      %v2510 = vrot.slane %v2508, 5
      %v2511 = vsel %vm333, %v2506, %v2510
      %v2512 = vshrl.u32 %v2136, 16
      %v2514 = vrot.slane %v2512, 4
      %v2515 = vor.u32 %v2514, %v2510
      %v2516 = vrot.slane %v2515, 4
      %v2518 = vshll.u32 %v2137, 16
      %v2520 = vrot.slane %v2518, 5
      %v2521 = vsel %vm333, %v2516, %v2520
      %s2522 = scalar_lea.vmem %s261, 8
      %v2523 = vld [vmem:[%s2522] sm:$0x3]
      %v2524 = vunpack.c.l.b16 %v2151
      %v2525 = vunpack.c.l.b16 %v2161
      %v2526 = vunpack.c.l.b16 %v2175
      %v2527 = vunpack.c.l.b16 %v2185
      %v2528 = vunpack.c.l.b16 %v2199
      %v2529 = vunpack.c.l.b16 %v2209
      %v2530 = vunpack.c.l.b16 %v2223
      %v2531 = vunpack.c.l.b16 %v2233
      %v2532 = vunpack.c.l.b16 %v2247
      %v2533 = vunpack.c.l.b16 %v2257
      %v2534 = vunpack.c.l.b16 %v2271
      %v2535 = vunpack.c.l.b16 %v2281
      %v2536 = vunpack.c.l.b16 %v2295
      %v2537 = vunpack.c.l.b16 %v2305
      %v2538 = vunpack.c.l.b16 %v2319
      %v2539 = vunpack.c.l.b16 %v2329
      %v2540 = vunpack.c.l.b16 %v2343
      %v2541 = vunpack.c.l.b16 %v2353
      %v2542 = vunpack.c.l.b16 %v2367
      %v2543 = vunpack.c.l.b16 %v2377
      %v2544 = vunpack.c.l.b16 %v2391
      %v2545 = vunpack.c.l.b16 %v2401
      %v2546 = vunpack.c.l.b16 %v2415
      %v2547 = vunpack.c.l.b16 %v2425
      %v2548 = vunpack.c.l.b16 %v2439
      %v2549 = vunpack.c.l.b16 %v2449
      %v2550 = vunpack.c.l.b16 %v2463
      %v2551 = vunpack.c.l.b16 %v2473
      %v2552 = vunpack.c.l.b16 %v2487
      %v2553 = vunpack.c.l.b16 %v2497
      %v2554 = vunpack.c.l.b16 %v2511
      %v2555 = vunpack.c.l.b16 %v2521
      %v2556 = vpack.c.b16 %v2525, %v2524
      %v2557 = vpack.c.b16 %v2527, %v2526
      %v2558 = vpack.c.b16 %v2529, %v2528
      %v2559 = vpack.c.b16 %v2531, %v2530
      %v2560 = vpack.c.b16 %v2533, %v2532
      %v2561 = vpack.c.b16 %v2535, %v2534
      %v2562 = vpack.c.b16 %v2537, %v2536
      %v2563 = vpack.c.b16 %v2539, %v2538
      %v2564 = vpack.c.b16 %v2541, %v2540
      %v2565 = vpack.c.b16 %v2543, %v2542
      %v2566 = vpack.c.b16 %v2545, %v2544
      %v2567 = vpack.c.b16 %v2547, %v2546
      %v2568 = vpack.c.b16 %v2549, %v2548
      %v2569 = vpack.c.b16 %v2551, %v2550
      %v2570 = vpack.c.b16 %v2553, %v2552
      %v2571 = vpack.c.b16 %v2555, %v2554
      %v2573 = vsel %vm768, %v2556, 0
      %v2576 = vsel %vm768, %v2557, 0
      %v2579 = vsel %vm768, %v2558, 0
      %v2582 = vsel %vm768, %v2559, 0
      %v2585 = vsel %vm768, %v2560, 0
      %v2588 = vsel %vm768, %v2561, 0
      %v2591 = vsel %vm768, %v2562, 0
      %v2594 = vsel %vm768, %v2563, 0
      %v2597 = vsel %vm768, %v2564, 0
      %v2600 = vsel %vm768, %v2565, 0
      %v2603 = vsel %vm768, %v2566, 0
      %v2606 = vsel %vm768, %v2567, 0
      %v2609 = vsel %vm768, %v2568, 0
      %v2612 = vsel %vm768, %v2569, 0
      %v2615 = vsel %vm768, %v2570, 0
      %v2618 = vsel %vm768, %v2571, 0
      %v2621 = vsel %vm817, %v2523, 0
      %2623 = vmatprep.subr.bf16.mxu0 0
      %2624 = vmatpush1.bf16.msra.mxu0 0
      %2625 = vmatprep.subr.bf16.mxu0 0
      %2626 = vmatpush1.bf16.msra.mxu0 0
      %2627 = vmatprep.subr.bf16.mxu0 0
      %2628 = vmatpush1.bf16.msra.mxu0 0
      %2629 = vmatprep.subr.bf16.mxu0 0
      %2630 = vmatpush1.bf16.msra.mxu0 0
      %2631 = vmatprep.subr.bf16.mxu0 0
      %2632 = vmatpush1.bf16.msra.mxu0 0
      %2633 = vmatprep.subr.bf16.mxu0 0
      %2634 = vmatpush1.bf16.msra.mxu0 0
      %2635 = vmatprep.subr.bf16.mxu0 0
      %2636 = vmatpush1.bf16.msra.mxu0 0
      %2637 = vmatprep.subr.bf16.mxu0 0
      %2638 = vmatpush1.bf16.msra.mxu0 %v2621
      %2639 = vmatprep.subr.bf16.mxu0 0
      %2640 = vmatpush2.bf16.msra.mxu0 0
      %2641 = vmatprep.subr.bf16.mxu0 0
      %2642 = vmatpush2.bf16.msra.mxu0 0
      %2643 = vmatprep.subr.bf16.mxu0 0
      %2644 = vmatpush2.bf16.msra.mxu0 0
      %2645 = vmatprep.subr.bf16.mxu0 0
      %2646 = vmatpush2.bf16.msra.mxu0 0
      %2647 = vmatprep.subr.bf16.mxu0 0
      %2648 = vmatpush2.bf16.msra.mxu0 0
      %2649 = vmatprep.subr.bf16.mxu0 0
      %2650 = vmatpush2.bf16.msra.mxu0 0
      %2651 = vmatprep.subr.bf16.mxu0 0
      %2652 = vmatpush2.bf16.msra.mxu0 0
      %2653 = vmatprep.subr.bf16.mxu0 0
      %2654 = vmatpush2.bf16.msra.mxu0 0
      %2655 = vmatprep.mubr.bf16.mxu0 0
      %2656 = vmatmul.mubr.bf16.gmra.mxu0 %v2573
      %v2657 = vpop.f32.mrf.mxu0
      %v2658 = vadd.f32 0.0, %v2657
      %v2659 = vpop.f32.mrf.mxu0
      %v2660 = vpop.f32.mrf.mxu0
      %v2661 = vadd.f32 0.0, %v2660
      %v2662 = vpop.f32.mrf.mxu0
      %2663 = vmatprep.mubr.bf16.mxu0 0
      %2664 = vmatmul.mubr.bf16.gmra.mxu0 %v2576
      %v2665 = vpop.f32.mrf.mxu0
      %v2666 = vadd.f32 0.0, %v2665
      %v2667 = vpop.f32.mrf.mxu0
      %v2668 = vpop.f32.mrf.mxu0
      %v2669 = vadd.f32 0.0, %v2668
      %v2670 = vpop.f32.mrf.mxu0
      %2671 = vmatprep.mubr.bf16.mxu0 0
      %2672 = vmatmul.mubr.bf16.gmra.mxu0 %v2579
      %v2673 = vpop.f32.mrf.mxu0
      %v2674 = vadd.f32 0.0, %v2673
      %v2675 = vpop.f32.mrf.mxu0
      %v2676 = vpop.f32.mrf.mxu0
      %v2677 = vadd.f32 0.0, %v2676
      %v2678 = vpop.f32.mrf.mxu0
      %2679 = vmatprep.mubr.bf16.mxu0 0
      %2680 = vmatmul.mubr.bf16.gmra.mxu0 %v2582
      %v2681 = vpop.f32.mrf.mxu0
      %v2682 = vadd.f32 0.0, %v2681
      %v2683 = vpop.f32.mrf.mxu0
      %v2684 = vpop.f32.mrf.mxu0
      %v2685 = vadd.f32 0.0, %v2684
      %v2686 = vpop.f32.mrf.mxu0
      %2687 = vmatprep.mubr.bf16.mxu0 0
      %2688 = vmatmul.mubr.bf16.gmra.mxu0 %v2585
      %v2689 = vpop.f32.mrf.mxu0
      %v2690 = vadd.f32 0.0, %v2689
      %v2691 = vpop.f32.mrf.mxu0
      %v2692 = vpop.f32.mrf.mxu0
      %v2693 = vadd.f32 0.0, %v2692
      %v2694 = vpop.f32.mrf.mxu0
      %2695 = vmatprep.mubr.bf16.mxu0 0
      %2696 = vmatmul.mubr.bf16.gmra.mxu0 %v2588
      %v2697 = vpop.f32.mrf.mxu0
      %v2698 = vadd.f32 0.0, %v2697
      %v2699 = vpop.f32.mrf.mxu0
      %v2700 = vpop.f32.mrf.mxu0
      %v2701 = vadd.f32 0.0, %v2700
      %v2702 = vpop.f32.mrf.mxu0
      %2703 = vmatprep.mubr.bf16.mxu0 0
      %2704 = vmatmul.mubr.bf16.gmra.mxu0 %v2591
      %v2705 = vpop.f32.mrf.mxu0
      %v2706 = vadd.f32 0.0, %v2705
      %v2707 = vpop.f32.mrf.mxu0
      %v2708 = vpop.f32.mrf.mxu0
      %v2709 = vadd.f32 0.0, %v2708
      %v2710 = vpop.f32.mrf.mxu0
      %2711 = vmatprep.mubr.bf16.mxu0 0
      %2712 = vmatmul.mubr.bf16.gmra.mxu0 %v2594
      %v2713 = vpop.f32.mrf.mxu0
      %v2714 = vadd.f32 0.0, %v2713
      %v2715 = vpop.f32.mrf.mxu0
      %v2716 = vpop.f32.mrf.mxu0
      %v2717 = vadd.f32 0.0, %v2716
      %v2718 = vpop.f32.mrf.mxu0
      %2719 = vmatprep.mubr.bf16.mxu0 0
      %2720 = vmatmul.mubr.bf16.gmra.mxu0 %v2597
      %v2721 = vpop.f32.mrf.mxu0
      %v2722 = vadd.f32 0.0, %v2721
      %v2723 = vpop.f32.mrf.mxu0
      %v2724 = vpop.f32.mrf.mxu0
      %v2725 = vadd.f32 0.0, %v2724
      %v2726 = vpop.f32.mrf.mxu0
      %2727 = vmatprep.mubr.bf16.mxu0 0
      %2728 = vmatmul.mubr.bf16.gmra.mxu0 %v2600
      %v2729 = vpop.f32.mrf.mxu0
      %v2730 = vadd.f32 0.0, %v2729
      %v2731 = vpop.f32.mrf.mxu0
      %v2732 = vpop.f32.mrf.mxu0
      %v2733 = vadd.f32 0.0, %v2732
      %v2734 = vpop.f32.mrf.mxu0
      %2735 = vmatprep.mubr.bf16.mxu0 0
      %2736 = vmatmul.mubr.bf16.gmra.mxu0 %v2603
      %v2737 = vpop.f32.mrf.mxu0
      %v2738 = vadd.f32 0.0, %v2737
      %v2739 = vpop.f32.mrf.mxu0
      %v2740 = vpop.f32.mrf.mxu0
      %v2741 = vadd.f32 0.0, %v2740
      %v2742 = vpop.f32.mrf.mxu0
      %2743 = vmatprep.mubr.bf16.mxu0 0
      %2744 = vmatmul.mubr.bf16.gmra.mxu0 %v2606
      %v2745 = vpop.f32.mrf.mxu0
      %v2746 = vadd.f32 0.0, %v2745
      %v2747 = vpop.f32.mrf.mxu0
      %v2748 = vpop.f32.mrf.mxu0
      %v2749 = vadd.f32 0.0, %v2748
      %v2750 = vpop.f32.mrf.mxu0
      %2751 = vmatprep.mubr.bf16.mxu0 0
      %2752 = vmatmul.mubr.bf16.gmra.mxu0 %v2609
      %v2753 = vpop.f32.mrf.mxu0
      %v2754 = vadd.f32 0.0, %v2753
      %v2755 = vpop.f32.mrf.mxu0
      %v2756 = vpop.f32.mrf.mxu0
      %v2757 = vadd.f32 0.0, %v2756
      %v2758 = vpop.f32.mrf.mxu0
      %2759 = vmatprep.mubr.bf16.mxu0 0
      %2760 = vmatmul.mubr.bf16.gmra.mxu0 %v2612
      %v2761 = vpop.f32.mrf.mxu0
      %v2762 = vadd.f32 0.0, %v2761
      %v2763 = vpop.f32.mrf.mxu0
      %v2764 = vpop.f32.mrf.mxu0
      %v2765 = vadd.f32 0.0, %v2764
      %v2766 = vpop.f32.mrf.mxu0
      %2767 = vmatprep.mubr.bf16.mxu0 0
      %2768 = vmatmul.mubr.bf16.gmra.mxu0 %v2615
      %v2769 = vpop.f32.mrf.mxu0
      %v2770 = vadd.f32 0.0, %v2769
      %v2771 = vpop.f32.mrf.mxu0
      %v2772 = vpop.f32.mrf.mxu0
      %v2773 = vadd.f32 0.0, %v2772
      %v2774 = vpop.f32.mrf.mxu0
      %2775 = vmatprep.mubr.bf16.mxu0 0
      %2776 = vmatmul.mubr.bf16.gmra.mxu0 %v2618
      %v2777 = vpop.f32.mrf.mxu0
      %v2778 = vadd.f32 0.0, %v2777
      %v2779 = vpop.f32.mrf.mxu0
      %v2780 = vpop.f32.mrf.mxu0
      %v2781 = vadd.f32 0.0, %v2780
      %v2782 = vpop.f32.mrf.mxu0
      %2783 = vdwg.mxu0
      %v2784 = vadd.f32 %v2058, %v2658
      %v2785 = vadd.f32 %v2059, %v2661
      %v2786 = vadd.f32 %v2060, %v2666
      %v2787 = vadd.f32 %v2061, %v2669
      %v2788 = vadd.f32 %v2062, %v2674
      %v2789 = vadd.f32 %v2063, %v2677
      %v2790 = vadd.f32 %v2064, %v2682
      %v2791 = vadd.f32 %v2065, %v2685
      %v2792 = vadd.f32 %v2066, %v2690
      %v2793 = vadd.f32 %v2067, %v2693
      %v2794 = vadd.f32 %v2068, %v2698
      %v2795 = vadd.f32 %v2069, %v2701
      %v2796 = vadd.f32 %v2070, %v2706
      %v2797 = vadd.f32 %v2071, %v2709
      %v2798 = vadd.f32 %v2072, %v2714
      %v2799 = vadd.f32 %v2073, %v2717
      %v2800 = vadd.f32 %v2074, %v2722
      %v2801 = vadd.f32 %v2075, %v2725
      %v2802 = vadd.f32 %v2076, %v2730
      %v2803 = vadd.f32 %v2077, %v2733
      %v2804 = vadd.f32 %v2078, %v2738
      %v2805 = vadd.f32 %v2079, %v2741
      %v2806 = vadd.f32 %v2080, %v2746
      %v2807 = vadd.f32 %v2081, %v2749
      %v2808 = vadd.f32 %v2082, %v2754
      %v2809 = vadd.f32 %v2083, %v2757
      %v2810 = vadd.f32 %v2084, %v2762
      %v2811 = vadd.f32 %v2085, %v2765
      %v2812 = vadd.f32 %v2086, %v2770
      %v2813 = vadd.f32 %v2087, %v2773
      %v2814 = vadd.f32 %v2088, %v2778
      %v2815 = vadd.f32 %v2089, %v2781
      %v2816 = vld [vmem:[%s1731] sm:$0xe]
      %v2817 = vld [vmem:[%s1731 + $0xc] sm:$0xe]
      %v2818 = vld [vmem:[%s1731 + $0x18] sm:$0xe]
      %v2819 = vld [vmem:[%s1731 + $0x24] sm:$0xe]
      %v2820 = vld [vmem:[%s1731 + $0x30] sm:$0xe]
      %v2821 = vld [vmem:[%s1731 + $0x3c] sm:$0xe]
      %v2822 = vld [vmem:[%s1731 + $0x48] sm:$0xe]
      %v2823 = vld [vmem:[%s1731 + $0x54] sm:$0xe]
      %v2824 = vld [vmem:[%s1731 + $0x60] sm:$0xe]
      %v2825 = vld [vmem:[%s1731 + $0x6c] sm:$0xe]
      %v2826 = vld [vmem:[%s1731 + $0x78] sm:$0xe]
      %v2827 = vld [vmem:[%s1731 + $0x84] sm:$0xe]
      %v2828 = vld [vmem:[%s1731 + $0x90] sm:$0xe]
      %v2829 = vld [vmem:[%s1731 + $0x9c] sm:$0xe]
      %v2830 = vld [vmem:[%s1731 + $0xa8] sm:$0xe]
      %v2831 = vld [vmem:[%s1731 + $0xb4] sm:$0xe]
      %v2880 = vrot.slane %v2816, 5
      %v2881 = vrot.slane %v2880, 4
      %v2882 = vrot.slane %v2091, 5
      %v2883 = vsel %vm1324, %v2881, %v2882
      %v2884 = vrot.slane %v2882, 4
      %v2885 = vrot.slane %v2092, 5
      %v2886 = vsel %vm1324, %v2884, %v2885
      %v2887 = vrot.slane %v2817, 5
      %v2888 = vrot.slane %v2887, 4
      %v2889 = vrot.slane %v2094, 5
      %v2890 = vsel %vm1324, %v2888, %v2889
      %v2891 = vrot.slane %v2889, 4
      %v2892 = vrot.slane %v2095, 5
      %v2893 = vsel %vm1324, %v2891, %v2892
      %v2894 = vrot.slane %v2818, 5
      %v2895 = vrot.slane %v2894, 4
      %v2896 = vrot.slane %v2097, 5
      %v2897 = vsel %vm1324, %v2895, %v2896
      %v2898 = vrot.slane %v2896, 4
      %v2899 = vrot.slane %v2098, 5
      %v2900 = vsel %vm1324, %v2898, %v2899
      %v2901 = vrot.slane %v2819, 5
      %v2902 = vrot.slane %v2901, 4
      %v2903 = vrot.slane %v2100, 5
      %v2904 = vsel %vm1324, %v2902, %v2903
      %v2905 = vrot.slane %v2903, 4
      %v2906 = vrot.slane %v2101, 5
      %v2907 = vsel %vm1324, %v2905, %v2906
      %v2908 = vrot.slane %v2820, 5
      %v2909 = vrot.slane %v2908, 4
      %v2910 = vrot.slane %v2103, 5
      %v2911 = vsel %vm1324, %v2909, %v2910
      %v2912 = vrot.slane %v2910, 4
      %v2913 = vrot.slane %v2104, 5
      %v2914 = vsel %vm1324, %v2912, %v2913
      %v2915 = vrot.slane %v2821, 5
      %v2916 = vrot.slane %v2915, 4
      %v2917 = vrot.slane %v2106, 5
      %v2918 = vsel %vm1324, %v2916, %v2917
      %v2919 = vrot.slane %v2917, 4
      %v2920 = vrot.slane %v2107, 5
      %v2921 = vsel %vm1324, %v2919, %v2920
      %v2922 = vrot.slane %v2822, 5
      %v2923 = vrot.slane %v2922, 4
      %v2924 = vrot.slane %v2109, 5
      %v2925 = vsel %vm1324, %v2923, %v2924
      %v2926 = vrot.slane %v2924, 4
      %v2927 = vrot.slane %v2110, 5
      %v2928 = vsel %vm1324, %v2926, %v2927
      %v2929 = vrot.slane %v2823, 5
      %v2930 = vrot.slane %v2929, 4
      %v2931 = vrot.slane %v2112, 5
      %v2932 = vsel %vm1324, %v2930, %v2931
      %v2933 = vrot.slane %v2931, 4
      %v2934 = vrot.slane %v2113, 5
      %v2935 = vsel %vm1324, %v2933, %v2934
      %v2936 = vrot.slane %v2824, 5
      %v2937 = vrot.slane %v2936, 4
      %v2938 = vrot.slane %v2115, 5
      %v2939 = vsel %vm1324, %v2937, %v2938
      %v2940 = vrot.slane %v2938, 4
      %v2941 = vrot.slane %v2116, 5
      %v2942 = vsel %vm1324, %v2940, %v2941
      %v2943 = vrot.slane %v2825, 5
      %v2944 = vrot.slane %v2943, 4
      %v2945 = vrot.slane %v2118, 5
      %v2946 = vsel %vm1324, %v2944, %v2945
      %v2947 = vrot.slane %v2945, 4
      %v2948 = vrot.slane %v2119, 5
      %v2949 = vsel %vm1324, %v2947, %v2948
      %v2950 = vrot.slane %v2826, 5
      %v2951 = vrot.slane %v2950, 4
      %v2952 = vrot.slane %v2121, 5
      %v2953 = vsel %vm1324, %v2951, %v2952
      %v2954 = vrot.slane %v2952, 4
      %v2955 = vrot.slane %v2122, 5
      %v2956 = vsel %vm1324, %v2954, %v2955
      %v2957 = vrot.slane %v2827, 5
      %v2958 = vrot.slane %v2957, 4
      %v2959 = vrot.slane %v2124, 5
      %v2960 = vsel %vm1324, %v2958, %v2959
      %v2961 = vrot.slane %v2959, 4
      %v2962 = vrot.slane %v2125, 5
      %v2963 = vsel %vm1324, %v2961, %v2962
      %v2964 = vrot.slane %v2828, 5
      %v2965 = vrot.slane %v2964, 4
      %v2966 = vrot.slane %v2127, 5
      %v2967 = vsel %vm1324, %v2965, %v2966
      %v2968 = vrot.slane %v2966, 4
      %v2969 = vrot.slane %v2128, 5
      %v2970 = vsel %vm1324, %v2968, %v2969
      %v2971 = vrot.slane %v2829, 5
      %v2972 = vrot.slane %v2971, 4
      %v2973 = vrot.slane %v2130, 5
      %v2974 = vsel %vm1324, %v2972, %v2973
      %v2975 = vrot.slane %v2973, 4
      %v2976 = vrot.slane %v2131, 5
      %v2977 = vsel %vm1324, %v2975, %v2976
      %v2978 = vrot.slane %v2830, 5
      %v2979 = vrot.slane %v2978, 4
      %v2980 = vrot.slane %v2133, 5
      %v2981 = vsel %vm1324, %v2979, %v2980
      %v2982 = vrot.slane %v2980, 4
      %v2983 = vrot.slane %v2134, 5
      %v2984 = vsel %vm1324, %v2982, %v2983
      %v2985 = vrot.slane %v2831, 5
      %v2986 = vrot.slane %v2985, 4
      %v2987 = vrot.slane %v2136, 5
      %v2988 = vsel %vm1324, %v2986, %v2987
      %v2989 = vrot.slane %v2987, 4
      %v2990 = vrot.slane %v2137, 5
      %v2991 = vsel %vm1324, %v2989, %v2990
      %s2992 = scalar_lea.vmem %s261, 10
      %v2993 = vld [vmem:[%s2992] sm:$0x3]
      %v2994 = vunpack.c.l.b16 %v2883
      %v2995 = vunpack.c.l.b16 %v2886
      %v2996 = vunpack.c.l.b16 %v2890
      %v2997 = vunpack.c.l.b16 %v2893
      %v2998 = vunpack.c.l.b16 %v2897
      %v2999 = vunpack.c.l.b16 %v2900
      %v3000 = vunpack.c.l.b16 %v2904
      %v3001 = vunpack.c.l.b16 %v2907
      %v3002 = vunpack.c.l.b16 %v2911
      %v3003 = vunpack.c.l.b16 %v2914
      %v3004 = vunpack.c.l.b16 %v2918
      %v3005 = vunpack.c.l.b16 %v2921
      %v3006 = vunpack.c.l.b16 %v2925
      %v3007 = vunpack.c.l.b16 %v2928
      %v3008 = vunpack.c.l.b16 %v2932
      %v3009 = vunpack.c.l.b16 %v2935
      %v3010 = vunpack.c.l.b16 %v2939
      %v3011 = vunpack.c.l.b16 %v2942
      %v3012 = vunpack.c.l.b16 %v2946
      %v3013 = vunpack.c.l.b16 %v2949
      %v3014 = vunpack.c.l.b16 %v2953
      %v3015 = vunpack.c.l.b16 %v2956
      %v3016 = vunpack.c.l.b16 %v2960
      %v3017 = vunpack.c.l.b16 %v2963
      %v3018 = vunpack.c.l.b16 %v2967
      %v3019 = vunpack.c.l.b16 %v2970
      %v3020 = vunpack.c.l.b16 %v2974
      %v3021 = vunpack.c.l.b16 %v2977
      %v3022 = vunpack.c.l.b16 %v2981
      %v3023 = vunpack.c.l.b16 %v2984
      %v3024 = vunpack.c.l.b16 %v2988
      %v3025 = vunpack.c.l.b16 %v2991
      %v3026 = vpack.c.b16 %v2995, %v2994
      %v3027 = vpack.c.b16 %v2997, %v2996
      %v3028 = vpack.c.b16 %v2999, %v2998
      %v3029 = vpack.c.b16 %v3001, %v3000
      %v3030 = vpack.c.b16 %v3003, %v3002
      %v3031 = vpack.c.b16 %v3005, %v3004
      %v3032 = vpack.c.b16 %v3007, %v3006
      %v3033 = vpack.c.b16 %v3009, %v3008
      %v3034 = vpack.c.b16 %v3011, %v3010
      %v3035 = vpack.c.b16 %v3013, %v3012
      %v3036 = vpack.c.b16 %v3015, %v3014
      %v3037 = vpack.c.b16 %v3017, %v3016
      %v3038 = vpack.c.b16 %v3019, %v3018
      %v3039 = vpack.c.b16 %v3021, %v3020
      %v3040 = vpack.c.b16 %v3023, %v3022
      %v3041 = vpack.c.b16 %v3025, %v3024
      %v3043 = vsel %vm768, %v3026, 0
      %v3046 = vsel %vm768, %v3027, 0
      %v3049 = vsel %vm768, %v3028, 0
      %v3052 = vsel %vm768, %v3029, 0
      %v3055 = vsel %vm768, %v3030, 0
      %v3058 = vsel %vm768, %v3031, 0
      %v3061 = vsel %vm768, %v3032, 0
      %v3064 = vsel %vm768, %v3033, 0
      %v3067 = vsel %vm768, %v3034, 0
      %v3070 = vsel %vm768, %v3035, 0
      %v3073 = vsel %vm768, %v3036, 0
      %v3076 = vsel %vm768, %v3037, 0
      %v3079 = vsel %vm768, %v3038, 0
      %v3082 = vsel %vm768, %v3039, 0
      %v3085 = vsel %vm768, %v3040, 0
      %v3088 = vsel %vm768, %v3041, 0
      %v3091 = vsel %vm817, %v2993, 0
      %3093 = vmatprep.subr.bf16.mxu0 0
      %3094 = vmatpush1.bf16.msra.mxu0 0
      %3095 = vmatprep.subr.bf16.mxu0 0
      %3096 = vmatpush1.bf16.msra.mxu0 0
      %3097 = vmatprep.subr.bf16.mxu0 0
      %3098 = vmatpush1.bf16.msra.mxu0 0
      %3099 = vmatprep.subr.bf16.mxu0 0
      %3100 = vmatpush1.bf16.msra.mxu0 0
      %3101 = vmatprep.subr.bf16.mxu0 0
      %3102 = vmatpush1.bf16.msra.mxu0 0
      %3103 = vmatprep.subr.bf16.mxu0 0
      %3104 = vmatpush1.bf16.msra.mxu0 0
      %3105 = vmatprep.subr.bf16.mxu0 0
      %3106 = vmatpush1.bf16.msra.mxu0 0
      %3107 = vmatprep.subr.bf16.mxu0 0
      %3108 = vmatpush1.bf16.msra.mxu0 %v3091
      %3109 = vmatprep.subr.bf16.mxu0 0
      %3110 = vmatpush2.bf16.msra.mxu0 0
      %3111 = vmatprep.subr.bf16.mxu0 0
      %3112 = vmatpush2.bf16.msra.mxu0 0
      %3113 = vmatprep.subr.bf16.mxu0 0
      %3114 = vmatpush2.bf16.msra.mxu0 0
      %3115 = vmatprep.subr.bf16.mxu0 0
      %3116 = vmatpush2.bf16.msra.mxu0 0
      %3117 = vmatprep.subr.bf16.mxu0 0
      %3118 = vmatpush2.bf16.msra.mxu0 0
      %3119 = vmatprep.subr.bf16.mxu0 0
      %3120 = vmatpush2.bf16.msra.mxu0 0
      %3121 = vmatprep.subr.bf16.mxu0 0
      %3122 = vmatpush2.bf16.msra.mxu0 0
      %3123 = vmatprep.subr.bf16.mxu0 0
      %3124 = vmatpush2.bf16.msra.mxu0 0
      %3125 = vmatprep.mubr.bf16.mxu0 0
      %3126 = vmatmul.mubr.bf16.gmra.mxu0 %v3043
      %v3127 = vpop.f32.mrf.mxu0
      %v3128 = vadd.f32 0.0, %v3127
      %v3129 = vpop.f32.mrf.mxu0
      %v3130 = vpop.f32.mrf.mxu0
      %v3131 = vadd.f32 0.0, %v3130
      %v3132 = vpop.f32.mrf.mxu0
      %3133 = vmatprep.mubr.bf16.mxu0 0
      %3134 = vmatmul.mubr.bf16.gmra.mxu0 %v3046
      %v3135 = vpop.f32.mrf.mxu0
      %v3136 = vadd.f32 0.0, %v3135
      %v3137 = vpop.f32.mrf.mxu0
      %v3138 = vpop.f32.mrf.mxu0
      %v3139 = vadd.f32 0.0, %v3138
      %v3140 = vpop.f32.mrf.mxu0
      %3141 = vmatprep.mubr.bf16.mxu0 0
      %3142 = vmatmul.mubr.bf16.gmra.mxu0 %v3049
      %v3143 = vpop.f32.mrf.mxu0
      %v3144 = vadd.f32 0.0, %v3143
      %v3145 = vpop.f32.mrf.mxu0
      %v3146 = vpop.f32.mrf.mxu0
      %v3147 = vadd.f32 0.0, %v3146
      %v3148 = vpop.f32.mrf.mxu0
      %3149 = vmatprep.mubr.bf16.mxu0 0
      %3150 = vmatmul.mubr.bf16.gmra.mxu0 %v3052
      %v3151 = vpop.f32.mrf.mxu0
      %v3152 = vadd.f32 0.0, %v3151
      %v3153 = vpop.f32.mrf.mxu0
      %v3154 = vpop.f32.mrf.mxu0
      %v3155 = vadd.f32 0.0, %v3154
      %v3156 = vpop.f32.mrf.mxu0
      %3157 = vmatprep.mubr.bf16.mxu0 0
      %3158 = vmatmul.mubr.bf16.gmra.mxu0 %v3055
      %v3159 = vpop.f32.mrf.mxu0
      %v3160 = vadd.f32 0.0, %v3159
      %v3161 = vpop.f32.mrf.mxu0
      %v3162 = vpop.f32.mrf.mxu0
      %v3163 = vadd.f32 0.0, %v3162
      %v3164 = vpop.f32.mrf.mxu0
      %3165 = vmatprep.mubr.bf16.mxu0 0
      %3166 = vmatmul.mubr.bf16.gmra.mxu0 %v3058
      %v3167 = vpop.f32.mrf.mxu0
      %v3168 = vadd.f32 0.0, %v3167
      %v3169 = vpop.f32.mrf.mxu0
      %v3170 = vpop.f32.mrf.mxu0
      %v3171 = vadd.f32 0.0, %v3170
      %v3172 = vpop.f32.mrf.mxu0
      %3173 = vmatprep.mubr.bf16.mxu0 0
      %3174 = vmatmul.mubr.bf16.gmra.mxu0 %v3061
      %v3175 = vpop.f32.mrf.mxu0
      %v3176 = vadd.f32 0.0, %v3175
      %v3177 = vpop.f32.mrf.mxu0
      %v3178 = vpop.f32.mrf.mxu0
      %v3179 = vadd.f32 0.0, %v3178
      %v3180 = vpop.f32.mrf.mxu0
      %3181 = vmatprep.mubr.bf16.mxu0 0
      %3182 = vmatmul.mubr.bf16.gmra.mxu0 %v3064
      %v3183 = vpop.f32.mrf.mxu0
      %v3184 = vadd.f32 0.0, %v3183
      %v3185 = vpop.f32.mrf.mxu0
      %v3186 = vpop.f32.mrf.mxu0
      %v3187 = vadd.f32 0.0, %v3186
      %v3188 = vpop.f32.mrf.mxu0
      %3189 = vmatprep.mubr.bf16.mxu0 0
      %3190 = vmatmul.mubr.bf16.gmra.mxu0 %v3067
      %v3191 = vpop.f32.mrf.mxu0
      %v3192 = vadd.f32 0.0, %v3191
      %v3193 = vpop.f32.mrf.mxu0
      %v3194 = vpop.f32.mrf.mxu0
      %v3195 = vadd.f32 0.0, %v3194
      %v3196 = vpop.f32.mrf.mxu0
      %3197 = vmatprep.mubr.bf16.mxu0 0
      %3198 = vmatmul.mubr.bf16.gmra.mxu0 %v3070
      %v3199 = vpop.f32.mrf.mxu0
      %v3200 = vadd.f32 0.0, %v3199
      %v3201 = vpop.f32.mrf.mxu0
      %v3202 = vpop.f32.mrf.mxu0
      %v3203 = vadd.f32 0.0, %v3202
      %v3204 = vpop.f32.mrf.mxu0
      %3205 = vmatprep.mubr.bf16.mxu0 0
      %3206 = vmatmul.mubr.bf16.gmra.mxu0 %v3073
      %v3207 = vpop.f32.mrf.mxu0
      %v3208 = vadd.f32 0.0, %v3207
      %v3209 = vpop.f32.mrf.mxu0
      %v3210 = vpop.f32.mrf.mxu0
      %v3211 = vadd.f32 0.0, %v3210
      %v3212 = vpop.f32.mrf.mxu0
      %3213 = vmatprep.mubr.bf16.mxu0 0
      %3214 = vmatmul.mubr.bf16.gmra.mxu0 %v3076
      %v3215 = vpop.f32.mrf.mxu0
      %v3216 = vadd.f32 0.0, %v3215
      %v3217 = vpop.f32.mrf.mxu0
      %v3218 = vpop.f32.mrf.mxu0
      %v3219 = vadd.f32 0.0, %v3218
      %v3220 = vpop.f32.mrf.mxu0
      %3221 = vmatprep.mubr.bf16.mxu0 0
      %3222 = vmatmul.mubr.bf16.gmra.mxu0 %v3079
      %v3223 = vpop.f32.mrf.mxu0
      %v3224 = vadd.f32 0.0, %v3223
      %v3225 = vpop.f32.mrf.mxu0
      %v3226 = vpop.f32.mrf.mxu0
      %v3227 = vadd.f32 0.0, %v3226
      %v3228 = vpop.f32.mrf.mxu0
      %3229 = vmatprep.mubr.bf16.mxu0 0
      %3230 = vmatmul.mubr.bf16.gmra.mxu0 %v3082
      %v3231 = vpop.f32.mrf.mxu0
      %v3232 = vadd.f32 0.0, %v3231
      %v3233 = vpop.f32.mrf.mxu0
      %v3234 = vpop.f32.mrf.mxu0
      %v3235 = vadd.f32 0.0, %v3234
      %v3236 = vpop.f32.mrf.mxu0
      %3237 = vmatprep.mubr.bf16.mxu0 0
      %3238 = vmatmul.mubr.bf16.gmra.mxu0 %v3085
      %v3239 = vpop.f32.mrf.mxu0
      %v3240 = vadd.f32 0.0, %v3239
      %v3241 = vpop.f32.mrf.mxu0
      %v3242 = vpop.f32.mrf.mxu0
      %v3243 = vadd.f32 0.0, %v3242
      %v3244 = vpop.f32.mrf.mxu0
      %3245 = vmatprep.mubr.bf16.mxu0 0
      %3246 = vmatmul.mubr.bf16.gmra.mxu0 %v3088
      %v3247 = vpop.f32.mrf.mxu0
      %v3248 = vadd.f32 0.0, %v3247
      %v3249 = vpop.f32.mrf.mxu0
      %v3250 = vpop.f32.mrf.mxu0
      %v3251 = vadd.f32 0.0, %v3250
      %v3252 = vpop.f32.mrf.mxu0
      %3253 = vdwg.mxu0
      %v3254 = vadd.f32 %v2784, %v3128
      %v3255 = vadd.f32 %v2785, %v3131
      %v3256 = vadd.f32 %v2786, %v3136
      %v3257 = vadd.f32 %v2787, %v3139
      %v3258 = vadd.f32 %v2788, %v3144
      %v3259 = vadd.f32 %v2789, %v3147
      %v3260 = vadd.f32 %v2790, %v3152
      %v3261 = vadd.f32 %v2791, %v3155
      %v3262 = vadd.f32 %v2792, %v3160
      %v3263 = vadd.f32 %v2793, %v3163
      %v3264 = vadd.f32 %v2794, %v3168
      %v3265 = vadd.f32 %v2795, %v3171
      %v3266 = vadd.f32 %v2796, %v3176
      %v3267 = vadd.f32 %v2797, %v3179
      %v3268 = vadd.f32 %v2798, %v3184
      %v3269 = vadd.f32 %v2799, %v3187
      %v3270 = vadd.f32 %v2800, %v3192
      %v3271 = vadd.f32 %v2801, %v3195
      %v3272 = vadd.f32 %v2802, %v3200
      %v3273 = vadd.f32 %v2803, %v3203
      %v3274 = vadd.f32 %v2804, %v3208
      %v3275 = vadd.f32 %v2805, %v3211
      %v3276 = vadd.f32 %v2806, %v3216
      %v3277 = vadd.f32 %v2807, %v3219
      %v3278 = vadd.f32 %v2808, %v3224
      %v3279 = vadd.f32 %v2809, %v3227
      %v3280 = vadd.f32 %v2810, %v3232
      %v3281 = vadd.f32 %v2811, %v3235
      %v3282 = vadd.f32 %v2812, %v3240
      %v3283 = vadd.f32 %v2813, %v3243
      %v3284 = vadd.f32 %v2814, %v3248
      %v3285 = vadd.f32 %v2815, %v3251
      %s3286 = scalar_lea.vmem %s253, 24
      %v3287 = vld [vmem:[%s3286] sm:$0xf]
      %v3288 = vld [vmem:[%s3286 + $0x4] sm:$0xf]
      %v3289 = vld [vmem:[%s3286 + $0xc] sm:$0xf]
      %v3290 = vld [vmem:[%s3286 + $0x10] sm:$0xf]
      %v3291 = vld [vmem:[%s3286 + $0x18] sm:$0xf]
      %v3292 = vld [vmem:[%s3286 + $0x1c] sm:$0xf]
      %v3293 = vld [vmem:[%s3286 + $0x24] sm:$0xf]
      %v3294 = vld [vmem:[%s3286 + $0x28] sm:$0xf]
      %v3295 = vld [vmem:[%s3286 + $0x30] sm:$0xf]
      %v3296 = vld [vmem:[%s3286 + $0x34] sm:$0xf]
      %v3297 = vld [vmem:[%s3286 + $0x3c] sm:$0xf]
      %v3298 = vld [vmem:[%s3286 + $0x40] sm:$0xf]
      %v3299 = vld [vmem:[%s3286 + $0x48] sm:$0xf]
      %v3300 = vld [vmem:[%s3286 + $0x4c] sm:$0xf]
      %v3301 = vld [vmem:[%s3286 + $0x54] sm:$0xf]
      %v3302 = vld [vmem:[%s3286 + $0x58] sm:$0xf]
      %v3303 = vld [vmem:[%s3286 + $0x60] sm:$0xf]
      %v3304 = vld [vmem:[%s3286 + $0x64] sm:$0xf]
      %v3305 = vld [vmem:[%s3286 + $0x6c] sm:$0xf]
      %v3306 = vld [vmem:[%s3286 + $0x70] sm:$0xf]
      %v3307 = vld [vmem:[%s3286 + $0x78] sm:$0xf]
      %v3308 = vld [vmem:[%s3286 + $0x7c] sm:$0xf]
      %v3309 = vld [vmem:[%s3286 + $0x84] sm:$0xf]
      %v3310 = vld [vmem:[%s3286 + $0x88] sm:$0xf]
      %v3311 = vld [vmem:[%s3286 + $0x90] sm:$0xf]
      %v3312 = vld [vmem:[%s3286 + $0x94] sm:$0xf]
      %v3313 = vld [vmem:[%s3286 + $0x9c] sm:$0xf]
      %v3314 = vld [vmem:[%s3286 + $0xa0] sm:$0xf]
      %v3315 = vld [vmem:[%s3286 + $0xa8] sm:$0xf]
      %v3316 = vld [vmem:[%s3286 + $0xac] sm:$0xf]
      %v3317 = vld [vmem:[%s3286 + $0xb4] sm:$0xf]
      %v3318 = vld [vmem:[%s3286 + $0xb8] sm:$0xf]
      %s3319 = scalar_lea.vmem %s261, 12
      %v3320 = vld [vmem:[%s3319] sm:$0x3]
      %v3353 = vunpack.c.l.b16 %v3287
      %v3354 = vunpack.c.l.b16 %v3288
      %v3355 = vunpack.c.l.b16 %v3289
      %v3356 = vunpack.c.l.b16 %v3290
      %v3357 = vunpack.c.l.b16 %v3291
      %v3358 = vunpack.c.l.b16 %v3292
      %v3359 = vunpack.c.l.b16 %v3293
      %v3360 = vunpack.c.l.b16 %v3294
      %v3361 = vunpack.c.l.b16 %v3295
      %v3362 = vunpack.c.l.b16 %v3296
      %v3363 = vunpack.c.l.b16 %v3297
      %v3364 = vunpack.c.l.b16 %v3298
      %v3365 = vunpack.c.l.b16 %v3299
      %v3366 = vunpack.c.l.b16 %v3300
      %v3367 = vunpack.c.l.b16 %v3301
      %v3368 = vunpack.c.l.b16 %v3302
      %v3369 = vunpack.c.l.b16 %v3303
      %v3370 = vunpack.c.l.b16 %v3304
      %v3371 = vunpack.c.l.b16 %v3305
      %v3372 = vunpack.c.l.b16 %v3306
      %v3373 = vunpack.c.l.b16 %v3307
      %v3374 = vunpack.c.l.b16 %v3308
      %v3375 = vunpack.c.l.b16 %v3309
      %v3376 = vunpack.c.l.b16 %v3310
      %v3377 = vunpack.c.l.b16 %v3311
      %v3378 = vunpack.c.l.b16 %v3312
      %v3379 = vunpack.c.l.b16 %v3313
      %v3380 = vunpack.c.l.b16 %v3314
      %v3381 = vunpack.c.l.b16 %v3315
      %v3382 = vunpack.c.l.b16 %v3316
      %v3383 = vunpack.c.l.b16 %v3317
      %v3384 = vunpack.c.l.b16 %v3318
      %v3385 = vpack.c.b16 %v3354, %v3353
      %v3386 = vpack.c.b16 %v3356, %v3355
      %v3387 = vpack.c.b16 %v3358, %v3357
      %v3388 = vpack.c.b16 %v3360, %v3359
      %v3389 = vpack.c.b16 %v3362, %v3361
      %v3390 = vpack.c.b16 %v3364, %v3363
      %v3391 = vpack.c.b16 %v3366, %v3365
      %v3392 = vpack.c.b16 %v3368, %v3367
      %v3393 = vpack.c.b16 %v3370, %v3369
      %v3394 = vpack.c.b16 %v3372, %v3371
      %v3395 = vpack.c.b16 %v3374, %v3373
      %v3396 = vpack.c.b16 %v3376, %v3375
      %v3397 = vpack.c.b16 %v3378, %v3377
      %v3398 = vpack.c.b16 %v3380, %v3379
      %v3399 = vpack.c.b16 %v3382, %v3381
      %v3400 = vpack.c.b16 %v3384, %v3383
      %v3402 = vsel %vm768, %v3385, 0
      %v3405 = vsel %vm768, %v3386, 0
      %v3408 = vsel %vm768, %v3387, 0
      %v3411 = vsel %vm768, %v3388, 0
      %v3414 = vsel %vm768, %v3389, 0
      %v3417 = vsel %vm768, %v3390, 0
      %v3420 = vsel %vm768, %v3391, 0
      %v3423 = vsel %vm768, %v3392, 0
      %v3426 = vsel %vm768, %v3393, 0
      %v3429 = vsel %vm768, %v3394, 0
      %v3432 = vsel %vm768, %v3395, 0
      %v3435 = vsel %vm768, %v3396, 0
      %v3438 = vsel %vm768, %v3397, 0
      %v3441 = vsel %vm768, %v3398, 0
      %v3444 = vsel %vm768, %v3399, 0
      %v3447 = vsel %vm768, %v3400, 0
      %v3450 = vsel %vm817, %v3320, 0
      %3452 = vmatprep.subr.bf16.mxu0 0
      %3453 = vmatpush1.bf16.msra.mxu0 0
      %3454 = vmatprep.subr.bf16.mxu0 0
      %3455 = vmatpush1.bf16.msra.mxu0 0
      %3456 = vmatprep.subr.bf16.mxu0 0
      %3457 = vmatpush1.bf16.msra.mxu0 0
      %3458 = vmatprep.subr.bf16.mxu0 0
      %3459 = vmatpush1.bf16.msra.mxu0 0
      %3460 = vmatprep.subr.bf16.mxu0 0
      %3461 = vmatpush1.bf16.msra.mxu0 0
      %3462 = vmatprep.subr.bf16.mxu0 0
      %3463 = vmatpush1.bf16.msra.mxu0 0
      %3464 = vmatprep.subr.bf16.mxu0 0
      %3465 = vmatpush1.bf16.msra.mxu0 0
      %3466 = vmatprep.subr.bf16.mxu0 0
      %3467 = vmatpush1.bf16.msra.mxu0 %v3450
      %3468 = vmatprep.subr.bf16.mxu0 0
      %3469 = vmatpush2.bf16.msra.mxu0 0
      %3470 = vmatprep.subr.bf16.mxu0 0
      %3471 = vmatpush2.bf16.msra.mxu0 0
      %3472 = vmatprep.subr.bf16.mxu0 0
      %3473 = vmatpush2.bf16.msra.mxu0 0
      %3474 = vmatprep.subr.bf16.mxu0 0
      %3475 = vmatpush2.bf16.msra.mxu0 0
      %3476 = vmatprep.subr.bf16.mxu0 0
      %3477 = vmatpush2.bf16.msra.mxu0 0
      %3478 = vmatprep.subr.bf16.mxu0 0
      %3479 = vmatpush2.bf16.msra.mxu0 0
      %3480 = vmatprep.subr.bf16.mxu0 0
      %3481 = vmatpush2.bf16.msra.mxu0 0
      %3482 = vmatprep.subr.bf16.mxu0 0
      %3483 = vmatpush2.bf16.msra.mxu0 0
      %3484 = vmatprep.mubr.bf16.mxu0 0
      %3485 = vmatmul.mubr.bf16.gmra.mxu0 %v3402
      %v3486 = vpop.f32.mrf.mxu0
      %v3487 = vadd.f32 0.0, %v3486
      %v3488 = vpop.f32.mrf.mxu0
      %v3489 = vpop.f32.mrf.mxu0
      %v3490 = vadd.f32 0.0, %v3489
      %v3491 = vpop.f32.mrf.mxu0
      %3492 = vmatprep.mubr.bf16.mxu0 0
      %3493 = vmatmul.mubr.bf16.gmra.mxu0 %v3405
      %v3494 = vpop.f32.mrf.mxu0
      %v3495 = vadd.f32 0.0, %v3494
      %v3496 = vpop.f32.mrf.mxu0
      %v3497 = vpop.f32.mrf.mxu0
      %v3498 = vadd.f32 0.0, %v3497
      %v3499 = vpop.f32.mrf.mxu0
      %3500 = vmatprep.mubr.bf16.mxu0 0
      %3501 = vmatmul.mubr.bf16.gmra.mxu0 %v3408
      %v3502 = vpop.f32.mrf.mxu0
      %v3503 = vadd.f32 0.0, %v3502
      %v3504 = vpop.f32.mrf.mxu0
      %v3505 = vpop.f32.mrf.mxu0
      %v3506 = vadd.f32 0.0, %v3505
      %v3507 = vpop.f32.mrf.mxu0
      %3508 = vmatprep.mubr.bf16.mxu0 0
      %3509 = vmatmul.mubr.bf16.gmra.mxu0 %v3411
      %v3510 = vpop.f32.mrf.mxu0
      %v3511 = vadd.f32 0.0, %v3510
      %v3512 = vpop.f32.mrf.mxu0
      %v3513 = vpop.f32.mrf.mxu0
      %v3514 = vadd.f32 0.0, %v3513
      %v3515 = vpop.f32.mrf.mxu0
      %3516 = vmatprep.mubr.bf16.mxu0 0
      %3517 = vmatmul.mubr.bf16.gmra.mxu0 %v3414
      %v3518 = vpop.f32.mrf.mxu0
      %v3519 = vadd.f32 0.0, %v3518
      %v3520 = vpop.f32.mrf.mxu0
      %v3521 = vpop.f32.mrf.mxu0
      %v3522 = vadd.f32 0.0, %v3521
      %v3523 = vpop.f32.mrf.mxu0
      %3524 = vmatprep.mubr.bf16.mxu0 0
      %3525 = vmatmul.mubr.bf16.gmra.mxu0 %v3417
      %v3526 = vpop.f32.mrf.mxu0
      %v3527 = vadd.f32 0.0, %v3526
      %v3528 = vpop.f32.mrf.mxu0
      %v3529 = vpop.f32.mrf.mxu0
      %v3530 = vadd.f32 0.0, %v3529
      %v3531 = vpop.f32.mrf.mxu0
      %3532 = vmatprep.mubr.bf16.mxu0 0
      %3533 = vmatmul.mubr.bf16.gmra.mxu0 %v3420
      %v3534 = vpop.f32.mrf.mxu0
      %v3535 = vadd.f32 0.0, %v3534
      %v3536 = vpop.f32.mrf.mxu0
      %v3537 = vpop.f32.mrf.mxu0
      %v3538 = vadd.f32 0.0, %v3537
      %v3539 = vpop.f32.mrf.mxu0
      %3540 = vmatprep.mubr.bf16.mxu0 0
      %3541 = vmatmul.mubr.bf16.gmra.mxu0 %v3423
      %v3542 = vpop.f32.mrf.mxu0
      %v3543 = vadd.f32 0.0, %v3542
      %v3544 = vpop.f32.mrf.mxu0
      %v3545 = vpop.f32.mrf.mxu0
      %v3546 = vadd.f32 0.0, %v3545
      %v3547 = vpop.f32.mrf.mxu0
      %3548 = vmatprep.mubr.bf16.mxu0 0
      %3549 = vmatmul.mubr.bf16.gmra.mxu0 %v3426
      %v3550 = vpop.f32.mrf.mxu0
      %v3551 = vadd.f32 0.0, %v3550
      %v3552 = vpop.f32.mrf.mxu0
      %v3553 = vpop.f32.mrf.mxu0
      %v3554 = vadd.f32 0.0, %v3553
      %v3555 = vpop.f32.mrf.mxu0
      %3556 = vmatprep.mubr.bf16.mxu0 0
      %3557 = vmatmul.mubr.bf16.gmra.mxu0 %v3429
      %v3558 = vpop.f32.mrf.mxu0
      %v3559 = vadd.f32 0.0, %v3558
      %v3560 = vpop.f32.mrf.mxu0
      %v3561 = vpop.f32.mrf.mxu0
      %v3562 = vadd.f32 0.0, %v3561
      %v3563 = vpop.f32.mrf.mxu0
      %3564 = vmatprep.mubr.bf16.mxu0 0
      %3565 = vmatmul.mubr.bf16.gmra.mxu0 %v3432
      %v3566 = vpop.f32.mrf.mxu0
      %v3567 = vadd.f32 0.0, %v3566
      %v3568 = vpop.f32.mrf.mxu0
      %v3569 = vpop.f32.mrf.mxu0
      %v3570 = vadd.f32 0.0, %v3569
      %v3571 = vpop.f32.mrf.mxu0
      %3572 = vmatprep.mubr.bf16.mxu0 0
      %3573 = vmatmul.mubr.bf16.gmra.mxu0 %v3435
      %v3574 = vpop.f32.mrf.mxu0
      %v3575 = vadd.f32 0.0, %v3574
      %v3576 = vpop.f32.mrf.mxu0
      %v3577 = vpop.f32.mrf.mxu0
      %v3578 = vadd.f32 0.0, %v3577
      %v3579 = vpop.f32.mrf.mxu0
      %3580 = vmatprep.mubr.bf16.mxu0 0
      %3581 = vmatmul.mubr.bf16.gmra.mxu0 %v3438
      %v3582 = vpop.f32.mrf.mxu0
      %v3583 = vadd.f32 0.0, %v3582
      %v3584 = vpop.f32.mrf.mxu0
      %v3585 = vpop.f32.mrf.mxu0
      %v3586 = vadd.f32 0.0, %v3585
      %v3587 = vpop.f32.mrf.mxu0
      %3588 = vmatprep.mubr.bf16.mxu0 0
      %3589 = vmatmul.mubr.bf16.gmra.mxu0 %v3441
      %v3590 = vpop.f32.mrf.mxu0
      %v3591 = vadd.f32 0.0, %v3590
      %v3592 = vpop.f32.mrf.mxu0
      %v3593 = vpop.f32.mrf.mxu0
      %v3594 = vadd.f32 0.0, %v3593
      %v3595 = vpop.f32.mrf.mxu0
      %3596 = vmatprep.mubr.bf16.mxu0 0
      %3597 = vmatmul.mubr.bf16.gmra.mxu0 %v3444
      %v3598 = vpop.f32.mrf.mxu0
      %v3599 = vadd.f32 0.0, %v3598
      %v3600 = vpop.f32.mrf.mxu0
      %v3601 = vpop.f32.mrf.mxu0
      %v3602 = vadd.f32 0.0, %v3601
      %v3603 = vpop.f32.mrf.mxu0
      %3604 = vmatprep.mubr.bf16.mxu0 0
      %3605 = vmatmul.mubr.bf16.gmra.mxu0 %v3447
      %v3606 = vpop.f32.mrf.mxu0
      %v3607 = vadd.f32 0.0, %v3606
      %v3608 = vpop.f32.mrf.mxu0
      %v3609 = vpop.f32.mrf.mxu0
      %v3610 = vadd.f32 0.0, %v3609
      %v3611 = vpop.f32.mrf.mxu0
      %3612 = vdwg.mxu0
      %v3613 = vadd.f32 %v3254, %v3487
      %v3614 = vadd.f32 %v3255, %v3490
      %v3615 = vadd.f32 %v3256, %v3495
      %v3616 = vadd.f32 %v3257, %v3498
      %v3617 = vadd.f32 %v3258, %v3503
      %v3618 = vadd.f32 %v3259, %v3506
      %v3619 = vadd.f32 %v3260, %v3511
      %v3620 = vadd.f32 %v3261, %v3514
      %v3621 = vadd.f32 %v3262, %v3519
      %v3622 = vadd.f32 %v3263, %v3522
      %v3623 = vadd.f32 %v3264, %v3527
      %v3624 = vadd.f32 %v3265, %v3530
      %v3625 = vadd.f32 %v3266, %v3535
      %v3626 = vadd.f32 %v3267, %v3538
      %v3627 = vadd.f32 %v3268, %v3543
      %v3628 = vadd.f32 %v3269, %v3546
      %v3629 = vadd.f32 %v3270, %v3551
      %v3630 = vadd.f32 %v3271, %v3554
      %v3631 = vadd.f32 %v3272, %v3559
      %v3632 = vadd.f32 %v3273, %v3562
      %v3633 = vadd.f32 %v3274, %v3567
      %v3634 = vadd.f32 %v3275, %v3570
      %v3635 = vadd.f32 %v3276, %v3575
      %v3636 = vadd.f32 %v3277, %v3578
      %v3637 = vadd.f32 %v3278, %v3583
      %v3638 = vadd.f32 %v3279, %v3586
      %v3639 = vadd.f32 %v3280, %v3591
      %v3640 = vadd.f32 %v3281, %v3594
      %v3641 = vadd.f32 %v3282, %v3599
      %v3642 = vadd.f32 %v3283, %v3602
      %v3643 = vadd.f32 %v3284, %v3607
      %v3644 = vadd.f32 %v3285, %v3610
      %v3645 = vld [vmem:[%s3286] sm:$0xf]
      %v3646 = vld [vmem:[%s3286 + $0x4] sm:$0xf]
      %v3647 = vld [vmem:[%s3286 + $0x8] sm:$0x1]
      %v3648 = vld [vmem:[%s3286 + $0xc] sm:$0xf]
      %v3649 = vld [vmem:[%s3286 + $0x10] sm:$0xf]
      %v3650 = vld [vmem:[%s3286 + $0x14] sm:$0x1]
      %v3651 = vld [vmem:[%s3286 + $0x18] sm:$0xf]
      %v3652 = vld [vmem:[%s3286 + $0x1c] sm:$0xf]
      %v3653 = vld [vmem:[%s3286 + $0x20] sm:$0x1]
      %v3654 = vld [vmem:[%s3286 + $0x24] sm:$0xf]
      %v3655 = vld [vmem:[%s3286 + $0x28] sm:$0xf]
      %v3656 = vld [vmem:[%s3286 + $0x2c] sm:$0x1]
      %v3657 = vld [vmem:[%s3286 + $0x30] sm:$0xf]
      %v3658 = vld [vmem:[%s3286 + $0x34] sm:$0xf]
      %v3659 = vld [vmem:[%s3286 + $0x38] sm:$0x1]
      %v3660 = vld [vmem:[%s3286 + $0x3c] sm:$0xf]
      %v3661 = vld [vmem:[%s3286 + $0x40] sm:$0xf]
      %v3662 = vld [vmem:[%s3286 + $0x44] sm:$0x1]
      %v3663 = vld [vmem:[%s3286 + $0x48] sm:$0xf]
      %v3664 = vld [vmem:[%s3286 + $0x4c] sm:$0xf]
      %v3665 = vld [vmem:[%s3286 + $0x50] sm:$0x1]
      %v3666 = vld [vmem:[%s3286 + $0x54] sm:$0xf]
      %v3667 = vld [vmem:[%s3286 + $0x58] sm:$0xf]
      %v3668 = vld [vmem:[%s3286 + $0x5c] sm:$0x1]
      %v3669 = vld [vmem:[%s3286 + $0x60] sm:$0xf]
      %v3670 = vld [vmem:[%s3286 + $0x64] sm:$0xf]
      %v3671 = vld [vmem:[%s3286 + $0x68] sm:$0x1]
      %v3672 = vld [vmem:[%s3286 + $0x6c] sm:$0xf]
      %v3673 = vld [vmem:[%s3286 + $0x70] sm:$0xf]
      %v3674 = vld [vmem:[%s3286 + $0x74] sm:$0x1]
      %v3675 = vld [vmem:[%s3286 + $0x78] sm:$0xf]
      %v3676 = vld [vmem:[%s3286 + $0x7c] sm:$0xf]
      %v3677 = vld [vmem:[%s3286 + $0x80] sm:$0x1]
      %v3678 = vld [vmem:[%s3286 + $0x84] sm:$0xf]
      %v3679 = vld [vmem:[%s3286 + $0x88] sm:$0xf]
      %v3680 = vld [vmem:[%s3286 + $0x8c] sm:$0x1]
      %v3681 = vld [vmem:[%s3286 + $0x90] sm:$0xf]
      %v3682 = vld [vmem:[%s3286 + $0x94] sm:$0xf]
      %v3683 = vld [vmem:[%s3286 + $0x98] sm:$0x1]
      %v3684 = vld [vmem:[%s3286 + $0x9c] sm:$0xf]
      %v3685 = vld [vmem:[%s3286 + $0xa0] sm:$0xf]
      %v3686 = vld [vmem:[%s3286 + $0xa4] sm:$0x1]
      %v3687 = vld [vmem:[%s3286 + $0xa8] sm:$0xf]
      %v3688 = vld [vmem:[%s3286 + $0xac] sm:$0xf]
      %v3689 = vld [vmem:[%s3286 + $0xb0] sm:$0x1]
      %v3690 = vld [vmem:[%s3286 + $0xb4] sm:$0xf]
      %v3691 = vld [vmem:[%s3286 + $0xb8] sm:$0xf]
      %v3692 = vld [vmem:[%s3286 + $0xbc] sm:$0x1]
      %v3694 = vshrl.u32 %v3645, 16
      %v3696 = vrot.slane %v3694, 4
      %v3697 = vshll.u32 %v3645, 16
      %v3699 = vrot.slane %v3697, 5
      %v3700 = vor.u32 %v3696, %v3699
      %v3701 = vrot.slane %v3700, 4
      %v3703 = vshll.u32 %v3646, 16
      %v3705 = vrot.slane %v3703, 5
      %v3706 = vsel %vm333, %v3701, %v3705
      %v3707 = vshrl.u32 %v3646, 16
      %v3709 = vrot.slane %v3707, 4
      %v3710 = vor.u32 %v3709, %v3705
      %v3711 = vrot.slane %v3710, 4
      %v3713 = vshll.u32 %v3647, 16
      %v3715 = vrot.slane %v3713, 5
      %v3716 = vsel %vm333, %v3711, %v3715
      %v3718 = vshrl.u32 %v3648, 16
      %v3720 = vrot.slane %v3718, 4
      %v3721 = vshll.u32 %v3648, 16
      %v3723 = vrot.slane %v3721, 5
      %v3724 = vor.u32 %v3720, %v3723
      %v3725 = vrot.slane %v3724, 4
      %v3727 = vshll.u32 %v3649, 16
      %v3729 = vrot.slane %v3727, 5
      %v3730 = vsel %vm333, %v3725, %v3729
      %v3731 = vshrl.u32 %v3649, 16
      %v3733 = vrot.slane %v3731, 4
      %v3734 = vor.u32 %v3733, %v3729
      %v3735 = vrot.slane %v3734, 4
      %v3737 = vshll.u32 %v3650, 16
      %v3739 = vrot.slane %v3737, 5
      %v3740 = vsel %vm333, %v3735, %v3739
      %v3742 = vshrl.u32 %v3651, 16
      %v3744 = vrot.slane %v3742, 4
      %v3745 = vshll.u32 %v3651, 16
      %v3747 = vrot.slane %v3745, 5
      %v3748 = vor.u32 %v3744, %v3747
      %v3749 = vrot.slane %v3748, 4
      %v3751 = vshll.u32 %v3652, 16
      %v3753 = vrot.slane %v3751, 5
      %v3754 = vsel %vm333, %v3749, %v3753
      %v3755 = vshrl.u32 %v3652, 16
      %v3757 = vrot.slane %v3755, 4
      %v3758 = vor.u32 %v3757, %v3753
      %v3759 = vrot.slane %v3758, 4
      %v3761 = vshll.u32 %v3653, 16
      %v3763 = vrot.slane %v3761, 5
      %v3764 = vsel %vm333, %v3759, %v3763
      %v3766 = vshrl.u32 %v3654, 16
      %v3768 = vrot.slane %v3766, 4
      %v3769 = vshll.u32 %v3654, 16
      %v3771 = vrot.slane %v3769, 5
      %v3772 = vor.u32 %v3768, %v3771
      %v3773 = vrot.slane %v3772, 4
      %v3775 = vshll.u32 %v3655, 16
      %v3777 = vrot.slane %v3775, 5
      %v3778 = vsel %vm333, %v3773, %v3777
      %v3779 = vshrl.u32 %v3655, 16
      %v3781 = vrot.slane %v3779, 4
      %v3782 = vor.u32 %v3781, %v3777
      %v3783 = vrot.slane %v3782, 4
      %v3785 = vshll.u32 %v3656, 16
      %v3787 = vrot.slane %v3785, 5
      %v3788 = vsel %vm333, %v3783, %v3787
      %v3790 = vshrl.u32 %v3657, 16
      %v3792 = vrot.slane %v3790, 4
      %v3793 = vshll.u32 %v3657, 16
      %v3795 = vrot.slane %v3793, 5
      %v3796 = vor.u32 %v3792, %v3795
      %v3797 = vrot.slane %v3796, 4
      %v3799 = vshll.u32 %v3658, 16
      %v3801 = vrot.slane %v3799, 5
      %v3802 = vsel %vm333, %v3797, %v3801
      %v3803 = vshrl.u32 %v3658, 16
      %v3805 = vrot.slane %v3803, 4
      %v3806 = vor.u32 %v3805, %v3801
      %v3807 = vrot.slane %v3806, 4
      %v3809 = vshll.u32 %v3659, 16
      %v3811 = vrot.slane %v3809, 5
      %v3812 = vsel %vm333, %v3807, %v3811
      %v3814 = vshrl.u32 %v3660, 16
      %v3816 = vrot.slane %v3814, 4
      %v3817 = vshll.u32 %v3660, 16
      %v3819 = vrot.slane %v3817, 5
      %v3820 = vor.u32 %v3816, %v3819
      %v3821 = vrot.slane %v3820, 4
      %v3823 = vshll.u32 %v3661, 16
      %v3825 = vrot.slane %v3823, 5
      %v3826 = vsel %vm333, %v3821, %v3825
      %v3827 = vshrl.u32 %v3661, 16
      %v3829 = vrot.slane %v3827, 4
      %v3830 = vor.u32 %v3829, %v3825
      %v3831 = vrot.slane %v3830, 4
      %v3833 = vshll.u32 %v3662, 16
      %v3835 = vrot.slane %v3833, 5
      %v3836 = vsel %vm333, %v3831, %v3835
      %v3838 = vshrl.u32 %v3663, 16
      %v3840 = vrot.slane %v3838, 4
      %v3841 = vshll.u32 %v3663, 16
      %v3843 = vrot.slane %v3841, 5
      %v3844 = vor.u32 %v3840, %v3843
      %v3845 = vrot.slane %v3844, 4
      %v3847 = vshll.u32 %v3664, 16
      %v3849 = vrot.slane %v3847, 5
      %v3850 = vsel %vm333, %v3845, %v3849
      %v3851 = vshrl.u32 %v3664, 16
      %v3853 = vrot.slane %v3851, 4
      %v3854 = vor.u32 %v3853, %v3849
      %v3855 = vrot.slane %v3854, 4
      %v3857 = vshll.u32 %v3665, 16
      %v3859 = vrot.slane %v3857, 5
      %v3860 = vsel %vm333, %v3855, %v3859
      %v3862 = vshrl.u32 %v3666, 16
      %v3864 = vrot.slane %v3862, 4
      %v3865 = vshll.u32 %v3666, 16
      %v3867 = vrot.slane %v3865, 5
      %v3868 = vor.u32 %v3864, %v3867
      %v3869 = vrot.slane %v3868, 4
      %v3871 = vshll.u32 %v3667, 16
      %v3873 = vrot.slane %v3871, 5
      %v3874 = vsel %vm333, %v3869, %v3873
      %v3875 = vshrl.u32 %v3667, 16
      %v3877 = vrot.slane %v3875, 4
      %v3878 = vor.u32 %v3877, %v3873
      %v3879 = vrot.slane %v3878, 4
      %v3881 = vshll.u32 %v3668, 16
      %v3883 = vrot.slane %v3881, 5
      %v3884 = vsel %vm333, %v3879, %v3883
      %v3886 = vshrl.u32 %v3669, 16
      %v3888 = vrot.slane %v3886, 4
      %v3889 = vshll.u32 %v3669, 16
      %v3891 = vrot.slane %v3889, 5
      %v3892 = vor.u32 %v3888, %v3891
      %v3893 = vrot.slane %v3892, 4
      %v3895 = vshll.u32 %v3670, 16
      %v3897 = vrot.slane %v3895, 5
      %v3898 = vsel %vm333, %v3893, %v3897
      %v3899 = vshrl.u32 %v3670, 16
      %v3901 = vrot.slane %v3899, 4
      %v3902 = vor.u32 %v3901, %v3897
      %v3903 = vrot.slane %v3902, 4
      %v3905 = vshll.u32 %v3671, 16
      %v3907 = vrot.slane %v3905, 5
      %v3908 = vsel %vm333, %v3903, %v3907
      %v3910 = vshrl.u32 %v3672, 16
      %v3912 = vrot.slane %v3910, 4
      %v3913 = vshll.u32 %v3672, 16
      %v3915 = vrot.slane %v3913, 5
      %v3916 = vor.u32 %v3912, %v3915
      %v3917 = vrot.slane %v3916, 4
      %v3919 = vshll.u32 %v3673, 16
      %v3921 = vrot.slane %v3919, 5
      %v3922 = vsel %vm333, %v3917, %v3921
      %v3923 = vshrl.u32 %v3673, 16
      %v3925 = vrot.slane %v3923, 4
      %v3926 = vor.u32 %v3925, %v3921
      %v3927 = vrot.slane %v3926, 4
      %v3929 = vshll.u32 %v3674, 16
      %v3931 = vrot.slane %v3929, 5
      %v3932 = vsel %vm333, %v3927, %v3931
      %v3934 = vshrl.u32 %v3675, 16
      %v3936 = vrot.slane %v3934, 4
      %v3937 = vshll.u32 %v3675, 16
      %v3939 = vrot.slane %v3937, 5
      %v3940 = vor.u32 %v3936, %v3939
      %v3941 = vrot.slane %v3940, 4
      %v3943 = vshll.u32 %v3676, 16
      %v3945 = vrot.slane %v3943, 5
      %v3946 = vsel %vm333, %v3941, %v3945
      %v3947 = vshrl.u32 %v3676, 16
      %v3949 = vrot.slane %v3947, 4
      %v3950 = vor.u32 %v3949, %v3945
      %v3951 = vrot.slane %v3950, 4
      %v3953 = vshll.u32 %v3677, 16
      %v3955 = vrot.slane %v3953, 5
      %v3956 = vsel %vm333, %v3951, %v3955
      %v3958 = vshrl.u32 %v3678, 16
      %v3960 = vrot.slane %v3958, 4
      %v3961 = vshll.u32 %v3678, 16
      %v3963 = vrot.slane %v3961, 5
      %v3964 = vor.u32 %v3960, %v3963
      %v3965 = vrot.slane %v3964, 4
      %v3967 = vshll.u32 %v3679, 16
      %v3969 = vrot.slane %v3967, 5
      %v3970 = vsel %vm333, %v3965, %v3969
      %v3971 = vshrl.u32 %v3679, 16
      %v3973 = vrot.slane %v3971, 4
      %v3974 = vor.u32 %v3973, %v3969
      %v3975 = vrot.slane %v3974, 4
      %v3977 = vshll.u32 %v3680, 16
      %v3979 = vrot.slane %v3977, 5
      %v3980 = vsel %vm333, %v3975, %v3979
      %v3982 = vshrl.u32 %v3681, 16
      %v3984 = vrot.slane %v3982, 4
      %v3985 = vshll.u32 %v3681, 16
      %v3987 = vrot.slane %v3985, 5
      %v3988 = vor.u32 %v3984, %v3987
      %v3989 = vrot.slane %v3988, 4
      %v3991 = vshll.u32 %v3682, 16
      %v3993 = vrot.slane %v3991, 5
      %v3994 = vsel %vm333, %v3989, %v3993
      %v3995 = vshrl.u32 %v3682, 16
      %v3997 = vrot.slane %v3995, 4
      %v3998 = vor.u32 %v3997, %v3993
      %v3999 = vrot.slane %v3998, 4
      %v4001 = vshll.u32 %v3683, 16
      %v4003 = vrot.slane %v4001, 5
      %v4004 = vsel %vm333, %v3999, %v4003
      %v4006 = vshrl.u32 %v3684, 16
      %v4008 = vrot.slane %v4006, 4
      %v4009 = vshll.u32 %v3684, 16
      %v4011 = vrot.slane %v4009, 5
      %v4012 = vor.u32 %v4008, %v4011
      %v4013 = vrot.slane %v4012, 4
      %v4015 = vshll.u32 %v3685, 16
      %v4017 = vrot.slane %v4015, 5
      %v4018 = vsel %vm333, %v4013, %v4017
      %v4019 = vshrl.u32 %v3685, 16
      %v4021 = vrot.slane %v4019, 4
      %v4022 = vor.u32 %v4021, %v4017
      %v4023 = vrot.slane %v4022, 4
      %v4025 = vshll.u32 %v3686, 16
      %v4027 = vrot.slane %v4025, 5
      %v4028 = vsel %vm333, %v4023, %v4027
      %v4030 = vshrl.u32 %v3687, 16
      %v4032 = vrot.slane %v4030, 4
      %v4033 = vshll.u32 %v3687, 16
      %v4035 = vrot.slane %v4033, 5
      %v4036 = vor.u32 %v4032, %v4035
      %v4037 = vrot.slane %v4036, 4
      %v4039 = vshll.u32 %v3688, 16
      %v4041 = vrot.slane %v4039, 5
      %v4042 = vsel %vm333, %v4037, %v4041
      %v4043 = vshrl.u32 %v3688, 16
      %v4045 = vrot.slane %v4043, 4
      %v4046 = vor.u32 %v4045, %v4041
      %v4047 = vrot.slane %v4046, 4
      %v4049 = vshll.u32 %v3689, 16
      %v4051 = vrot.slane %v4049, 5
      %v4052 = vsel %vm333, %v4047, %v4051
      %v4054 = vshrl.u32 %v3690, 16
      %v4056 = vrot.slane %v4054, 4
      %v4057 = vshll.u32 %v3690, 16
      %v4059 = vrot.slane %v4057, 5
      %v4060 = vor.u32 %v4056, %v4059
      %v4061 = vrot.slane %v4060, 4
      %v4063 = vshll.u32 %v3691, 16
      %v4065 = vrot.slane %v4063, 5
      %v4066 = vsel %vm333, %v4061, %v4065
      %v4067 = vshrl.u32 %v3691, 16
      %v4069 = vrot.slane %v4067, 4
      %v4070 = vor.u32 %v4069, %v4065
      %v4071 = vrot.slane %v4070, 4
      %v4073 = vshll.u32 %v3692, 16
      %v4075 = vrot.slane %v4073, 5
      %v4076 = vsel %vm333, %v4071, %v4075
      %s4077 = scalar_lea.vmem %s261, 14
      %v4078 = vld [vmem:[%s4077] sm:$0x3]
      %v4079 = vunpack.c.l.b16 %v3706
      %v4080 = vunpack.c.l.b16 %v3716
      %v4081 = vunpack.c.l.b16 %v3730
      %v4082 = vunpack.c.l.b16 %v3740
      %v4083 = vunpack.c.l.b16 %v3754
      %v4084 = vunpack.c.l.b16 %v3764
      %v4085 = vunpack.c.l.b16 %v3778
      %v4086 = vunpack.c.l.b16 %v3788
      %v4087 = vunpack.c.l.b16 %v3802
      %v4088 = vunpack.c.l.b16 %v3812
      %v4089 = vunpack.c.l.b16 %v3826
      %v4090 = vunpack.c.l.b16 %v3836
      %v4091 = vunpack.c.l.b16 %v3850
      %v4092 = vunpack.c.l.b16 %v3860
      %v4093 = vunpack.c.l.b16 %v3874
      %v4094 = vunpack.c.l.b16 %v3884
      %v4095 = vunpack.c.l.b16 %v3898
      %v4096 = vunpack.c.l.b16 %v3908
      %v4097 = vunpack.c.l.b16 %v3922
      %v4098 = vunpack.c.l.b16 %v3932
      %v4099 = vunpack.c.l.b16 %v3946
      %v4100 = vunpack.c.l.b16 %v3956
      %v4101 = vunpack.c.l.b16 %v3970
      %v4102 = vunpack.c.l.b16 %v3980
      %v4103 = vunpack.c.l.b16 %v3994
      %v4104 = vunpack.c.l.b16 %v4004
      %v4105 = vunpack.c.l.b16 %v4018
      %v4106 = vunpack.c.l.b16 %v4028
      %v4107 = vunpack.c.l.b16 %v4042
      %v4108 = vunpack.c.l.b16 %v4052
      %v4109 = vunpack.c.l.b16 %v4066
      %v4110 = vunpack.c.l.b16 %v4076
      %v4111 = vpack.c.b16 %v4080, %v4079
      %v4112 = vpack.c.b16 %v4082, %v4081
      %v4113 = vpack.c.b16 %v4084, %v4083
      %v4114 = vpack.c.b16 %v4086, %v4085
      %v4115 = vpack.c.b16 %v4088, %v4087
      %v4116 = vpack.c.b16 %v4090, %v4089
      %v4117 = vpack.c.b16 %v4092, %v4091
      %v4118 = vpack.c.b16 %v4094, %v4093
      %v4119 = vpack.c.b16 %v4096, %v4095
      %v4120 = vpack.c.b16 %v4098, %v4097
      %v4121 = vpack.c.b16 %v4100, %v4099
      %v4122 = vpack.c.b16 %v4102, %v4101
      %v4123 = vpack.c.b16 %v4104, %v4103
      %v4124 = vpack.c.b16 %v4106, %v4105
      %v4125 = vpack.c.b16 %v4108, %v4107
      %v4126 = vpack.c.b16 %v4110, %v4109
      %v4128 = vsel %vm768, %v4111, 0
      %v4131 = vsel %vm768, %v4112, 0
      %v4134 = vsel %vm768, %v4113, 0
      %v4137 = vsel %vm768, %v4114, 0
      %v4140 = vsel %vm768, %v4115, 0
      %v4143 = vsel %vm768, %v4116, 0
      %v4146 = vsel %vm768, %v4117, 0
      %v4149 = vsel %vm768, %v4118, 0
      %v4152 = vsel %vm768, %v4119, 0
      %v4155 = vsel %vm768, %v4120, 0
      %v4158 = vsel %vm768, %v4121, 0
      %v4161 = vsel %vm768, %v4122, 0
      %v4164 = vsel %vm768, %v4123, 0
      %v4167 = vsel %vm768, %v4124, 0
      %v4170 = vsel %vm768, %v4125, 0
      %v4173 = vsel %vm768, %v4126, 0
      %v4176 = vsel %vm817, %v4078, 0
      %4178 = vmatprep.subr.bf16.mxu0 0
      %4179 = vmatpush1.bf16.msra.mxu0 0
      %4180 = vmatprep.subr.bf16.mxu0 0
      %4181 = vmatpush1.bf16.msra.mxu0 0
      %4182 = vmatprep.subr.bf16.mxu0 0
      %4183 = vmatpush1.bf16.msra.mxu0 0
      %4184 = vmatprep.subr.bf16.mxu0 0
      %4185 = vmatpush1.bf16.msra.mxu0 0
      %4186 = vmatprep.subr.bf16.mxu0 0
      %4187 = vmatpush1.bf16.msra.mxu0 0
      %4188 = vmatprep.subr.bf16.mxu0 0
      %4189 = vmatpush1.bf16.msra.mxu0 0
      %4190 = vmatprep.subr.bf16.mxu0 0
      %4191 = vmatpush1.bf16.msra.mxu0 0
      %4192 = vmatprep.subr.bf16.mxu0 0
      %4193 = vmatpush1.bf16.msra.mxu0 %v4176
      %4194 = vmatprep.subr.bf16.mxu0 0
      %4195 = vmatpush2.bf16.msra.mxu0 0
      %4196 = vmatprep.subr.bf16.mxu0 0
      %4197 = vmatpush2.bf16.msra.mxu0 0
      %4198 = vmatprep.subr.bf16.mxu0 0
      %4199 = vmatpush2.bf16.msra.mxu0 0
      %4200 = vmatprep.subr.bf16.mxu0 0
      %4201 = vmatpush2.bf16.msra.mxu0 0
      %4202 = vmatprep.subr.bf16.mxu0 0
      %4203 = vmatpush2.bf16.msra.mxu0 0
      %4204 = vmatprep.subr.bf16.mxu0 0
      %4205 = vmatpush2.bf16.msra.mxu0 0
      %4206 = vmatprep.subr.bf16.mxu0 0
      %4207 = vmatpush2.bf16.msra.mxu0 0
      %4208 = vmatprep.subr.bf16.mxu0 0
      %4209 = vmatpush2.bf16.msra.mxu0 0
      %4210 = vmatprep.mubr.bf16.mxu0 0
      %4211 = vmatmul.mubr.bf16.gmra.mxu0 %v4128
      %v4212 = vpop.f32.mrf.mxu0
      %v4213 = vadd.f32 0.0, %v4212
      %v4214 = vpop.f32.mrf.mxu0
      %v4215 = vpop.f32.mrf.mxu0
      %v4216 = vadd.f32 0.0, %v4215
      %v4217 = vpop.f32.mrf.mxu0
      %4218 = vmatprep.mubr.bf16.mxu0 0
      %4219 = vmatmul.mubr.bf16.gmra.mxu0 %v4131
      %v4220 = vpop.f32.mrf.mxu0
      %v4221 = vadd.f32 0.0, %v4220
      %v4222 = vpop.f32.mrf.mxu0
      %v4223 = vpop.f32.mrf.mxu0
      %v4224 = vadd.f32 0.0, %v4223
      %v4225 = vpop.f32.mrf.mxu0
      %4226 = vmatprep.mubr.bf16.mxu0 0
      %4227 = vmatmul.mubr.bf16.gmra.mxu0 %v4134
      %v4228 = vpop.f32.mrf.mxu0
      %v4229 = vadd.f32 0.0, %v4228
      %v4230 = vpop.f32.mrf.mxu0
      %v4231 = vpop.f32.mrf.mxu0
      %v4232 = vadd.f32 0.0, %v4231
      %v4233 = vpop.f32.mrf.mxu0
      %4234 = vmatprep.mubr.bf16.mxu0 0
      %4235 = vmatmul.mubr.bf16.gmra.mxu0 %v4137
      %v4236 = vpop.f32.mrf.mxu0
      %v4237 = vadd.f32 0.0, %v4236
      %v4238 = vpop.f32.mrf.mxu0
      %v4239 = vpop.f32.mrf.mxu0
      %v4240 = vadd.f32 0.0, %v4239
      %v4241 = vpop.f32.mrf.mxu0
      %4242 = vmatprep.mubr.bf16.mxu0 0
      %4243 = vmatmul.mubr.bf16.gmra.mxu0 %v4140
      %v4244 = vpop.f32.mrf.mxu0
      %v4245 = vadd.f32 0.0, %v4244
      %v4246 = vpop.f32.mrf.mxu0
      %v4247 = vpop.f32.mrf.mxu0
      %v4248 = vadd.f32 0.0, %v4247
      %v4249 = vpop.f32.mrf.mxu0
      %4250 = vmatprep.mubr.bf16.mxu0 0
      %4251 = vmatmul.mubr.bf16.gmra.mxu0 %v4143
      %v4252 = vpop.f32.mrf.mxu0
      %v4253 = vadd.f32 0.0, %v4252
      %v4254 = vpop.f32.mrf.mxu0
      %v4255 = vpop.f32.mrf.mxu0
      %v4256 = vadd.f32 0.0, %v4255
      %v4257 = vpop.f32.mrf.mxu0
      %4258 = vmatprep.mubr.bf16.mxu0 0
      %4259 = vmatmul.mubr.bf16.gmra.mxu0 %v4146
      %v4260 = vpop.f32.mrf.mxu0
      %v4261 = vadd.f32 0.0, %v4260
      %v4262 = vpop.f32.mrf.mxu0
      %v4263 = vpop.f32.mrf.mxu0
      %v4264 = vadd.f32 0.0, %v4263
      %v4265 = vpop.f32.mrf.mxu0
      %4266 = vmatprep.mubr.bf16.mxu0 0
      %4267 = vmatmul.mubr.bf16.gmra.mxu0 %v4149
      %v4268 = vpop.f32.mrf.mxu0
      %v4269 = vadd.f32 0.0, %v4268
      %v4270 = vpop.f32.mrf.mxu0
      %v4271 = vpop.f32.mrf.mxu0
      %v4272 = vadd.f32 0.0, %v4271
      %v4273 = vpop.f32.mrf.mxu0
      %4274 = vmatprep.mubr.bf16.mxu0 0
      %4275 = vmatmul.mubr.bf16.gmra.mxu0 %v4152
      %v4276 = vpop.f32.mrf.mxu0
      %v4277 = vadd.f32 0.0, %v4276
      %v4278 = vpop.f32.mrf.mxu0
      %v4279 = vpop.f32.mrf.mxu0
      %v4280 = vadd.f32 0.0, %v4279
      %v4281 = vpop.f32.mrf.mxu0
      %4282 = vmatprep.mubr.bf16.mxu0 0
      %4283 = vmatmul.mubr.bf16.gmra.mxu0 %v4155
      %v4284 = vpop.f32.mrf.mxu0
      %v4285 = vadd.f32 0.0, %v4284
      %v4286 = vpop.f32.mrf.mxu0
      %v4287 = vpop.f32.mrf.mxu0
      %v4288 = vadd.f32 0.0, %v4287
      %v4289 = vpop.f32.mrf.mxu0
      %4290 = vmatprep.mubr.bf16.mxu0 0
      %4291 = vmatmul.mubr.bf16.gmra.mxu0 %v4158
      %v4292 = vpop.f32.mrf.mxu0
      %v4293 = vadd.f32 0.0, %v4292
      %v4294 = vpop.f32.mrf.mxu0
      %v4295 = vpop.f32.mrf.mxu0
      %v4296 = vadd.f32 0.0, %v4295
      %v4297 = vpop.f32.mrf.mxu0
      %4298 = vmatprep.mubr.bf16.mxu0 0
      %4299 = vmatmul.mubr.bf16.gmra.mxu0 %v4161
      %v4300 = vpop.f32.mrf.mxu0
      %v4301 = vadd.f32 0.0, %v4300
      %v4302 = vpop.f32.mrf.mxu0
      %v4303 = vpop.f32.mrf.mxu0
      %v4304 = vadd.f32 0.0, %v4303
      %v4305 = vpop.f32.mrf.mxu0
      %4306 = vmatprep.mubr.bf16.mxu0 0
      %4307 = vmatmul.mubr.bf16.gmra.mxu0 %v4164
      %v4308 = vpop.f32.mrf.mxu0
      %v4309 = vadd.f32 0.0, %v4308
      %v4310 = vpop.f32.mrf.mxu0
      %v4311 = vpop.f32.mrf.mxu0
      %v4312 = vadd.f32 0.0, %v4311
      %v4313 = vpop.f32.mrf.mxu0
      %4314 = vmatprep.mubr.bf16.mxu0 0
      %4315 = vmatmul.mubr.bf16.gmra.mxu0 %v4167
      %v4316 = vpop.f32.mrf.mxu0
      %v4317 = vadd.f32 0.0, %v4316
      %v4318 = vpop.f32.mrf.mxu0
      %v4319 = vpop.f32.mrf.mxu0
      %v4320 = vadd.f32 0.0, %v4319
      %v4321 = vpop.f32.mrf.mxu0
      %4322 = vmatprep.mubr.bf16.mxu0 0
      %4323 = vmatmul.mubr.bf16.gmra.mxu0 %v4170
      %v4324 = vpop.f32.mrf.mxu0
      %v4325 = vadd.f32 0.0, %v4324
      %v4326 = vpop.f32.mrf.mxu0
      %v4327 = vpop.f32.mrf.mxu0
      %v4328 = vadd.f32 0.0, %v4327
      %v4329 = vpop.f32.mrf.mxu0
      %4330 = vmatprep.mubr.bf16.mxu0 0
      %4331 = vmatmul.mubr.bf16.gmra.mxu0 %v4173
      %v4332 = vpop.f32.mrf.mxu0
      %v4333 = vadd.f32 0.0, %v4332
      %v4334 = vpop.f32.mrf.mxu0
      %v4335 = vpop.f32.mrf.mxu0
      %v4336 = vadd.f32 0.0, %v4335
      %v4337 = vpop.f32.mrf.mxu0
      %4338 = vdwg.mxu0
      %v4339 = vadd.f32 %v3613, %v4213
      %v4340 = vadd.f32 %v3614, %v4216
      %v4341 = vadd.f32 %v3615, %v4221
      %v4342 = vadd.f32 %v3616, %v4224
      %v4343 = vadd.f32 %v3617, %v4229
      %v4344 = vadd.f32 %v3618, %v4232
      %v4345 = vadd.f32 %v3619, %v4237
      %v4346 = vadd.f32 %v3620, %v4240
      %v4347 = vadd.f32 %v3621, %v4245
      %v4348 = vadd.f32 %v3622, %v4248
      %v4349 = vadd.f32 %v3623, %v4253
      %v4350 = vadd.f32 %v3624, %v4256
      %v4351 = vadd.f32 %v3625, %v4261
      %v4352 = vadd.f32 %v3626, %v4264
      %v4353 = vadd.f32 %v3627, %v4269
      %v4354 = vadd.f32 %v3628, %v4272
      %v4355 = vadd.f32 %v3629, %v4277
      %v4356 = vadd.f32 %v3630, %v4280
      %v4357 = vadd.f32 %v3631, %v4285
      %v4358 = vadd.f32 %v3632, %v4288
      %v4359 = vadd.f32 %v3633, %v4293
      %v4360 = vadd.f32 %v3634, %v4296
      %v4361 = vadd.f32 %v3635, %v4301
      %v4362 = vadd.f32 %v3636, %v4304
      %v4363 = vadd.f32 %v3637, %v4309
      %v4364 = vadd.f32 %v3638, %v4312
      %v4365 = vadd.f32 %v3639, %v4317
      %v4366 = vadd.f32 %v3640, %v4320
      %v4367 = vadd.f32 %v3641, %v4325
      %v4368 = vadd.f32 %v3642, %v4328
      %v4369 = vadd.f32 %v3643, %v4333
      %v4370 = vadd.f32 %v3644, %v4336
      %v4371 = vld [vmem:[%s3286] sm:$0xe]
      %v4372 = vld [vmem:[%s3286 + $0xc] sm:$0xe]
      %v4373 = vld [vmem:[%s3286 + $0x18] sm:$0xe]
      %v4374 = vld [vmem:[%s3286 + $0x24] sm:$0xe]
      %v4375 = vld [vmem:[%s3286 + $0x30] sm:$0xe]
      %v4376 = vld [vmem:[%s3286 + $0x3c] sm:$0xe]
      %v4377 = vld [vmem:[%s3286 + $0x48] sm:$0xe]
      %v4378 = vld [vmem:[%s3286 + $0x54] sm:$0xe]
      %v4379 = vld [vmem:[%s3286 + $0x60] sm:$0xe]
      %v4380 = vld [vmem:[%s3286 + $0x6c] sm:$0xe]
      %v4381 = vld [vmem:[%s3286 + $0x78] sm:$0xe]
      %v4382 = vld [vmem:[%s3286 + $0x84] sm:$0xe]
      %v4383 = vld [vmem:[%s3286 + $0x90] sm:$0xe]
      %v4384 = vld [vmem:[%s3286 + $0x9c] sm:$0xe]
      %v4385 = vld [vmem:[%s3286 + $0xa8] sm:$0xe]
      %v4386 = vld [vmem:[%s3286 + $0xb4] sm:$0xe]
      %v4435 = vrot.slane %v4371, 5
      %v4436 = vrot.slane %v4435, 4
      %v4437 = vrot.slane %v3646, 5
      %v4438 = vsel %vm1324, %v4436, %v4437
      %v4439 = vrot.slane %v4437, 4
      %v4440 = vrot.slane %v3647, 5
      %v4441 = vsel %vm1324, %v4439, %v4440
      %v4442 = vrot.slane %v4372, 5
      %v4443 = vrot.slane %v4442, 4
      %v4444 = vrot.slane %v3649, 5
      %v4445 = vsel %vm1324, %v4443, %v4444
      %v4446 = vrot.slane %v4444, 4
      %v4447 = vrot.slane %v3650, 5
      %v4448 = vsel %vm1324, %v4446, %v4447
      %v4449 = vrot.slane %v4373, 5
      %v4450 = vrot.slane %v4449, 4
      %v4451 = vrot.slane %v3652, 5
      %v4452 = vsel %vm1324, %v4450, %v4451
      %v4453 = vrot.slane %v4451, 4
      %v4454 = vrot.slane %v3653, 5
      %v4455 = vsel %vm1324, %v4453, %v4454
      %v4456 = vrot.slane %v4374, 5
      %v4457 = vrot.slane %v4456, 4
      %v4458 = vrot.slane %v3655, 5
      %v4459 = vsel %vm1324, %v4457, %v4458
      %v4460 = vrot.slane %v4458, 4
      %v4461 = vrot.slane %v3656, 5
      %v4462 = vsel %vm1324, %v4460, %v4461
      %v4463 = vrot.slane %v4375, 5
      %v4464 = vrot.slane %v4463, 4
      %v4465 = vrot.slane %v3658, 5
      %v4466 = vsel %vm1324, %v4464, %v4465
      %v4467 = vrot.slane %v4465, 4
      %v4468 = vrot.slane %v3659, 5
      %v4469 = vsel %vm1324, %v4467, %v4468
      %v4470 = vrot.slane %v4376, 5
      %v4471 = vrot.slane %v4470, 4
      %v4472 = vrot.slane %v3661, 5
      %v4473 = vsel %vm1324, %v4471, %v4472
      %v4474 = vrot.slane %v4472, 4
      %v4475 = vrot.slane %v3662, 5
      %v4476 = vsel %vm1324, %v4474, %v4475
      %v4477 = vrot.slane %v4377, 5
      %v4478 = vrot.slane %v4477, 4
      %v4479 = vrot.slane %v3664, 5
      %v4480 = vsel %vm1324, %v4478, %v4479
      %v4481 = vrot.slane %v4479, 4
      %v4482 = vrot.slane %v3665, 5
      %v4483 = vsel %vm1324, %v4481, %v4482
      %v4484 = vrot.slane %v4378, 5
      %v4485 = vrot.slane %v4484, 4
      %v4486 = vrot.slane %v3667, 5
      %v4487 = vsel %vm1324, %v4485, %v4486
      %v4488 = vrot.slane %v4486, 4
      %v4489 = vrot.slane %v3668, 5
      %v4490 = vsel %vm1324, %v4488, %v4489
      %v4491 = vrot.slane %v4379, 5
      %v4492 = vrot.slane %v4491, 4
      %v4493 = vrot.slane %v3670, 5
      %v4494 = vsel %vm1324, %v4492, %v4493
      %v4495 = vrot.slane %v4493, 4
      %v4496 = vrot.slane %v3671, 5
      %v4497 = vsel %vm1324, %v4495, %v4496
      %v4498 = vrot.slane %v4380, 5
      %v4499 = vrot.slane %v4498, 4
      %v4500 = vrot.slane %v3673, 5
      %v4501 = vsel %vm1324, %v4499, %v4500
      %v4502 = vrot.slane %v4500, 4
      %v4503 = vrot.slane %v3674, 5
      %v4504 = vsel %vm1324, %v4502, %v4503
      %v4505 = vrot.slane %v4381, 5
      %v4506 = vrot.slane %v4505, 4
      %v4507 = vrot.slane %v3676, 5
      %v4508 = vsel %vm1324, %v4506, %v4507
      %v4509 = vrot.slane %v4507, 4
      %v4510 = vrot.slane %v3677, 5
      %v4511 = vsel %vm1324, %v4509, %v4510
      %v4512 = vrot.slane %v4382, 5
      %v4513 = vrot.slane %v4512, 4
      %v4514 = vrot.slane %v3679, 5
      %v4515 = vsel %vm1324, %v4513, %v4514
      %v4516 = vrot.slane %v4514, 4
      %v4517 = vrot.slane %v3680, 5
      %v4518 = vsel %vm1324, %v4516, %v4517
      %v4519 = vrot.slane %v4383, 5
      %v4520 = vrot.slane %v4519, 4
      %v4521 = vrot.slane %v3682, 5
      %v4522 = vsel %vm1324, %v4520, %v4521
      %v4523 = vrot.slane %v4521, 4
      %v4524 = vrot.slane %v3683, 5
      %v4525 = vsel %vm1324, %v4523, %v4524
      %v4526 = vrot.slane %v4384, 5
      %v4527 = vrot.slane %v4526, 4
      %v4528 = vrot.slane %v3685, 5
      %v4529 = vsel %vm1324, %v4527, %v4528
      %v4530 = vrot.slane %v4528, 4
      %v4531 = vrot.slane %v3686, 5
      %v4532 = vsel %vm1324, %v4530, %v4531
      %v4533 = vrot.slane %v4385, 5
      %v4534 = vrot.slane %v4533, 4
      %v4535 = vrot.slane %v3688, 5
      %v4536 = vsel %vm1324, %v4534, %v4535
      %v4537 = vrot.slane %v4535, 4
      %v4538 = vrot.slane %v3689, 5
      %v4539 = vsel %vm1324, %v4537, %v4538
      %v4540 = vrot.slane %v4386, 5
      %v4541 = vrot.slane %v4540, 4
      %v4542 = vrot.slane %v3691, 5
      %v4543 = vsel %vm1324, %v4541, %v4542
      %v4544 = vrot.slane %v4542, 4
      %v4545 = vrot.slane %v3692, 5
      %v4546 = vsel %vm1324, %v4544, %v4545
      %s4547 = scalar_lea.vmem %s261, 16
      %v4548 = vld [vmem:[%s4547] sm:$0x3]
      %v4549 = vunpack.c.l.b16 %v4438
      %v4550 = vunpack.c.l.b16 %v4441
      %v4551 = vunpack.c.l.b16 %v4445
      %v4552 = vunpack.c.l.b16 %v4448
      %v4553 = vunpack.c.l.b16 %v4452
      %v4554 = vunpack.c.l.b16 %v4455
      %v4555 = vunpack.c.l.b16 %v4459
      %v4556 = vunpack.c.l.b16 %v4462
      %v4557 = vunpack.c.l.b16 %v4466
      %v4558 = vunpack.c.l.b16 %v4469
      %v4559 = vunpack.c.l.b16 %v4473
      %v4560 = vunpack.c.l.b16 %v4476
      %v4561 = vunpack.c.l.b16 %v4480
      %v4562 = vunpack.c.l.b16 %v4483
      %v4563 = vunpack.c.l.b16 %v4487
      %v4564 = vunpack.c.l.b16 %v4490
      %v4565 = vunpack.c.l.b16 %v4494
      %v4566 = vunpack.c.l.b16 %v4497
      %v4567 = vunpack.c.l.b16 %v4501
      %v4568 = vunpack.c.l.b16 %v4504
      %v4569 = vunpack.c.l.b16 %v4508
      %v4570 = vunpack.c.l.b16 %v4511
      %v4571 = vunpack.c.l.b16 %v4515
      %v4572 = vunpack.c.l.b16 %v4518
      %v4573 = vunpack.c.l.b16 %v4522
      %v4574 = vunpack.c.l.b16 %v4525
      %v4575 = vunpack.c.l.b16 %v4529
      %v4576 = vunpack.c.l.b16 %v4532
      %v4577 = vunpack.c.l.b16 %v4536
      %v4578 = vunpack.c.l.b16 %v4539
      %v4579 = vunpack.c.l.b16 %v4543
      %v4580 = vunpack.c.l.b16 %v4546
      %v4581 = vpack.c.b16 %v4550, %v4549
      %v4582 = vpack.c.b16 %v4552, %v4551
      %v4583 = vpack.c.b16 %v4554, %v4553
      %v4584 = vpack.c.b16 %v4556, %v4555
      %v4585 = vpack.c.b16 %v4558, %v4557
      %v4586 = vpack.c.b16 %v4560, %v4559
      %v4587 = vpack.c.b16 %v4562, %v4561
      %v4588 = vpack.c.b16 %v4564, %v4563
      %v4589 = vpack.c.b16 %v4566, %v4565
      %v4590 = vpack.c.b16 %v4568, %v4567
      %v4591 = vpack.c.b16 %v4570, %v4569
      %v4592 = vpack.c.b16 %v4572, %v4571
      %v4593 = vpack.c.b16 %v4574, %v4573
      %v4594 = vpack.c.b16 %v4576, %v4575
      %v4595 = vpack.c.b16 %v4578, %v4577
      %v4596 = vpack.c.b16 %v4580, %v4579
      %v4598 = vsel %vm768, %v4581, 0
      %v4601 = vsel %vm768, %v4582, 0
      %v4604 = vsel %vm768, %v4583, 0
      %v4607 = vsel %vm768, %v4584, 0
      %v4610 = vsel %vm768, %v4585, 0
      %v4613 = vsel %vm768, %v4586, 0
      %v4616 = vsel %vm768, %v4587, 0
      %v4619 = vsel %vm768, %v4588, 0
      %v4622 = vsel %vm768, %v4589, 0
      %v4625 = vsel %vm768, %v4590, 0
      %v4628 = vsel %vm768, %v4591, 0
      %v4631 = vsel %vm768, %v4592, 0
      %v4634 = vsel %vm768, %v4593, 0
      %v4637 = vsel %vm768, %v4594, 0
      %v4640 = vsel %vm768, %v4595, 0
      %v4643 = vsel %vm768, %v4596, 0
      %v4646 = vsel %vm817, %v4548, 0
      %4648 = vmatprep.subr.bf16.mxu0 0
      %4649 = vmatpush1.bf16.msra.mxu0 0
      %4650 = vmatprep.subr.bf16.mxu0 0
      %4651 = vmatpush1.bf16.msra.mxu0 0
      %4652 = vmatprep.subr.bf16.mxu0 0
      %4653 = vmatpush1.bf16.msra.mxu0 0
      %4654 = vmatprep.subr.bf16.mxu0 0
      %4655 = vmatpush1.bf16.msra.mxu0 0
      %4656 = vmatprep.subr.bf16.mxu0 0
      %4657 = vmatpush1.bf16.msra.mxu0 0
      %4658 = vmatprep.subr.bf16.mxu0 0
      %4659 = vmatpush1.bf16.msra.mxu0 0
      %4660 = vmatprep.subr.bf16.mxu0 0
      %4661 = vmatpush1.bf16.msra.mxu0 0
      %4662 = vmatprep.subr.bf16.mxu0 0
      %4663 = vmatpush1.bf16.msra.mxu0 %v4646
      %4664 = vmatprep.subr.bf16.mxu0 0
      %4665 = vmatpush2.bf16.msra.mxu0 0
      %4666 = vmatprep.subr.bf16.mxu0 0
      %4667 = vmatpush2.bf16.msra.mxu0 0
      %4668 = vmatprep.subr.bf16.mxu0 0
      %4669 = vmatpush2.bf16.msra.mxu0 0
      %4670 = vmatprep.subr.bf16.mxu0 0
      %4671 = vmatpush2.bf16.msra.mxu0 0
      %4672 = vmatprep.subr.bf16.mxu0 0
      %4673 = vmatpush2.bf16.msra.mxu0 0
      %4674 = vmatprep.subr.bf16.mxu0 0
      %4675 = vmatpush2.bf16.msra.mxu0 0
      %4676 = vmatprep.subr.bf16.mxu0 0
      %4677 = vmatpush2.bf16.msra.mxu0 0
      %4678 = vmatprep.subr.bf16.mxu0 0
      %4679 = vmatpush2.bf16.msra.mxu0 0
      %4680 = vmatprep.mubr.bf16.mxu0 0
      %4681 = vmatmul.mubr.bf16.gmra.mxu0 %v4598
      %v4682 = vpop.f32.mrf.mxu0
      %v4683 = vadd.f32 0.0, %v4682
      %v4684 = vpop.f32.mrf.mxu0
      %v4685 = vpop.f32.mrf.mxu0
      %v4686 = vadd.f32 0.0, %v4685
      %v4687 = vpop.f32.mrf.mxu0
      %4688 = vmatprep.mubr.bf16.mxu0 0
      %4689 = vmatmul.mubr.bf16.gmra.mxu0 %v4601
      %v4690 = vpop.f32.mrf.mxu0
      %v4691 = vadd.f32 0.0, %v4690
      %v4692 = vpop.f32.mrf.mxu0
      %v4693 = vpop.f32.mrf.mxu0
      %v4694 = vadd.f32 0.0, %v4693
      %v4695 = vpop.f32.mrf.mxu0
      %4696 = vmatprep.mubr.bf16.mxu0 0
      %4697 = vmatmul.mubr.bf16.gmra.mxu0 %v4604
      %v4698 = vpop.f32.mrf.mxu0
      %v4699 = vadd.f32 0.0, %v4698
      %v4700 = vpop.f32.mrf.mxu0
      %v4701 = vpop.f32.mrf.mxu0
      %v4702 = vadd.f32 0.0, %v4701
      %v4703 = vpop.f32.mrf.mxu0
      %4704 = vmatprep.mubr.bf16.mxu0 0
      %4705 = vmatmul.mubr.bf16.gmra.mxu0 %v4607
      %v4706 = vpop.f32.mrf.mxu0
      %v4707 = vadd.f32 0.0, %v4706
      %v4708 = vpop.f32.mrf.mxu0
      %v4709 = vpop.f32.mrf.mxu0
      %v4710 = vadd.f32 0.0, %v4709
      %v4711 = vpop.f32.mrf.mxu0
      %4712 = vmatprep.mubr.bf16.mxu0 0
      %4713 = vmatmul.mubr.bf16.gmra.mxu0 %v4610
      %v4714 = vpop.f32.mrf.mxu0
      %v4715 = vadd.f32 0.0, %v4714
      %v4716 = vpop.f32.mrf.mxu0
      %v4717 = vpop.f32.mrf.mxu0
      %v4718 = vadd.f32 0.0, %v4717
      %v4719 = vpop.f32.mrf.mxu0
      %4720 = vmatprep.mubr.bf16.mxu0 0
      %4721 = vmatmul.mubr.bf16.gmra.mxu0 %v4613
      %v4722 = vpop.f32.mrf.mxu0
      %v4723 = vadd.f32 0.0, %v4722
      %v4724 = vpop.f32.mrf.mxu0
      %v4725 = vpop.f32.mrf.mxu0
      %v4726 = vadd.f32 0.0, %v4725
      %v4727 = vpop.f32.mrf.mxu0
      %4728 = vmatprep.mubr.bf16.mxu0 0
      %4729 = vmatmul.mubr.bf16.gmra.mxu0 %v4616
      %v4730 = vpop.f32.mrf.mxu0
      %v4731 = vadd.f32 0.0, %v4730
      %v4732 = vpop.f32.mrf.mxu0
      %v4733 = vpop.f32.mrf.mxu0
      %v4734 = vadd.f32 0.0, %v4733
      %v4735 = vpop.f32.mrf.mxu0
      %4736 = vmatprep.mubr.bf16.mxu0 0
      %4737 = vmatmul.mubr.bf16.gmra.mxu0 %v4619
      %v4738 = vpop.f32.mrf.mxu0
      %v4739 = vadd.f32 0.0, %v4738
      %v4740 = vpop.f32.mrf.mxu0
      %v4741 = vpop.f32.mrf.mxu0
      %v4742 = vadd.f32 0.0, %v4741
      %v4743 = vpop.f32.mrf.mxu0
      %4744 = vmatprep.mubr.bf16.mxu0 0
      %4745 = vmatmul.mubr.bf16.gmra.mxu0 %v4622
      %v4746 = vpop.f32.mrf.mxu0
      %v4747 = vadd.f32 0.0, %v4746
      %v4748 = vpop.f32.mrf.mxu0
      %v4749 = vpop.f32.mrf.mxu0
      %v4750 = vadd.f32 0.0, %v4749
      %v4751 = vpop.f32.mrf.mxu0
      %4752 = vmatprep.mubr.bf16.mxu0 0
      %4753 = vmatmul.mubr.bf16.gmra.mxu0 %v4625
      %v4754 = vpop.f32.mrf.mxu0
      %v4755 = vadd.f32 0.0, %v4754
      %v4756 = vpop.f32.mrf.mxu0
      %v4757 = vpop.f32.mrf.mxu0
      %v4758 = vadd.f32 0.0, %v4757
      %v4759 = vpop.f32.mrf.mxu0
      %4760 = vmatprep.mubr.bf16.mxu0 0
      %4761 = vmatmul.mubr.bf16.gmra.mxu0 %v4628
      %v4762 = vpop.f32.mrf.mxu0
      %v4763 = vadd.f32 0.0, %v4762
      %v4764 = vpop.f32.mrf.mxu0
      %v4765 = vpop.f32.mrf.mxu0
      %v4766 = vadd.f32 0.0, %v4765
      %v4767 = vpop.f32.mrf.mxu0
      %4768 = vmatprep.mubr.bf16.mxu0 0
      %4769 = vmatmul.mubr.bf16.gmra.mxu0 %v4631
      %v4770 = vpop.f32.mrf.mxu0
      %v4771 = vadd.f32 0.0, %v4770
      %v4772 = vpop.f32.mrf.mxu0
      %v4773 = vpop.f32.mrf.mxu0
      %v4774 = vadd.f32 0.0, %v4773
      %v4775 = vpop.f32.mrf.mxu0
      %4776 = vmatprep.mubr.bf16.mxu0 0
      %4777 = vmatmul.mubr.bf16.gmra.mxu0 %v4634
      %v4778 = vpop.f32.mrf.mxu0
      %v4779 = vadd.f32 0.0, %v4778
      %v4780 = vpop.f32.mrf.mxu0
      %v4781 = vpop.f32.mrf.mxu0
      %v4782 = vadd.f32 0.0, %v4781
      %v4783 = vpop.f32.mrf.mxu0
      %4784 = vmatprep.mubr.bf16.mxu0 0
      %4785 = vmatmul.mubr.bf16.gmra.mxu0 %v4637
      %v4786 = vpop.f32.mrf.mxu0
      %v4787 = vadd.f32 0.0, %v4786
      %v4788 = vpop.f32.mrf.mxu0
      %v4789 = vpop.f32.mrf.mxu0
      %v4790 = vadd.f32 0.0, %v4789
      %v4791 = vpop.f32.mrf.mxu0
      %4792 = vmatprep.mubr.bf16.mxu0 0
      %4793 = vmatmul.mubr.bf16.gmra.mxu0 %v4640
      %v4794 = vpop.f32.mrf.mxu0
      %v4795 = vadd.f32 0.0, %v4794
      %v4796 = vpop.f32.mrf.mxu0
      %v4797 = vpop.f32.mrf.mxu0
      %v4798 = vadd.f32 0.0, %v4797
      %v4799 = vpop.f32.mrf.mxu0
      %4800 = vmatprep.mubr.bf16.mxu0 0
      %4801 = vmatmul.mubr.bf16.gmra.mxu0 %v4643
      %v4802 = vpop.f32.mrf.mxu0
      %v4803 = vadd.f32 0.0, %v4802
      %v4804 = vpop.f32.mrf.mxu0
      %v4805 = vpop.f32.mrf.mxu0
      %v4806 = vadd.f32 0.0, %v4805
      %v4807 = vpop.f32.mrf.mxu0
      %4808 = vdwg.mxu0
      %v4809 = vadd.f32 %v4339, %v4683
      %v4810 = vadd.f32 %v4340, %v4686
      %v4811 = vadd.f32 %v4341, %v4691
      %v4812 = vadd.f32 %v4342, %v4694
      %v4813 = vadd.f32 %v4343, %v4699
      %v4814 = vadd.f32 %v4344, %v4702
      %v4815 = vadd.f32 %v4345, %v4707
      %v4816 = vadd.f32 %v4346, %v4710
      %v4817 = vadd.f32 %v4347, %v4715
      %v4818 = vadd.f32 %v4348, %v4718
      %v4819 = vadd.f32 %v4349, %v4723
      %v4820 = vadd.f32 %v4350, %v4726
      %v4821 = vadd.f32 %v4351, %v4731
      %v4822 = vadd.f32 %v4352, %v4734
      %v4823 = vadd.f32 %v4353, %v4739
      %v4824 = vadd.f32 %v4354, %v4742
      %v4825 = vadd.f32 %v4355, %v4747
      %v4826 = vadd.f32 %v4356, %v4750
      %v4827 = vadd.f32 %v4357, %v4755
      %v4828 = vadd.f32 %v4358, %v4758
      %v4829 = vadd.f32 %v4359, %v4763
      %v4830 = vadd.f32 %v4360, %v4766
      %v4831 = vadd.f32 %v4361, %v4771
      %v4832 = vadd.f32 %v4362, %v4774
      %v4833 = vadd.f32 %v4363, %v4779
      %v4834 = vadd.f32 %v4364, %v4782
      %v4835 = vadd.f32 %v4365, %v4787
      %v4836 = vadd.f32 %v4366, %v4790
      %v4837 = vadd.f32 %v4367, %v4795
      %v4838 = vadd.f32 %v4368, %v4798
      %v4839 = vadd.f32 %v4369, %v4803
      %v4840 = vadd.f32 %v4370, %v4806
      %v4841 = vld [vmem:[%s268] sm:$0x1]
      %v4842 = vlaneseq
      %v4843 = vshrl.u32 %v4842, 7
      %v4844 = vsub.s32 0, %v4843
      %v4845 = vrot.slane %v4841, %v4844
      %v4846 = vadd.f32 %v4809, %v4845
      %v4847 = vadd.f32 %v4810, %v4845
      %v4848 = vadd.f32 %v4811, %v4845
      %v4849 = vadd.f32 %v4812, %v4845
      %v4850 = vadd.f32 %v4813, %v4845
      %v4851 = vadd.f32 %v4814, %v4845
      %v4852 = vadd.f32 %v4815, %v4845
      %v4853 = vadd.f32 %v4816, %v4845
      %v4854 = vadd.f32 %v4817, %v4845
      %v4855 = vadd.f32 %v4818, %v4845
      %v4856 = vadd.f32 %v4819, %v4845
      %v4857 = vadd.f32 %v4820, %v4845
      %v4858 = vadd.f32 %v4821, %v4845
      %v4859 = vadd.f32 %v4822, %v4845
      %v4860 = vadd.f32 %v4823, %v4845
      %v4861 = vadd.f32 %v4824, %v4845
      %v4862 = vadd.f32 %v4825, %v4845
      %v4863 = vadd.f32 %v4826, %v4845
      %v4864 = vadd.f32 %v4827, %v4845
      %v4865 = vadd.f32 %v4828, %v4845
      %v4866 = vadd.f32 %v4829, %v4845
      %v4867 = vadd.f32 %v4830, %v4845
      %v4868 = vadd.f32 %v4831, %v4845
      %v4869 = vadd.f32 %v4832, %v4845
      %v4870 = vadd.f32 %v4833, %v4845
      %v4871 = vadd.f32 %v4834, %v4845
      %v4872 = vadd.f32 %v4835, %v4845
      %v4873 = vadd.f32 %v4836, %v4845
      %v4874 = vadd.f32 %v4837, %v4845
      %v4875 = vadd.f32 %v4838, %v4845
      %v4876 = vadd.f32 %v4839, %v4845
      %v4877 = vadd.f32 %v4840, %v4845
      %vm4878 = vcmp.gt.f32.partialorder %v4846, 0.0
      %vm4879 = vcmp.gt.f32.partialorder %v4847, 0.0
      %vm4880 = vcmp.gt.f32.partialorder %v4848, 0.0
      %vm4881 = vcmp.gt.f32.partialorder %v4849, 0.0
      %vm4882 = vcmp.gt.f32.partialorder %v4850, 0.0
      %vm4883 = vcmp.gt.f32.partialorder %v4851, 0.0
      %vm4884 = vcmp.gt.f32.partialorder %v4852, 0.0
      %vm4885 = vcmp.gt.f32.partialorder %v4853, 0.0
      %vm4886 = vcmp.gt.f32.partialorder %v4854, 0.0
      %vm4887 = vcmp.gt.f32.partialorder %v4855, 0.0
      %vm4888 = vcmp.gt.f32.partialorder %v4856, 0.0
      %vm4889 = vcmp.gt.f32.partialorder %v4857, 0.0
      %vm4890 = vcmp.gt.f32.partialorder %v4858, 0.0
      %vm4891 = vcmp.gt.f32.partialorder %v4859, 0.0
      %vm4892 = vcmp.gt.f32.partialorder %v4860, 0.0
      %vm4893 = vcmp.gt.f32.partialorder %v4861, 0.0
      %vm4894 = vcmp.gt.f32.partialorder %v4862, 0.0
      %vm4895 = vcmp.gt.f32.partialorder %v4863, 0.0
      %vm4896 = vcmp.gt.f32.partialorder %v4864, 0.0
      %vm4897 = vcmp.gt.f32.partialorder %v4865, 0.0
      %vm4898 = vcmp.gt.f32.partialorder %v4866, 0.0
      %vm4899 = vcmp.gt.f32.partialorder %v4867, 0.0
      %vm4900 = vcmp.gt.f32.partialorder %v4868, 0.0
      %vm4901 = vcmp.gt.f32.partialorder %v4869, 0.0
      %vm4902 = vcmp.gt.f32.partialorder %v4870, 0.0
      %vm4903 = vcmp.gt.f32.partialorder %v4871, 0.0
      %vm4904 = vcmp.gt.f32.partialorder %v4872, 0.0
      %vm4905 = vcmp.gt.f32.partialorder %v4873, 0.0
      %vm4906 = vcmp.gt.f32.partialorder %v4874, 0.0
      %vm4907 = vcmp.gt.f32.partialorder %v4875, 0.0
      %vm4908 = vcmp.gt.f32.partialorder %v4876, 0.0
      %vm4909 = vcmp.gt.f32.partialorder %v4877, 0.0
      %v4910 = vld [vmem:[%s268 + $0x1] sm:$0x1]
      %v4911 = vlaneseq
      %v4912 = vshrl.u32 %v4911, 7
      %v4913 = vsub.s32 0, %v4912
      %v4914 = vrot.slane %v4910, %v4913
      %v4915 = vmul.f32 %v4914, %v4846
      %v4916 = vmul.f32 %v4914, %v4847
      %v4917 = vmul.f32 %v4914, %v4848
      %v4918 = vmul.f32 %v4914, %v4849
      %v4919 = vmul.f32 %v4914, %v4850
      %v4920 = vmul.f32 %v4914, %v4851
      %v4921 = vmul.f32 %v4914, %v4852
      %v4922 = vmul.f32 %v4914, %v4853
      %v4923 = vmul.f32 %v4914, %v4854
      %v4924 = vmul.f32 %v4914, %v4855
      %v4925 = vmul.f32 %v4914, %v4856
      %v4926 = vmul.f32 %v4914, %v4857
      %v4927 = vmul.f32 %v4914, %v4858
      %v4928 = vmul.f32 %v4914, %v4859
      %v4929 = vmul.f32 %v4914, %v4860
      %v4930 = vmul.f32 %v4914, %v4861
      %v4931 = vmul.f32 %v4914, %v4862
      %v4932 = vmul.f32 %v4914, %v4863
      %v4933 = vmul.f32 %v4914, %v4864
      %v4934 = vmul.f32 %v4914, %v4865
      %v4935 = vmul.f32 %v4914, %v4866
      %v4936 = vmul.f32 %v4914, %v4867
      %v4937 = vmul.f32 %v4914, %v4868
      %v4938 = vmul.f32 %v4914, %v4869
      %v4939 = vmul.f32 %v4914, %v4870
      %v4940 = vmul.f32 %v4914, %v4871
      %v4941 = vmul.f32 %v4914, %v4872
      %v4942 = vmul.f32 %v4914, %v4873
      %v4943 = vmul.f32 %v4914, %v4874
      %v4944 = vmul.f32 %v4914, %v4875
      %v4945 = vmul.f32 %v4914, %v4876
      %v4946 = vmul.f32 %v4914, %v4877
      %v4947 = vsel %vm4878, %v4846, %v4915
      %v4948 = vsel %vm4879, %v4847, %v4916
      %v4949 = vsel %vm4880, %v4848, %v4917
      %v4950 = vsel %vm4881, %v4849, %v4918
      %v4951 = vsel %vm4882, %v4850, %v4919
      %v4952 = vsel %vm4883, %v4851, %v4920
      %v4953 = vsel %vm4884, %v4852, %v4921
      %v4954 = vsel %vm4885, %v4853, %v4922
      %v4955 = vsel %vm4886, %v4854, %v4923
      %v4956 = vsel %vm4887, %v4855, %v4924
      %v4957 = vsel %vm4888, %v4856, %v4925
      %v4958 = vsel %vm4889, %v4857, %v4926
      %v4959 = vsel %vm4890, %v4858, %v4927
      %v4960 = vsel %vm4891, %v4859, %v4928
      %v4961 = vsel %vm4892, %v4860, %v4929
      %v4962 = vsel %vm4893, %v4861, %v4930
      %v4963 = vsel %vm4894, %v4862, %v4931
      %v4964 = vsel %vm4895, %v4863, %v4932
      %v4965 = vsel %vm4896, %v4864, %v4933
      %v4966 = vsel %vm4897, %v4865, %v4934
      %v4967 = vsel %vm4898, %v4866, %v4935
      %v4968 = vsel %vm4899, %v4867, %v4936
      %v4969 = vsel %vm4900, %v4868, %v4937
      %v4970 = vsel %vm4901, %v4869, %v4938
      %v4971 = vsel %vm4902, %v4870, %v4939
      %v4972 = vsel %vm4903, %v4871, %v4940
      %v4973 = vsel %vm4904, %v4872, %v4941
      %v4974 = vsel %vm4905, %v4873, %v4942
      %v4975 = vsel %vm4906, %v4874, %v4943
      %v4976 = vsel %vm4907, %v4875, %v4944
      %v4977 = vsel %vm4908, %v4876, %v4945
      %v4978 = vsel %vm4909, %v4877, %v4946
      %v4979 = vpack.c.bf16 %v4948, %v4947
      %v4980 = vpack.c.bf16 %v4950, %v4949
      %v4981 = vpack.c.bf16 %v4952, %v4951
      %v4982 = vpack.c.bf16 %v4954, %v4953
      %v4983 = vpack.c.bf16 %v4956, %v4955
      %v4984 = vpack.c.bf16 %v4958, %v4957
      %v4985 = vpack.c.bf16 %v4960, %v4959
      %v4986 = vpack.c.bf16 %v4962, %v4961
      %v4987 = vpack.c.bf16 %v4964, %v4963
      %v4988 = vpack.c.bf16 %v4966, %v4965
      %v4989 = vpack.c.bf16 %v4968, %v4967
      %v4990 = vpack.c.bf16 %v4970, %v4969
      %v4991 = vpack.c.bf16 %v4972, %v4971
      %v4992 = vpack.c.bf16 %v4974, %v4973
      %v4993 = vpack.c.bf16 %v4976, %v4975
      %v4994 = vpack.c.bf16 %v4978, %v4977
      %v5011 = vunpack.c.l.b16 %v4979
      %v5012 = vunpack.c.h.b16 %v4979
      %v5013 = vunpack.c.l.b16 %v4980
      %v5014 = vunpack.c.h.b16 %v4980
      %v5015 = vunpack.c.l.b16 %v4981
      %v5016 = vunpack.c.h.b16 %v4981
      %v5017 = vunpack.c.l.b16 %v4982
      %v5018 = vunpack.c.h.b16 %v4982
      %v5019 = vunpack.c.l.b16 %v4983
      %v5020 = vunpack.c.h.b16 %v4983
      %v5021 = vunpack.c.l.b16 %v4984
      %v5022 = vunpack.c.h.b16 %v4984
      %v5023 = vunpack.c.l.b16 %v4985
      %v5024 = vunpack.c.h.b16 %v4985
      %v5025 = vunpack.c.l.b16 %v4986
      %v5026 = vunpack.c.h.b16 %v4986
      %v5027 = vunpack.c.l.b16 %v4987
      %v5028 = vunpack.c.h.b16 %v4987
      %v5029 = vunpack.c.l.b16 %v4988
      %v5030 = vunpack.c.h.b16 %v4988
      %v5031 = vunpack.c.l.b16 %v4989
      %v5032 = vunpack.c.h.b16 %v4989
      %v5033 = vunpack.c.l.b16 %v4990
      %v5034 = vunpack.c.h.b16 %v4990
      %v5035 = vunpack.c.l.b16 %v4991
      %v5036 = vunpack.c.h.b16 %v4991
      %v5037 = vunpack.c.l.b16 %v4992
      %v5038 = vunpack.c.h.b16 %v4992
      %v5039 = vunpack.c.l.b16 %v4993
      %v5040 = vunpack.c.h.b16 %v4993
      %v5041 = vunpack.c.l.b16 %v4994
      %v5042 = vunpack.c.h.b16 %v4994
      %v5043 = vpack.c.b16 %v5011, %v5011
      %v5044 = vpack.c.b16 %v5012, %v5012
      %v5045 = vpack.c.b16 %v5013, %v5013
      %v5046 = vpack.c.b16 %v5014, %v5014
      %v5047 = vpack.c.b16 %v5015, %v5015
      %v5048 = vpack.c.b16 %v5016, %v5016
      %v5049 = vpack.c.b16 %v5017, %v5017
      %v5050 = vpack.c.b16 %v5018, %v5018
      %v5051 = vpack.c.b16 %v5019, %v5019
      %v5052 = vpack.c.b16 %v5020, %v5020
      %v5053 = vpack.c.b16 %v5021, %v5021
      %v5054 = vpack.c.b16 %v5022, %v5022
      %v5055 = vpack.c.b16 %v5023, %v5023
      %v5056 = vpack.c.b16 %v5024, %v5024
      %v5057 = vpack.c.b16 %v5025, %v5025
      %v5058 = vpack.c.b16 %v5026, %v5026
      %v5059 = vpack.c.b16 %v5027, %v5027
      %v5060 = vpack.c.b16 %v5028, %v5028
      %v5061 = vpack.c.b16 %v5029, %v5029
      %v5062 = vpack.c.b16 %v5030, %v5030
      %v5063 = vpack.c.b16 %v5031, %v5031
      %v5064 = vpack.c.b16 %v5032, %v5032
      %v5065 = vpack.c.b16 %v5033, %v5033
      %v5066 = vpack.c.b16 %v5034, %v5034
      %v5067 = vpack.c.b16 %v5035, %v5035
      %v5068 = vpack.c.b16 %v5036, %v5036
      %v5069 = vpack.c.b16 %v5037, %v5037
      %v5070 = vpack.c.b16 %v5038, %v5038
      %v5071 = vpack.c.b16 %v5039, %v5039
      %v5072 = vpack.c.b16 %v5040, %v5040
      %v5073 = vpack.c.b16 %v5041, %v5041
      %v5074 = vpack.c.b16 %v5042, %v5042
      %5107 = vst [vmem:[%s280] sm:$0xf] %v5043
      %5108 = vst [vmem:[%s280 + $0x4] sm:$0xf] %v5044
      %5109 = vst [vmem:[%s280 + $0x8] sm:$0xf] %v5045
      %5110 = vst [vmem:[%s280 + $0xc] sm:$0xf] %v5046
      %5111 = vst [vmem:[%s280 + $0x10] sm:$0xf] %v5047
      %5112 = vst [vmem:[%s280 + $0x14] sm:$0xf] %v5048
      %5113 = vst [vmem:[%s280 + $0x18] sm:$0xf] %v5049
      %5114 = vst [vmem:[%s280 + $0x1c] sm:$0xf] %v5050
      %5115 = vst [vmem:[%s280 + $0x20] sm:$0xf] %v5051
      %5116 = vst [vmem:[%s280 + $0x24] sm:$0xf] %v5052
      %5117 = vst [vmem:[%s280 + $0x28] sm:$0xf] %v5053
      %5118 = vst [vmem:[%s280 + $0x2c] sm:$0xf] %v5054
      %5119 = vst [vmem:[%s280 + $0x30] sm:$0xf] %v5055
      %5120 = vst [vmem:[%s280 + $0x34] sm:$0xf] %v5056
      %5121 = vst [vmem:[%s280 + $0x38] sm:$0xf] %v5057
      %5122 = vst [vmem:[%s280 + $0x3c] sm:$0xf] %v5058
      %5123 = vst [vmem:[%s280 + $0x40] sm:$0xf] %v5059
      %5124 = vst [vmem:[%s280 + $0x44] sm:$0xf] %v5060
      %5125 = vst [vmem:[%s280 + $0x48] sm:$0xf] %v5061
      %5126 = vst [vmem:[%s280 + $0x4c] sm:$0xf] %v5062
      %5127 = vst [vmem:[%s280 + $0x50] sm:$0xf] %v5063
      %5128 = vst [vmem:[%s280 + $0x54] sm:$0xf] %v5064
      %5129 = vst [vmem:[%s280 + $0x58] sm:$0xf] %v5065
      %5130 = vst [vmem:[%s280 + $0x5c] sm:$0xf] %v5066
      %5131 = vst [vmem:[%s280 + $0x60] sm:$0xf] %v5067
      %5132 = vst [vmem:[%s280 + $0x64] sm:$0xf] %v5068
      %5133 = vst [vmem:[%s280 + $0x68] sm:$0xf] %v5069
      %5134 = vst [vmem:[%s280 + $0x6c] sm:$0xf] %v5070
      %5135 = vst [vmem:[%s280 + $0x70] sm:$0xf] %v5071
      %5136 = vst [vmem:[%s280 + $0x74] sm:$0xf] %v5072
      %5137 = vst [vmem:[%s280 + $0x78] sm:$0xf] %v5073
      %5138 = vst [vmem:[%s280 + $0x7c] sm:$0xf] %v5074
      %p5139 = scmp.lt.s32.totalorder %s19, 1
      %s5140 = scalar_select %p5139, %s19, 1
      %p5141 = scmp.lt.s32.totalorder %s20, 0
      %s5142 = scalar_select %p5141, %s20, 0
      %p5143 = scmp.lt.s32.totalorder %s21, 0
      %s5144 = scalar_select %p5143, %s21, 0
      %s5145 = smul.addr %s5142, 32
      %s5146 = sadd.s32 %s5144, %s5145
      %s5147 = smul.addr %s5140, 32
      %s5148 = sadd.s32 %s5146, %s5147
      %s5149 = smul.addr %s5148, 4
      %s5150 = scalar_lea.vmem %s3, %s5149
      // Predicated region
      $region33: #{conv_block_forward.1} parent=31 // pred_check
        %p5151 = pneg %p139
      $region34: #{conv_block_forward.1} parent=31 // pred_check_branch
        %5153 = sbr.rel (%p5151) target = $region36
      $region35: #{conv_block_forward.1} parent=31 // pred_region
        _
      $region36: #{conv_block_forward.1} parent=31 // pred_fallthru
        _
    $region32: #{conv_block_forward.1} parent=5 // pred_fallthru
      _
    %p5154 = scmp.le.s32.totalorder 2, %s9
    // Predicated region
    $region37: #{conv_block_forward.1} parent=5 // pred_check
      %p5155 = pneg %p5154
    $region38: #{conv_block_forward.1} parent=5 // pred_check_branch
      %5157 = sbr.rel (%p5155) target = $region40
    $region39: #{conv_block_forward.1} parent=5 // pred_region
      %s5158 = ssub.s32 %s9, 2
      // Predicated region
      $region41: #{conv_block_forward.1} parent=39 // pred_check
        %p5159 = pneg %p145
      $region42: #{conv_block_forward.1} parent=39 // pred_check_branch
        %5161 = sbr.rel (%p5159) target = $region44
      $region43: #{conv_block_forward.1} parent=39 // pred_region
        %p5162 = scmp.lt.s32.totalorder %s22, 1
        %s5163 = scalar_select %p5162, %s22, 1
        %p5164 = scmp.lt.s32.totalorder %s23, 0
        %s5165 = scalar_select %p5164, %s23, 0
        %p5166 = scmp.lt.s32.totalorder %s24, 0
        %s5167 = scalar_select %p5166, %s24, 0
        %s5168 = smul.addr %s5165, 32
        %s5169 = sadd.s32 %s5167, %s5168
        %s5170 = smul.addr %s5163, 32
        %s5171 = sadd.s32 %s5169, %s5170
        %s5172 = smul.addr %s5171, 4
        %s5173 = scalar_lea.vmem %s3, %s5172
      $region44: #{conv_block_forward.1} parent=39 // pred_fallthru
        _
    $region40: #{conv_block_forward.1} parent=5 // pred_fallthru
      _
  $region6: #{conv_block_forward.1} parent=0 // loop_footer
    %s13 = sadd.s32 1, %s9
  $region7: #{conv_block_forward.1} parent=0 // loop_footer_branch
    %8 = sbr.rel target = $region3
  $region8: #{conv_block_forward.1} parent=0 // loop_exit
    _

</llo_original>
